<compile_context>
chip_gen: v6e
topology: v6e:2x2x1
jax: 0.10.0
libtpu: 0.0.40
codegen_flags: <defaults>
</compile_context>

<pallas_src>
import functools

import jax
import jax.numpy as jnp
from jax.experimental import pallas as pl
from jax.experimental.pallas import tpu as pltpu

# MXU operand dtype; accumulation stays f32, LN/softmax math stays f32.
# (Set to jnp.float32 for bit-exact f32 everywhere, e.g. on v5e VPU-heavy configs.)
MXU_DTYPE = jnp.bfloat16
VMEM_LIMIT_BYTES = 48 * 1024 * 1024   # explicit scoped-VMEM cap, safe on v5e/v6e/v7x

_M_TILES = (256, 128, 64, 32, 16, 8)  # sublane-aligned row tiles
_LANE_TILES = (512, 256, 128)         # lane-aligned column / reduction tiles


def _pick(dim, prefs):
    """Largest preferred tile that divides `dim`; else fall back to the full dim."""
    for t in prefs:
        if t <= dim and dim % t == 0:
            return t
    return dim


def _cparams(semantics):
    return pltpu.CompilerParams(dimension_semantics=semantics,
                                vmem_limit_bytes=VMEM_LIMIT_BYTES)


# ----------------------------------------------------------------------------
# Pallas kernels
# ----------------------------------------------------------------------------
def _linear_kernel(x_ref, w_ref, b_ref, o_ref, acc_ref, *, relu):
    @pl.when(pl.program_id(2) == 0)
    def _():
        acc_ref[...] = jnp.zeros_like(acc_ref)

    acc_ref[...] += jnp.dot(x_ref[...].astype(MXU_DTYPE),
                            w_ref[...].astype(MXU_DTYPE),
                            preferred_element_type=jnp.float32)

    @pl.when(pl.program_id(2) == pl.num_programs(2) - 1)
    def _():
        y = acc_ref[...] + b_ref[...]
        if relu:
            y = jnp.maximum(y, 0.0)
        o_ref[...] = y.astype(o_ref.dtype)


def linear(x, w, b, relu=False):
    """x: (M, K), w: (K, N) [pre-transposed vs torch], b: (N,). Tiled matmul + bias (+ReLU)."""
    M, K = x.shape
    Kw, N = w.shape
    assert K == Kw
    tm = _pick(M, _M_TILES)
    tn = _pick(N, _LANE_TILES)
    tk = _pick(K, _LANE_TILES)
    return pl.pallas_call(
        functools.partial(_linear_kernel, relu=relu),
        grid=(M // tm, N // tn, K // tk),
        in_specs=[pl.BlockSpec((tm, tk), lambda i, j, k: (i, k)),
                  pl.BlockSpec((tk, tn), lambda i, j, k: (k, j)),
                  pl.BlockSpec((1, tn), lambda i, j, k: (0, j))],
        out_specs=pl.BlockSpec((tm, tn), lambda i, j, k: (i, j)),
        out_shape=jax.ShapeDtypeStruct((M, N), jnp.float32),
        scratch_shapes=[pltpu.VMEM((tm, tn), jnp.float32)],
        compiler_params=_cparams(("parallel", "parallel", "arbitrary")),
    )(x, w, b.reshape(1, N))


def _ffn_kernel(x_ref, w1_ref, b1_ref, w2_ref, b2_ref, o_ref, acc_ref):
    h = pl.program_id(1)

    @pl.when(h == 0)
    def _():
        acc_ref[...] = jnp.zeros_like(acc_ref)

    t = jnp.dot(x_ref[...].astype(MXU_DTYPE), w1_ref[...].astype(MXU_DTYPE),
                preferred_element_type=jnp.float32) + b1_ref[...]
    t = jnp.maximum(t, 0.0)                          # (tm, th) lives only in VMEM/vregs
    acc_ref[...] += jnp.dot(t.astype(MXU_DTYPE), w2_ref[...].astype(MXU_DTYPE),
                            preferred_element_type=jnp.float32)

    @pl.when(h == pl.num_programs(1) - 1)
    def _():
        o_ref[...] = (acc_ref[...] + b2_ref[...]).astype(o_ref.dtype)


def ffn(x, w1, b1, w2, b2):
    """Fused Linear -> ReLU -> Linear; (tm, mlp_dim) intermediate never round-trips HBM."""
    M, E = x.shape
    _, F = w1.shape
    tm = _pick(M, _M_TILES)
    th = _pick(F, _LANE_TILES)
    return pl.pallas_call(
        _ffn_kernel,
        grid=(M // tm, F // th),
        in_specs=[pl.BlockSpec((tm, E), lambda i, h: (i, 0)),
                  pl.BlockSpec((E, th), lambda i, h: (0, h)),
                  pl.BlockSpec((1, th), lambda i, h: (0, h)),
                  pl.BlockSpec((th, E), lambda i, h: (h, 0)),
                  pl.BlockSpec((1, E), lambda i, h: (0, 0))],
        out_specs=pl.BlockSpec((tm, E), lambda i, h: (i, 0)),
        out_shape=jax.ShapeDtypeStruct((M, E), jnp.float32),
        scratch_shapes=[pltpu.VMEM((tm, E), jnp.float32)],
        compiler_params=_cparams(("parallel", "arbitrary")),
    )(x, w1, b1.reshape(1, F), w2, b2.reshape(1, E))


def _add_ln_kernel(x_ref, r_ref, g_ref, b_ref, o_ref, *, eps):
    x = x_ref[...].astype(jnp.float32) + r_ref[...].astype(jnp.float32)  # fused residual
    mu = jnp.mean(x, axis=-1, keepdims=True)
    var = jnp.mean(jnp.square(x - mu), axis=-1, keepdims=True)
    y = (x - mu) * jax.lax.rsqrt(var + eps)
    o_ref[...] = (y * g_ref[...] + b_ref[...]).astype(o_ref.dtype)


def add_layernorm(x, r, g, b, eps=1e-5):
    """LayerNorm(x + r) over the last dim, tiled over rows."""
    M, E = x.shape
    tm = _pick(M, _M_TILES)
    row = pl.BlockSpec((tm, E), lambda i: (i, 0))
    vec = pl.BlockSpec((1, E), lambda i: (0, 0))
    return pl.pallas_call(
        functools.partial(_add_ln_kernel, eps=eps),
        grid=(M // tm,),
        in_specs=[row, row, vec, vec],
        out_specs=row,
        out_shape=jax.ShapeDtypeStruct((M, E), jnp.float32),
        compiler_params=_cparams(("parallel",)),
    )(x, r, g.reshape(1, E), b.reshape(1, E))


def _attn_kernel(q_ref, k_ref, v_ref, o_ref, *, scale):
    # Fold the softmax scale into q (S*Dh elems instead of S*S).
    q = (q_ref[...].astype(jnp.float32) * scale).astype(MXU_DTYPE)   # (G, S, Dh)
    k = k_ref[...].astype(MXU_DTYPE)
    v = v_ref[...].astype(MXU_DTYPE)
    s = jnp.einsum("gqd,gkd->gqk", q, k, preferred_element_type=jnp.float32)
    S = s.shape[-1]
    row = jax.lax.broadcasted_iota(jnp.int32, (S, S), 0)
    col = jax.lax.broadcasted_iota(jnp.int32, (S, S), 1)
    s = jnp.where(col <= row, s, jnp.float32(-1e30))    # causal mask built in-kernel
    s = s - jnp.max(s, axis=-1, keepdims=True)
    p = jnp.exp(s)
    p = p * pl.reciprocal(jnp.sum(p, axis=-1, keepdims=True), approx=True)
    o = jnp.einsum("gqk,gkd->gqd", p.astype(MXU_DTYPE), v,
                   preferred_element_type=jnp.float32)
    o_ref[...] = o.astype(o_ref.dtype)


def attention(q, k, v, scale):
    """q, k, v: (B*nhead, S, Dh); causal softmax attention, G heads per grid step."""
    BH, S, Dh = q.shape
    g = 1
    for cand in range(min(BH, 8), 0, -1):              # cap G; keep G*S*S scores small
        if BH % cand == 0 and cand * S * S * 4 <= (2 << 20):
            g = cand
            break
    spec = pl.BlockSpec((g, S, Dh), lambda i: (i, 0, 0))
    # TODO(synk): for long sequences convert to a flash-style online-softmax loop
    #             over KV tiles instead of materializing (G, S, S) scores.
    return pl.pallas_call(
        functools.partial(_attn_kernel, scale=scale),
        grid=(BH // g,),
        in_specs=[spec, spec, spec],
        out_specs=spec,
        out_shape=jax.ShapeDtypeStruct((BH, S, Dh), jnp.float32),
        compiler_params=_cparams(("parallel",)),
    )(q, k, v)


# ----------------------------------------------------------------------------
# Parameter initialization (deterministic, synthetic)
# ----------------------------------------------------------------------------
def init_params(key, *, embed_dim, num_patches, action_dim, context_len,
                num_layers, mlp_dim, act_hidden=128):
    keys = iter(jax.random.split(key, 256))

    def nrm(shape, scale=0.02):
        return (scale * jax.random.normal(next(keys), shape)).astype(jnp.float32)

    p = {
        # ActionMLP: Linear(action_dim, 128) -> ReLU -> Linear(128, embed_dim)
        "act_w1": nrm((action_dim, act_hidden)), "act_b1": nrm((act_hidden,)),
        "act_w2": nrm((act_hidden, embed_dim)), "act_b2": nrm((embed_dim,)),
        # positional params (torch.randn in the module)
        "time_pos": nrm((context_len + 1, 1, embed_dim), 1.0),
        "patch_pos": nrm((1, num_patches, embed_dim), 1.0),
        # final out_proj
        "out_w": nrm((embed_dim, embed_dim)), "out_b": nrm((embed_dim,)),
        "layers": [],
    }
    for _ in range(num_layers):
        qw, qb = nrm((embed_dim, embed_dim)), nrm((embed_dim,))
        kw, kb = nrm((embed_dim, embed_dim)), nrm((embed_dim,))
        vw, vb = nrm((embed_dim, embed_dim)), nrm((embed_dim,))
        p["layers"].append({
            "qw": qw, "qb": qb, "kw": kw, "kb": kb, "vw": vw, "vb": vb,
            # fused QKV weights used by the Pallas path
            "qkv_w": jnp.concatenate([qw, kw, vw], axis=1),
            "qkv_b": jnp.concatenate([qb, kb, vb], axis=0),
            "ow": nrm((embed_dim, embed_dim)), "ob": nrm((embed_dim,)),
            "ln1_g": jnp.ones((embed_dim,), jnp.float32),
            "ln1_b": jnp.zeros((embed_dim,), jnp.float32),
            "ff_w1": nrm((embed_dim, mlp_dim)), "ff_b1": nrm((mlp_dim,)),
            "ff_w2": nrm((mlp_dim, embed_dim)), "ff_b2": nrm((embed_dim,)),
            "ln2_g": jnp.ones((embed_dim,), jnp.float32),
            "ln2_b": jnp.zeros((embed_dim,), jnp.float32),
        })
    return p


# ----------------------------------------------------------------------------
# Model forward (Pallas-backed)
# ----------------------------------------------------------------------------
def transformer_layer(x, lp, nhead):
    """PyTorch TransformerEncoderLayer, post-norm, ReLU FFN (dropout = identity)."""
    B, S, E = x.shape
    Dh = E // nhead
    x2 = x.reshape(B * S, E)

    # Fused QKV projection: one (E, 3E) matmul instead of three (E, E) ones.
    qkv = linear(x2, lp["qkv_w"], lp["qkv_b"])                       # (B*S, 3E)
    # TODO(synk): fold the head split/merge into the attention BlockSpec index_maps
    #             instead of these XLA-level transposes.
    qkv = qkv.reshape(B, S, 3, nhead, Dh).transpose(2, 0, 3, 1, 4)   # (3, B, nh, S, Dh)
    q = qkv[0].reshape(B * nhead, S, Dh)
    k = qkv[1].reshape(B * nhead, S, Dh)
    v = qkv[2].reshape(B * nhead, S, Dh)

    a = attention(q, k, v, 1.0 / (Dh ** 0.5))
    a = a.reshape(B, nhead, S, Dh).transpose(0, 2, 1, 3).reshape(B * S, E)
    a = linear(a, lp["ow"], lp["ob"])

    x2 = add_layernorm(x2, a, lp["ln1_g"], lp["ln1_b"])              # residual fused in
    ff = ffn(x2, lp["ff_w1"], lp["ff_b1"], lp["ff_w2"], lp["ff_b2"])  # fully fused FFN
    x2 = add_layernorm(x2, ff, lp["ln2_g"], lp["ln2_b"])
    return x2.reshape(B, S, E)


def transition_vit_forward(params, z_context, a_context, z_t, a_t, *, nhead):
    B, H, N, E = z_context.shape
    A = a_context.shape[-1]

    def action_mlp(a2d):
        h = linear(a2d, params["act_w1"], params["act_b1"], relu=True)
        return linear(h, params["act_w2"], params["act_b2"])

    # action conditioning
    a_ctx_enc = action_mlp(a_context.reshape(B * H, A)).reshape(B, H, 1, E)
    z_context = z_context + a_ctx_enc                 # broadcast over N patches
    a_t_enc = action_mlp(a_t)                         # (B, E)
    z_t = z_t + a_t_enc[:, None, :]

    # build sequence + positional embeddings
    z_seq = jnp.concatenate([z_context, z_t[:, None]], axis=1)       # (B, H+1, N, E)
    z_seq = z_seq + params["time_pos"][: H + 1] + params["patch_pos"]
    S = (H + 1) * N
    x = z_seq.reshape(B, S, E)

    # causal mask is generated inside the attention kernel (no dense (S,S) input)
    for lp in params["layers"]:
        x = transformer_layer(x, lp, nhead)

    z_pred = x[:, -N:, :]
    z_pred = linear(z_pred.reshape(B * N, E), params["out_w"], params["out_b"])
    return z_pred.reshape(B, N, E)


# ----------------------------------------------------------------------------
# Pure-JAX reference (for correctness checking only)
# ----------------------------------------------------------------------------
def reference_forward(params, z_context, a_context, z_t, a_t, *, nhead):
    def lin(x, w, b, relu=False):
        y = x @ w + b
        return jnp.maximum(y, 0.0) if relu else y

    def ln(x, g, b, eps=1e-5):
        mu = x.mean(-1, keepdims=True)
        var = ((x - mu) ** 2).mean(-1, keepdims=True)
        return (x - mu) / jnp.sqrt(var + eps) * g + b

    B, H, N, E = z_context.shape
    A = a_context.shape[-1]

    def amlp(a2d):
        return lin(lin(a2d, params["act_w1"], params["act_b1"], True),
                   params["act_w2"], params["act_b2"])

    zc = z_context + amlp(a_context.reshape(B * H, A)).reshape(B, H, 1, E)
    zt = z_t + amlp(a_t)[:, None, :]
    z = jnp.concatenate([zc, zt[:, None]], axis=1)
    z = z + params["time_pos"][: H + 1] + params["patch_pos"]
    S = (H + 1) * N
    x = z.reshape(B, S, E)
    bias = jnp.where(jnp.triu(jnp.ones((S, S)), 1) > 0, -1e30, 0.0)
    Dh = E // nhead
    for lp in params["layers"]:
        x2 = x.reshape(B * S, E)

        def heads(t):
            return t.reshape(B, S, nhead, Dh).transpose(0, 2, 1, 3)

        q = heads(lin(x2, lp["qw"], lp["qb"]))
        k = heads(lin(x2, lp["kw"], lp["kb"]))
        v = heads(lin(x2, lp["vw"], lp["vb"]))
        s = jnp.einsum("bhqd,bhkd->bhqk", q, k) / (Dh ** 0.5) + bias
        p = jax.nn.softmax(s, axis=-1)
        a = jnp.einsum("bhqk,bhkd->bhqd", p, v).transpose(0, 2, 1, 3).reshape(B * S, E)
        a = lin(a, lp["ow"], lp["ob"])
        x2 = ln(x2 + a, lp["ln1_g"], lp["ln1_b"])
        ff = lin(lin(x2, lp["ff_w1"], lp["ff_b1"], True), lp["ff_w2"], lp["ff_b2"])
        x2 = ln(x2 + ff, lp["ln2_g"], lp["ln2_b"])
        x = x2.reshape(B, S, E)
    zp = x[:, -N:, :].reshape(B * N, E)
    return lin(zp, params["out_w"], params["out_b"]).reshape(B, N, E)


# ----------------------------------------------------------------------------
if __name__ == "__main__":
    # small shapes consistent with the module; E=128 keeps last dims lane-dense
    B, H, N, E = 2, 2, 4, 128         # batch, context_len, num_patches, embed_dim
    A = 6                             # action_dim
    nhead, num_layers, mlp_dim = 8, 2, 256

    key = jax.random.PRNGKey(0)
    kp, kz, ka, kzt, kat = jax.random.split(key, 5)
    params = init_params(kp, embed_dim=E, num_patches=N, action_dim=A,
                         context_len=H, num_layers=num_layers, mlp_dim=mlp_dim)

    z_context = jax.random.normal(kz, (B, H, N, E), jnp.float32)
    a_context = jax.random.normal(ka, (B, H, A), jnp.float32)
    z_t = jax.random.normal(kzt, (B, N, E), jnp.float32)
    a_t = jax.random.normal(kat, (B, A), jnp.float32)

    fwd = jax.jit(functools.partial(transition_vit_forward, nhead=nhead))
    out = jax.block_until_ready(fwd(params, z_context, a_context, z_t, a_t))
    assert out.shape == (B, N, E) and out.dtype == jnp.float32

    ref = jax.block_until_ready(
        reference_forward(params, z_context, a_context, z_t, a_t, nhead=nhead))
    err = float(jnp.max(jnp.abs(out - ref)))
    if err > 5e-2:
        raise AssertionError(f"Pallas / reference mismatch, max abs err = {err}")

    print("KERNEL_OK")
</pallas_src>

<mosaic_0001>
module attributes {stable_mosaic.version = 11 : i64} {
  func.func @_linear_kernel(%arg0: i32, %arg1: i32, %arg2: i32, %arg3: memref<4x6xf32, #tpu.memory_space<vmem>>, %arg4: memref<6x128xf32, #tpu.memory_space<vmem>>, %arg5: memref<1x128xf32, #tpu.memory_space<vmem>>, %arg6: memref<4x128xf32, #tpu.memory_space<vmem>>, %arg7: memref<4x128xf32, #tpu.memory_space<vmem>>) attributes {dimension_semantics = [#tpu.dimension_semantics<parallel>, #tpu.dimension_semantics<parallel>, #tpu.dimension_semantics<arbitrary>], iteration_bounds = array<i64: 1, 1, 1>, scalar_prefetch = 0 : i64, scratch_operands = 1 : i64, tpu.core_type = #tpu.core_type<tc>, window_params = [{transform_indices = @transform_0, window_bounds = array<i64: 4, 6>}, {transform_indices = @transform_1, window_bounds = array<i64: 6, 128>}, {transform_indices = @transform_2, window_bounds = array<i64: 1, 128>}, {transform_indices = @transform_3, window_bounds = array<i64: 4, 128>}]} {
    %c0_i32 = arith.constant 0 : i32
    %0 = arith.cmpi eq, %arg2, %c0_i32 : i32
    %1 = arith.extui %0 : i1 to i32
    %c0_i32_0 = arith.constant 0 : i32
    %2 = arith.cmpi ne, %1, %c0_i32_0 : i32
    scf.if %2 {
      %cst_10 = arith.constant 0.000000e+00 : f32
      %14 = vector.broadcast %cst_10 : f32 to vector<4x128xf32>
      %c0_11 = arith.constant 0 : index
      %c0_12 = arith.constant 0 : index
      %15 = vector.load %arg7[%c0_11, %c0_12] : memref<4x128xf32, #tpu.memory_space<vmem>>, vector<4x128xf32>
      tpu.vector_store %arg7[%c0_11, %c0_12], %14 {strides = array<i32>} : memref<4x128xf32, #tpu.memory_space<vmem>>, vector<4x128xf32>,
    } else {
    }
    %c0 = arith.constant 0 : index
    %c0_1 = arith.constant 0 : index
    %3 = vector.load %arg7[%c0, %c0_1] : memref<4x128xf32, #tpu.memory_space<vmem>>, vector<4x128xf32>
    %c0_2 = arith.constant 0 : index
    %c0_3 = arith.constant 0 : index
    %4 = vector.load %arg3[%c0_2, %c0_3] : memref<4x6xf32, #tpu.memory_space<vmem>>, vector<4x6xf32>
    %5 = arith.truncf %4 : vector<4x6xf32> to vector<4x6xbf16>
    %c0_4 = arith.constant 0 : index
    %c0_5 = arith.constant 0 : index
    %6 = vector.load %arg4[%c0_4, %c0_5] : memref<6x128xf32, #tpu.memory_space<vmem>>, vector<6x128xf32>
    %7 = arith.truncf %6 : vector<6x128xf32> to vector<6x128xbf16>
    %cst = arith.constant dense<0.000000e+00> : vector<4x128xf32>
    %8 = tpu.matmul %5, %7, %cst {dimension_numbers = #tpu.dot_dimension_numbers<[1], [0], [0], [1], [0, 0, 1, 1], [], []>} : vector<4x6xbf16>, vector<6x128xbf16>, vector<4x128xf32> -> vector<4x128xf32>
    %9 = arith.addf %3, %8 : vector<4x128xf32>
    %c0_6 = arith.constant 0 : index
    %c0_7 = arith.constant 0 : index
    %10 = vector.load %arg7[%c0_6, %c0_7] : memref<4x128xf32, #tpu.memory_space<vmem>>, vector<4x128xf32>
    tpu.vector_store %arg7[%c0_6, %c0_7], %9 {strides = array<i32>} : memref<4x128xf32, #tpu.memory_space<vmem>>, vector<4x128xf32>,
    %c0_i32_8 = arith.constant 0 : i32
    %11 = arith.cmpi eq, %arg2, %c0_i32_8 : i32
    %12 = arith.extui %11 : i1 to i32
    %c0_i32_9 = arith.constant 0 : i32
    %13 = arith.cmpi ne, %12, %c0_i32_9 : i32
    scf.if %13 {
      %c0_10 = arith.constant 0 : index
      %c0_11 = arith.constant 0 : index
      %14 = vector.load %arg7[%c0_10, %c0_11] : memref<4x128xf32, #tpu.memory_space<vmem>>, vector<4x128xf32>
      %c0_12 = arith.constant 0 : index
      %c0_13 = arith.constant 0 : index
      %15 = vector.load %arg5[%c0_12, %c0_13] : memref<1x128xf32, #tpu.memory_space<vmem>>, vector<1x128xf32>
      %16 = vector.broadcast %15 : vector<1x128xf32> to vector<4x128xf32>
      %17 = arith.addf %14, %16 : vector<4x128xf32>
      %cst_14 = arith.constant 0.000000e+00 : f32
      %18 = vector.broadcast %cst_14 : f32 to vector<4x128xf32>
      %19 = arith.maximumf %17, %18 : vector<4x128xf32>
      %c0_15 = arith.constant 0 : index
      %c0_16 = arith.constant 0 : index
      %20 = vector.load %arg6[%c0_15, %c0_16] : memref<4x128xf32, #tpu.memory_space<vmem>>, vector<4x128xf32>
      tpu.vector_store %arg6[%c0_15, %c0_16], %19 {strides = array<i32>} : memref<4x128xf32, #tpu.memory_space<vmem>>, vector<4x128xf32>,
    } else {
    }
    return
  }
  func.func @transform_0(%arg0: i32, %arg1: i32, %arg2: i32) -> (i32, i32) {
    %c0_i32 = arith.constant 0 : i32
    return %arg0, %arg2 : i32, i32
  }
  func.func @transform_1(%arg0: i32, %arg1: i32, %arg2: i32) -> (i32, i32) {
    %c0_i32 = arith.constant 0 : i32
    return %arg2, %arg1 : i32, i32
  }
  func.func @transform_2(%arg0: i32, %arg1: i32, %arg2: i32) -> (i32, i32) {
    %c0_i32 = arith.constant 0 : i32
    %c0_i32_0 = arith.constant 0 : i32
    return %c0_i32, %arg1 : i32, i32
  }
  func.func @transform_3(%arg0: i32, %arg1: i32, %arg2: i32) -> (i32, i32) {
    %c0_i32 = arith.constant 0 : i32
    return %arg0, %arg1 : i32, i32
  }
}

module attributes {stable_mosaic.version = 11 : i64} {
  func.func @_linear_kernel(%arg0: i32, %arg1: i32, %arg2: i32, %arg3: memref<2x6xf32, #tpu.memory_space<vmem>>, %arg4: memref<6x128xf32, #tpu.memory_space<vmem>>, %arg5: memref<1x128xf32, #tpu.memory_space<vmem>>, %arg6: memref<2x128xf32, #tpu.memory_space<vmem>>, %arg7: memref<2x128xf32, #tpu.memory_space<vmem>>) attributes {dimension_semantics = [#tpu.dimension_semantics<parallel>, #tpu.dimension_semantics<parallel>, #tpu.dimension_semantics<arbitrary>], iteration_bounds = array<i64: 1, 1, 1>, scalar_prefetch = 0 : i64, scratch_operands = 1 : i64, tpu.core_type = #tpu.core_type<tc>, window_params = [{transform_indices = @transform_0, window_bounds = array<i64: 2, 6>}, {transform_indices = @transform_1, window_bounds = array<i64: 6, 128>}, {transform_indices = @transform_2, window_bounds = array<i64: 1, 128>}, {transform_indices = @transform_3, window_bounds = array<i64: 2, 128>}]} {
    %c0_i32 = arith.constant 0 : i32
    %0 = arith.cmpi eq, %arg2, %c0_i32 : i32
    %1 = arith.extui %0 : i1 to i32
    %c0_i32_0 = arith.constant 0 : i32
    %2 = arith.cmpi ne, %1, %c0_i32_0 : i32
    scf.if %2 {
      %cst_10 = arith.constant 0.000000e+00 : f32
      %14 = vector.broadcast %cst_10 : f32 to vector<2x128xf32>
      %c0_11 = arith.constant 0 : index
      %c0_12 = arith.constant 0 : index
      %15 = vector.load %arg7[%c0_11, %c0_12] : memref<2x128xf32, #tpu.memory_space<vmem>>, vector<2x128xf32>
      tpu.vector_store %arg7[%c0_11, %c0_12], %14 {strides = array<i32>} : memref<2x128xf32, #tpu.memory_space<vmem>>, vector<2x128xf32>,
    } else {
    }
    %c0 = arith.constant 0 : index
    %c0_1 = arith.constant 0 : index
    %3 = vector.load %arg7[%c0, %c0_1] : memref<2x128xf32, #tpu.memory_space<vmem>>, vector<2x128xf32>
    %c0_2 = arith.constant 0 : index
    %c0_3 = arith.constant 0 : index
    %4 = vector.load %arg3[%c0_2, %c0_3] : memref<2x6xf32, #tpu.memory_space<vmem>>, vector<2x6xf32>
    %5 = arith.truncf %4 : vector<2x6xf32> to vector<2x6xbf16>
    %c0_4 = arith.constant 0 : index
    %c0_5 = arith.constant 0 : index
    %6 = vector.load %arg4[%c0_4, %c0_5] : memref<6x128xf32, #tpu.memory_space<vmem>>, vector<6x128xf32>
    %7 = arith.truncf %6 : vector<6x128xf32> to vector<6x128xbf16>
    %cst = arith.constant dense<0.000000e+00> : vector<2x128xf32>
    %8 = tpu.matmul %5, %7, %cst {dimension_numbers = #tpu.dot_dimension_numbers<[1], [0], [0], [1], [0, 0, 1, 1], [], []>} : vector<2x6xbf16>, vector<6x128xbf16>, vector<2x128xf32> -> vector<2x128xf32>
    %9 = arith.addf %3, %8 : vector<2x128xf32>
    %c0_6 = arith.constant 0 : index
    %c0_7 = arith.constant 0 : index
    %10 = vector.load %arg7[%c0_6, %c0_7] : memref<2x128xf32, #tpu.memory_space<vmem>>, vector<2x128xf32>
    tpu.vector_store %arg7[%c0_6, %c0_7], %9 {strides = array<i32>} : memref<2x128xf32, #tpu.memory_space<vmem>>, vector<2x128xf32>,
    %c0_i32_8 = arith.constant 0 : i32
    %11 = arith.cmpi eq, %arg2, %c0_i32_8 : i32
    %12 = arith.extui %11 : i1 to i32
    %c0_i32_9 = arith.constant 0 : i32
    %13 = arith.cmpi ne, %12, %c0_i32_9 : i32
    scf.if %13 {
      %c0_10 = arith.constant 0 : index
      %c0_11 = arith.constant 0 : index
      %14 = vector.load %arg7[%c0_10, %c0_11] : memref<2x128xf32, #tpu.memory_space<vmem>>, vector<2x128xf32>
      %c0_12 = arith.constant 0 : index
      %c0_13 = arith.constant 0 : index
      %15 = vector.load %arg5[%c0_12, %c0_13] : memref<1x128xf32, #tpu.memory_space<vmem>>, vector<1x128xf32>
      %16 = vector.broadcast %15 : vector<1x128xf32> to vector<2x128xf32>
      %17 = arith.addf %14, %16 : vector<2x128xf32>
      %cst_14 = arith.constant 0.000000e+00 : f32
      %18 = vector.broadcast %cst_14 : f32 to vector<2x128xf32>
      %19 = arith.maximumf %17, %18 : vector<2x128xf32>
      %c0_15 = arith.constant 0 : index
      %c0_16 = arith.constant 0 : index
      %20 = vector.load %arg6[%c0_15, %c0_16] : memref<2x128xf32, #tpu.memory_space<vmem>>, vector<2x128xf32>
      tpu.vector_store %arg6[%c0_15, %c0_16], %19 {strides = array<i32>} : memref<2x128xf32, #tpu.memory_space<vmem>>, vector<2x128xf32>,
    } else {
    }
    return
  }
  func.func @transform_0(%arg0: i32, %arg1: i32, %arg2: i32) -> (i32, i32) {
    %c0_i32 = arith.constant 0 : i32
    return %arg0, %arg2 : i32, i32
  }
  func.func @transform_1(%arg0: i32, %arg1: i32, %arg2: i32) -> (i32, i32) {
    %c0_i32 = arith.constant 0 : i32
    return %arg2, %arg1 : i32, i32
  }
  func.func @transform_2(%arg0: i32, %arg1: i32, %arg2: i32) -> (i32, i32) {
    %c0_i32 = arith.constant 0 : i32
    %c0_i32_0 = arith.constant 0 : i32
    return %c0_i32, %arg1 : i32, i32
  }
  func.func @transform_3(%arg0: i32, %arg1: i32, %arg2: i32) -> (i32, i32) {
    %c0_i32 = arith.constant 0 : i32
    return %arg0, %arg1 : i32, i32
  }
}

module attributes {stable_mosaic.version = 11 : i64} {
  func.func @_linear_kernel(%arg0: i32, %arg1: i32, %arg2: i32, %arg3: memref<4x128xf32, #tpu.memory_space<vmem>>, %arg4: memref<128x128xf32, #tpu.memory_space<vmem>>, %arg5: memref<1x128xf32, #tpu.memory_space<vmem>>, %arg6: memref<4x128xf32, #tpu.memory_space<vmem>>, %arg7: memref<4x128xf32, #tpu.memory_space<vmem>>) attributes {dimension_semantics = [#tpu.dimension_semantics<parallel>, #tpu.dimension_semantics<parallel>, #tpu.dimension_semantics<arbitrary>], iteration_bounds = array<i64: 1, 1, 1>, scalar_prefetch = 0 : i64, scratch_operands = 1 : i64, tpu.core_type = #tpu.core_type<tc>, window_params = [{transform_indices = @transform_0, window_bounds = array<i64: 4, 128>}, {transform_indices = @transform_1, window_bounds = array<i64: 128, 128>}, {transform_indices = @transform_2, window_bounds = array<i64: 1, 128>}, {transform_indices = @transform_3, window_bounds = array<i64: 4, 128>}]} {
    %c0_i32 = arith.constant 0 : i32
    %0 = arith.cmpi eq, %arg2, %c0_i32 : i32
    %1 = arith.extui %0 : i1 to i32
    %c0_i32_0 = arith.constant 0 : i32
    %2 = arith.cmpi ne, %1, %c0_i32_0 : i32
    scf.if %2 {
      %cst_10 = arith.constant 0.000000e+00 : f32
      %14 = vector.broadcast %cst_10 : f32 to vector<4x128xf32>
      %c0_11 = arith.constant 0 : index
      %c0_12 = arith.constant 0 : index
      %15 = vector.load %arg7[%c0_11, %c0_12] : memref<4x128xf32, #tpu.memory_space<vmem>>, vector<4x128xf32>
      tpu.vector_store %arg7[%c0_11, %c0_12], %14 {strides = array<i32>} : memref<4x128xf32, #tpu.memory_space<vmem>>, vector<4x128xf32>,
    } else {
    }
    %c0 = arith.constant 0 : index
    %c0_1 = arith.constant 0 : index
    %3 = vector.load %arg7[%c0, %c0_1] : memref<4x128xf32, #tpu.memory_space<vmem>>, vector<4x128xf32>
    %c0_2 = arith.constant 0 : index
    %c0_3 = arith.constant 0 : index
    %4 = vector.load %arg3[%c0_2, %c0_3] : memref<4x128xf32, #tpu.memory_space<vmem>>, vector<4x128xf32>
    %5 = arith.truncf %4 : vector<4x128xf32> to vector<4x128xbf16>
    %c0_4 = arith.constant 0 : index
    %c0_5 = arith.constant 0 : index
    %6 = vector.load %arg4[%c0_4, %c0_5] : memref<128x128xf32, #tpu.memory_space<vmem>>, vector<128x128xf32>
    %7 = arith.truncf %6 : vector<128x128xf32> to vector<128x128xbf16>
    %cst = arith.constant dense<0.000000e+00> : vector<4x128xf32>
    %8 = tpu.matmul %5, %7, %cst {dimension_numbers = #tpu.dot_dimension_numbers<[1], [0], [0], [1], [0, 0, 1, 1], [], []>} : vector<4x128xbf16>, vector<128x128xbf16>, vector<4x128xf32> -> vector<4x128xf32>
    %9 = arith.addf %3, %8 : vector<4x128xf32>
    %c0_6 = arith.constant 0 : index
    %c0_7 = arith.constant 0 : index
    %10 = vector.load %arg7[%c0_6, %c0_7] : memref<4x128xf32, #tpu.memory_space<vmem>>, vector<4x128xf32>
    tpu.vector_store %arg7[%c0_6, %c0_7], %9 {strides = array<i32>} : memref<4x128xf32, #tpu.memory_space<vmem>>, vector<4x128xf32>,
    %c0_i32_8 = arith.constant 0 : i32
    %11 = arith.cmpi eq, %arg2, %c0_i32_8 : i32
    %12 = arith.extui %11 : i1 to i32
    %c0_i32_9 = arith.constant 0 : i32
    %13 = arith.cmpi ne, %12, %c0_i32_9 : i32
    scf.if %13 {
      %c0_10 = arith.constant 0 : index
      %c0_11 = arith.constant 0 : index
      %14 = vector.load %arg7[%c0_10, %c0_11] : memref<4x128xf32, #tpu.memory_space<vmem>>, vector<4x128xf32>
      %c0_12 = arith.constant 0 : index
      %c0_13 = arith.constant 0 : index
      %15 = vector.load %arg5[%c0_12, %c0_13] : memref<1x128xf32, #tpu.memory_space<vmem>>, vector<1x128xf32>
      %16 = vector.broadcast %15 : vector<1x128xf32> to vector<4x128xf32>
      %17 = arith.addf %14, %16 : vector<4x128xf32>
      %c0_14 = arith.constant 0 : index
      %c0_15 = arith.constant 0 : index
      %18 = vector.load %arg6[%c0_14, %c0_15] : memref<4x128xf32, #tpu.memory_space<vmem>>, vector<4x128xf32>
      tpu.vector_store %arg6[%c0_14, %c0_15], %17 {strides = array<i32>} : memref<4x128xf32, #tpu.memory_space<vmem>>, vector<4x128xf32>,
    } else {
    }
    return
  }
  func.func @transform_0(%arg0: i32, %arg1: i32, %arg2: i32) -> (i32, i32) {
    %c0_i32 = arith.constant 0 : i32
    return %arg0, %arg2 : i32, i32
  }
  func.func @transform_1(%arg0: i32, %arg1: i32, %arg2: i32) -> (i32, i32) {
    %c0_i32 = arith.constant 0 : i32
    return %arg2, %arg1 : i32, i32
  }
  func.func @transform_2(%arg0: i32, %arg1: i32, %arg2: i32) -> (i32, i32) {
    %c0_i32 = arith.constant 0 : i32
    %c0_i32_0 = arith.constant 0 : i32
    return %c0_i32, %arg1 : i32, i32
  }
  func.func @transform_3(%arg0: i32, %arg1: i32, %arg2: i32) -> (i32, i32) {
    %c0_i32 = arith.constant 0 : i32
    return %arg0, %arg1 : i32, i32
  }
}

module attributes {stable_mosaic.version = 11 : i64} {
  func.func @_linear_kernel(%arg0: i32, %arg1: i32, %arg2: i32, %arg3: memref<2x128xf32, #tpu.memory_space<vmem>>, %arg4: memref<128x128xf32, #tpu.memory_space<vmem>>, %arg5: memref<1x128xf32, #tpu.memory_space<vmem>>, %arg6: memref<2x128xf32, #tpu.memory_space<vmem>>, %arg7: memref<2x128xf32, #tpu.memory_space<vmem>>) attributes {dimension_semantics = [#tpu.dimension_semantics<parallel>, #tpu.dimension_semantics<parallel>, #tpu.dimension_semantics<arbitrary>], iteration_bounds = array<i64: 1, 1, 1>, scalar_prefetch = 0 : i64, scratch_operands = 1 : i64, tpu.core_type = #tpu.core_type<tc>, window_params = [{transform_indices = @transform_0, window_bounds = array<i64: 2, 128>}, {transform_indices = @transform_1, window_bounds = array<i64: 128, 128>}, {transform_indices = @transform_2, window_bounds = array<i64: 1, 128>}, {transform_indices = @transform_3, window_bounds = array<i64: 2, 128>}]} {
    %c0_i32 = arith.constant 0 : i32
    %0 = arith.cmpi eq, %arg2, %c0_i32 : i32
    %1 = arith.extui %0 : i1 to i32
    %c0_i32_0 = arith.constant 0 : i32
    %2 = arith.cmpi ne, %1, %c0_i32_0 : i32
    scf.if %2 {
      %cst_10 = arith.constant 0.000000e+00 : f32
      %14 = vector.broadcast %cst_10 : f32 to vector<2x128xf32>
      %c0_11 = arith.constant 0 : index
      %c0_12 = arith.constant 0 : index
      %15 = vector.load %arg7[%c0_11, %c0_12] : memref<2x128xf32, #tpu.memory_space<vmem>>, vector<2x128xf32>
      tpu.vector_store %arg7[%c0_11, %c0_12], %14 {strides = array<i32>} : memref<2x128xf32, #tpu.memory_space<vmem>>, vector<2x128xf32>,
    } else {
    }
    %c0 = arith.constant 0 : index
    %c0_1 = arith.constant 0 : index
    %3 = vector.load %arg7[%c0, %c0_1] : memref<2x128xf32, #tpu.memory_space<vmem>>, vector<2x128xf32>
    %c0_2 = arith.constant 0 : index
    %c0_3 = arith.constant 0 : index
    %4 = vector.load %arg3[%c0_2, %c0_3] : memref<2x128xf32, #tpu.memory_space<vmem>>, vector<2x128xf32>
    %5 = arith.truncf %4 : vector<2x128xf32> to vector<2x128xbf16>
    %c0_4 = arith.constant 0 : index
    %c0_5 = arith.constant 0 : index
    %6 = vector.load %arg4[%c0_4, %c0_5] : memref<128x128xf32, #tpu.memory_space<vmem>>, vector<128x128xf32>
    %7 = arith.truncf %6 : vector<128x128xf32> to vector<128x128xbf16>
    %cst = arith.constant dense<0.000000e+00> : vector<2x128xf32>
    %8 = tpu.matmul %5, %7, %cst {dimension_numbers = #tpu.dot_dimension_numbers<[1], [0], [0], [1], [0, 0, 1, 1], [], []>} : vector<2x128xbf16>, vector<128x128xbf16>, vector<2x128xf32> -> vector<2x128xf32>
    %9 = arith.addf %3, %8 : vector<2x128xf32>
    %c0_6 = arith.constant 0 : index
    %c0_7 = arith.constant 0 : index
    %10 = vector.load %arg7[%c0_6, %c0_7] : memref<2x128xf32, #tpu.memory_space<vmem>>, vector<2x128xf32>
    tpu.vector_store %arg7[%c0_6, %c0_7], %9 {strides = array<i32>} : memref<2x128xf32, #tpu.memory_space<vmem>>, vector<2x128xf32>,
    %c0_i32_8 = arith.constant 0 : i32
    %11 = arith.cmpi eq, %arg2, %c0_i32_8 : i32
    %12 = arith.extui %11 : i1 to i32
    %c0_i32_9 = arith.constant 0 : i32
    %13 = arith.cmpi ne, %12, %c0_i32_9 : i32
    scf.if %13 {
      %c0_10 = arith.constant 0 : index
      %c0_11 = arith.constant 0 : index
      %14 = vector.load %arg7[%c0_10, %c0_11] : memref<2x128xf32, #tpu.memory_space<vmem>>, vector<2x128xf32>
      %c0_12 = arith.constant 0 : index
      %c0_13 = arith.constant 0 : index
      %15 = vector.load %arg5[%c0_12, %c0_13] : memref<1x128xf32, #tpu.memory_space<vmem>>, vector<1x128xf32>
      %16 = vector.broadcast %15 : vector<1x128xf32> to vector<2x128xf32>
      %17 = arith.addf %14, %16 : vector<2x128xf32>
      %c0_14 = arith.constant 0 : index
      %c0_15 = arith.constant 0 : index
      %18 = vector.load %arg6[%c0_14, %c0_15] : memref<2x128xf32, #tpu.memory_space<vmem>>, vector<2x128xf32>
      tpu.vector_store %arg6[%c0_14, %c0_15], %17 {strides = array<i32>} : memref<2x128xf32, #tpu.memory_space<vmem>>, vector<2x128xf32>,
    } else {
    }
    return
  }
  func.func @transform_0(%arg0: i32, %arg1: i32, %arg2: i32) -> (i32, i32) {
    %c0_i32 = arith.constant 0 : i32
    return %arg0, %arg2 : i32, i32
  }
  func.func @transform_1(%arg0: i32, %arg1: i32, %arg2: i32) -> (i32, i32) {
    %c0_i32 = arith.constant 0 : i32
    return %arg2, %arg1 : i32, i32
  }
  func.func @transform_2(%arg0: i32, %arg1: i32, %arg2: i32) -> (i32, i32) {
    %c0_i32 = arith.constant 0 : i32
    %c0_i32_0 = arith.constant 0 : i32
    return %c0_i32, %arg1 : i32, i32
  }
  func.func @transform_3(%arg0: i32, %arg1: i32, %arg2: i32) -> (i32, i32) {
    %c0_i32 = arith.constant 0 : i32
    return %arg0, %arg1 : i32, i32
  }
}

module attributes {stable_mosaic.version = 11 : i64} {
  func.func @_linear_kernel(%arg0: i32, %arg1: i32, %arg2: i32, %arg3: memref<8x128xf32, #tpu.memory_space<vmem>>, %arg4: memref<128x128xf32, #tpu.memory_space<vmem>>, %arg5: memref<1x128xf32, #tpu.memory_space<vmem>>, %arg6: memref<8x128xf32, #tpu.memory_space<vmem>>, %arg7: memref<8x128xf32, #tpu.memory_space<vmem>>) attributes {dimension_semantics = [#tpu.dimension_semantics<parallel>, #tpu.dimension_semantics<parallel>, #tpu.dimension_semantics<arbitrary>], iteration_bounds = array<i64: 3, 3, 1>, scalar_prefetch = 0 : i64, scratch_operands = 1 : i64, tpu.core_type = #tpu.core_type<tc>, window_params = [{transform_indices = @transform_0, window_bounds = array<i64: 8, 128>}, {transform_indices = @transform_1, window_bounds = array<i64: 128, 128>}, {transform_indices = @transform_2, window_bounds = array<i64: 1, 128>}, {transform_indices = @transform_3, window_bounds = array<i64: 8, 128>}]} {
    %c0_i32 = arith.constant 0 : i32
    %0 = arith.cmpi eq, %arg2, %c0_i32 : i32
    %1 = arith.extui %0 : i1 to i32
    %c0_i32_0 = arith.constant 0 : i32
    %2 = arith.cmpi ne, %1, %c0_i32_0 : i32
    scf.if %2 {
      %cst_10 = arith.constant 0.000000e+00 : f32
      %14 = vector.broadcast %cst_10 : f32 to vector<8x128xf32>
      %c0_11 = arith.constant 0 : index
      %c0_12 = arith.constant 0 : index
      %15 = vector.load %arg7[%c0_11, %c0_12] : memref<8x128xf32, #tpu.memory_space<vmem>>, vector<8x128xf32>
      tpu.vector_store %arg7[%c0_11, %c0_12], %14 {strides = array<i32>} : memref<8x128xf32, #tpu.memory_space<vmem>>, vector<8x128xf32>,
    } else {
    }
    %c0 = arith.constant 0 : index
    %c0_1 = arith.constant 0 : index
    %3 = vector.load %arg7[%c0, %c0_1] : memref<8x128xf32, #tpu.memory_space<vmem>>, vector<8x128xf32>
    %c0_2 = arith.constant 0 : index
    %c0_3 = arith.constant 0 : index
    %4 = vector.load %arg3[%c0_2, %c0_3] : memref<8x128xf32, #tpu.memory_space<vmem>>, vector<8x128xf32>
    %5 = arith.truncf %4 : vector<8x128xf32> to vector<8x128xbf16>
    %c0_4 = arith.constant 0 : index
    %c0_5 = arith.constant 0 : index
    %6 = vector.load %arg4[%c0_4, %c0_5] : memref<128x128xf32, #tpu.memory_space<vmem>>, vector<128x128xf32>
    %7 = arith.truncf %6 : vector<128x128xf32> to vector<128x128xbf16>
    %cst = arith.constant dense<0.000000e+00> : vector<8x128xf32>
    %8 = tpu.matmul %5, %7, %cst {dimension_numbers = #tpu.dot_dimension_numbers<[1], [0], [0], [1], [0, 0, 1, 1], [], []>} : vector<8x128xbf16>, vector<128x128xbf16>, vector<8x128xf32> -> vector<8x128xf32>
    %9 = arith.addf %3, %8 : vector<8x128xf32>
    %c0_6 = arith.constant 0 : index
    %c0_7 = arith.constant 0 : index
    %10 = vector.load %arg7[%c0_6, %c0_7] : memref<8x128xf32, #tpu.memory_space<vmem>>, vector<8x128xf32>
    tpu.vector_store %arg7[%c0_6, %c0_7], %9 {strides = array<i32>} : memref<8x128xf32, #tpu.memory_space<vmem>>, vector<8x128xf32>,
    %c0_i32_8 = arith.constant 0 : i32
    %11 = arith.cmpi eq, %arg2, %c0_i32_8 : i32
    %12 = arith.extui %11 : i1 to i32
    %c0_i32_9 = arith.constant 0 : i32
    %13 = arith.cmpi ne, %12, %c0_i32_9 : i32
    scf.if %13 {
      %c0_10 = arith.constant 0 : index
      %c0_11 = arith.constant 0 : index
      %14 = vector.load %arg7[%c0_10, %c0_11] : memref<8x128xf32, #tpu.memory_space<vmem>>, vector<8x128xf32>
      %c0_12 = arith.constant 0 : index
      %c0_13 = arith.constant 0 : index
      %15 = vector.load %arg5[%c0_12, %c0_13] : memref<1x128xf32, #tpu.memory_space<vmem>>, vector<1x128xf32>
      %16 = vector.broadcast %15 : vector<1x128xf32> to vector<8x128xf32>
      %17 = arith.addf %14, %16 : vector<8x128xf32>
      %c0_14 = arith.constant 0 : index
      %c0_15 = arith.constant 0 : index
      %18 = vector.load %arg6[%c0_14, %c0_15] : memref<8x128xf32, #tpu.memory_space<vmem>>, vector<8x128xf32>
      tpu.vector_store %arg6[%c0_14, %c0_15], %17 {strides = array<i32>} : memref<8x128xf32, #tpu.memory_space<vmem>>, vector<8x128xf32>,
    } else {
    }
    return
  }
  func.func @transform_0(%arg0: i32, %arg1: i32, %arg2: i32) -> (i32, i32) {
    %c0_i32 = arith.constant 0 : i32
    return %arg0, %arg2 : i32, i32
  }
  func.func @transform_1(%arg0: i32, %arg1: i32, %arg2: i32) -> (i32, i32) {
    %c0_i32 = arith.constant 0 : i32
    return %arg2, %arg1 : i32, i32
  }
  func.func @transform_2(%arg0: i32, %arg1: i32, %arg2: i32) -> (i32, i32) {
    %c0_i32 = arith.constant 0 : i32
    %c0_i32_0 = arith.constant 0 : i32
    return %c0_i32, %arg1 : i32, i32
  }
  func.func @transform_3(%arg0: i32, %arg1: i32, %arg2: i32) -> (i32, i32) {
    %c0_i32 = arith.constant 0 : i32
    return %arg0, %arg1 : i32, i32
  }
}

module attributes {stable_mosaic.version = 11 : i64} {
  func.func @_attn_kernel(%arg0: i32, %arg1: memref<8x12x16xf32, #tpu.memory_space<vmem>>, %arg2: memref<8x12x16xf32, #tpu.memory_space<vmem>>, %arg3: memref<8x12x16xf32, #tpu.memory_space<vmem>>, %arg4: memref<8x12x16xf32, #tpu.memory_space<vmem>>) attributes {dimension_semantics = [#tpu.dimension_semantics<parallel>], iteration_bounds = array<i64: 2>, scalar_prefetch = 0 : i64, scratch_operands = 0 : i64, tpu.core_type = #tpu.core_type<tc>, window_params = [{transform_indices = @transform_0, window_bounds = array<i64: 8, 12, 16>}, {transform_indices = @transform_1, window_bounds = array<i64: 8, 12, 16>}, {transform_indices = @transform_2, window_bounds = array<i64: 8, 12, 16>}, {transform_indices = @transform_3, window_bounds = array<i64: 8, 12, 16>}]} {
    %c0 = arith.constant 0 : index
    %c0_0 = arith.constant 0 : index
    %c0_1 = arith.constant 0 : index
    %0 = vector.load %arg1[%c0, %c0_0, %c0_1] : memref<8x12x16xf32, #tpu.memory_space<vmem>>, vector<8x12x16xf32>
    %cst = arith.constant 2.500000e-01 : f32
    %1 = vector.broadcast %cst : f32 to vector<8x12x16xf32>
    %2 = arith.mulf %0, %1 : vector<8x12x16xf32>
    %3 = arith.truncf %2 : vector<8x12x16xf32> to vector<8x12x16xbf16>
    %c0_2 = arith.constant 0 : index
    %c0_3 = arith.constant 0 : index
    %c0_4 = arith.constant 0 : index
    %4 = vector.load %arg2[%c0_2, %c0_3, %c0_4] : memref<8x12x16xf32, #tpu.memory_space<vmem>>, vector<8x12x16xf32>
    %5 = arith.truncf %4 : vector<8x12x16xf32> to vector<8x12x16xbf16>
    %c0_5 = arith.constant 0 : index
    %c0_6 = arith.constant 0 : index
    %c0_7 = arith.constant 0 : index
    %6 = vector.load %arg3[%c0_5, %c0_6, %c0_7] : memref<8x12x16xf32, #tpu.memory_space<vmem>>, vector<8x12x16xf32>
    %7 = arith.truncf %6 : vector<8x12x16xf32> to vector<8x12x16xbf16>
    "tpu.trace_start"() <{level = 10 : i32, message = "gqd,gkd->gqk"}> : () -> ()
    %cst_8 = arith.constant dense<0.000000e+00> : vector<8x12x12xf32>
    %8 = tpu.matmul %3, %5, %cst_8 {dimension_numbers = #tpu.dot_dimension_numbers<[2], [2], [1], [1], [0, 0, 0, 1, 1, 1], [0], [0]>} : vector<8x12x16xbf16>, vector<8x12x16xbf16>, vector<8x12x12xf32> -> vector<8x12x12xf32>
    "tpu.trace_stop"() : () -> ()
    %9 = tpu.iota {dimensions = array<i32: 0>} : vector<12x12xi32>
    %10 = tpu.iota {dimensions = array<i32: 1>} : vector<12x12xi32>
    %11 = arith.cmpi sle, %10, %9 : vector<12x12xi32>
    %cst_9 = arith.constant -1.000000e+30 : f32
    %12 = vector.shape_cast %11 : vector<12x12xi1> to vector<1x12x12xi1>
    %13 = vector.broadcast %12 : vector<1x12x12xi1> to vector<8x12x12xi1>
    %14 = vector.broadcast %cst_9 : f32 to vector<8x12x12xf32>
    %15 = arith.select %13, %8, %14 : vector<8x12x12xi1>, vector<8x12x12xf32>
    %cst_10 = arith.constant dense<0xFF800000> : vector<8x12xf32>
    %16 = vector.multi_reduction <maximumf>, %15, %cst_10 [2] : vector<8x12x12xf32> to vector<8x12xf32>
    %17 = vector.shape_cast %16 : vector<8x12xf32> to vector<8x12x1xf32>
    %18 = vector.broadcast %17 : vector<8x12x1xf32> to vector<8x12x12xf32>
    %19 = arith.subf %15, %18 : vector<8x12x12xf32>
    %20 = math.exp %19 : vector<8x12x12xf32>
    %cst_11 = arith.constant dense<0.000000e+00> : vector<8x12xf32>
    %21 = vector.multi_reduction <add>, %20, %cst_11 [2] : vector<8x12x12xf32> to vector<8x12xf32>
    %22 = vector.shape_cast %21 : vector<8x12xf32> to vector<8x12x1xf32>
    %23 = tpu.reciprocal %22 {approx = true} : vector<8x12x1xf32> -> vector<8x12x1xf32>
    %24 = vector.broadcast %23 : vector<8x12x1xf32> to vector<8x12x12xf32>
    %25 = arith.mulf %20, %24 : vector<8x12x12xf32>
    %26 = arith.truncf %25 : vector<8x12x12xf32> to vector<8x12x12xbf16>
    "tpu.trace_start"() <{level = 10 : i32, message = "gqk,gkd->gqd"}> : () -> ()
    %cst_12 = arith.constant dense<0.000000e+00> : vector<8x12x16xf32>
    %27 = tpu.matmul %26, %7, %cst_12 {dimension_numbers = #tpu.dot_dimension_numbers<[2], [1], [1], [2], [0, 0, 0, 1, 1, 2], [0], [0]>} : vector<8x12x12xbf16>, vector<8x12x16xbf16>, vector<8x12x16xf32> -> vector<8x12x16xf32>
    "tpu.trace_stop"() : () -> ()
    %c0_13 = arith.constant 0 : index
    %c0_14 = arith.constant 0 : index
    %c0_15 = arith.constant 0 : index
    %28 = vector.load %arg4[%c0_13, %c0_14, %c0_15] : memref<8x12x16xf32, #tpu.memory_space<vmem>>, vector<8x12x16xf32>
    tpu.vector_store %arg4[%c0_13, %c0_14, %c0_15], %27 {strides = array<i32>} : memref<8x12x16xf32, #tpu.memory_space<vmem>>, vector<8x12x16xf32>,
    return
  }
  func.func @transform_0(%arg0: i32) -> (i32, i32, i32) {
    %c0_i32 = arith.constant 0 : i32
    %c0_i32_0 = arith.constant 0 : i32
    %c0_i32_1 = arith.constant 0 : i32
    return %arg0, %c0_i32, %c0_i32_0 : i32, i32, i32
  }
  func.func @transform_1(%arg0: i32) -> (i32, i32, i32) {
    %c0_i32 = arith.constant 0 : i32
    %c0_i32_0 = arith.constant 0 : i32
    %c0_i32_1 = arith.constant 0 : i32
    return %arg0, %c0_i32, %c0_i32_0 : i32, i32, i32
  }
  func.func @transform_2(%arg0: i32) -> (i32, i32, i32) {
    %c0_i32 = arith.constant 0 : i32
    %c0_i32_0 = arith.constant 0 : i32
    %c0_i32_1 = arith.constant 0 : i32
    return %arg0, %c0_i32, %c0_i32_0 : i32, i32, i32
  }
  func.func @transform_3(%arg0: i32) -> (i32, i32, i32) {
    %c0_i32 = arith.constant 0 : i32
    %c0_i32_0 = arith.constant 0 : i32
    %c0_i32_1 = arith.constant 0 : i32
    return %arg0, %c0_i32, %c0_i32_0 : i32, i32, i32
  }
}

module attributes {stable_mosaic.version = 11 : i64} {
  func.func @_ffn_kernel(%arg0: i32, %arg1: i32, %arg2: memref<8x128xf32, #tpu.memory_space<vmem>>, %arg3: memref<128x256xf32, #tpu.memory_space<vmem>>, %arg4: memref<1x256xf32, #tpu.memory_space<vmem>>, %arg5: memref<256x128xf32, #tpu.memory_space<vmem>>, %arg6: memref<1x128xf32, #tpu.memory_space<vmem>>, %arg7: memref<8x128xf32, #tpu.memory_space<vmem>>, %arg8: memref<8x128xf32, #tpu.memory_space<vmem>>) attributes {dimension_semantics = [#tpu.dimension_semantics<parallel>, #tpu.dimension_semantics<arbitrary>], iteration_bounds = array<i64: 3, 1>, scalar_prefetch = 0 : i64, scratch_operands = 1 : i64, tpu.core_type = #tpu.core_type<tc>, window_params = [{transform_indices = @transform_0, window_bounds = array<i64: 8, 128>}, {transform_indices = @transform_1, window_bounds = array<i64: 128, 256>}, {transform_indices = @transform_2, window_bounds = array<i64: 1, 256>}, {transform_indices = @transform_3, window_bounds = array<i64: 256, 128>}, {pipeline_mode = #tpu.pipeline_mode<synchronous>, transform_indices = @transform_4, window_bounds = array<i64: 1, 128>}, {transform_indices = @transform_5, window_bounds = array<i64: 8, 128>}]} {
    %c0_i32 = arith.constant 0 : i32
    %0 = arith.cmpi eq, %arg1, %c0_i32 : i32
    %1 = arith.extui %0 : i1 to i32
    %c0_i32_0 = arith.constant 0 : i32
    %2 = arith.cmpi ne, %1, %c0_i32_0 : i32
    scf.if %2 {
      %cst_16 = arith.constant 0.000000e+00 : f32
      %23 = vector.broadcast %cst_16 : f32 to vector<8x128xf32>
      %c0_17 = arith.constant 0 : index
      %c0_18 = arith.constant 0 : index
      %24 = vector.load %arg8[%c0_17, %c0_18] : memref<8x128xf32, #tpu.memory_space<vmem>>, vector<8x128xf32>
      tpu.vector_store %arg8[%c0_17, %c0_18], %23 {strides = array<i32>} : memref<8x128xf32, #tpu.memory_space<vmem>>, vector<8x128xf32>,
    } else {
    }
    %c0 = arith.constant 0 : index
    %c0_1 = arith.constant 0 : index
    %3 = vector.load %arg2[%c0, %c0_1] : memref<8x128xf32, #tpu.memory_space<vmem>>, vector<8x128xf32>
    %4 = arith.truncf %3 : vector<8x128xf32> to vector<8x128xbf16>
    %c0_2 = arith.constant 0 : index
    %c0_3 = arith.constant 0 : index
    %5 = vector.load %arg3[%c0_2, %c0_3] : memref<128x256xf32, #tpu.memory_space<vmem>>, vector<128x256xf32>
    %6 = arith.truncf %5 : vector<128x256xf32> to vector<128x256xbf16>
    %cst = arith.constant dense<0.000000e+00> : vector<8x256xf32>
    %7 = tpu.matmul %4, %6, %cst {dimension_numbers = #tpu.dot_dimension_numbers<[1], [0], [0], [1], [0, 0, 1, 1], [], []>} : vector<8x128xbf16>, vector<128x256xbf16>, vector<8x256xf32> -> vector<8x256xf32>
    %c0_4 = arith.constant 0 : index
    %c0_5 = arith.constant 0 : index
    %8 = vector.load %arg4[%c0_4, %c0_5] : memref<1x256xf32, #tpu.memory_space<vmem>>, vector<1x256xf32>
    %9 = vector.broadcast %8 : vector<1x256xf32> to vector<8x256xf32>
    %10 = arith.addf %7, %9 : vector<8x256xf32>
    %cst_6 = arith.constant 0.000000e+00 : f32
    %11 = vector.broadcast %cst_6 : f32 to vector<8x256xf32>
    %12 = arith.maximumf %10, %11 : vector<8x256xf32>
    %c0_7 = arith.constant 0 : index
    %c0_8 = arith.constant 0 : index
    %13 = vector.load %arg8[%c0_7, %c0_8] : memref<8x128xf32, #tpu.memory_space<vmem>>, vector<8x128xf32>
    %14 = arith.truncf %12 : vector<8x256xf32> to vector<8x256xbf16>
    %c0_9 = arith.constant 0 : index
    %c0_10 = arith.constant 0 : index
    %15 = vector.load %arg5[%c0_9, %c0_10] : memref<256x128xf32, #tpu.memory_space<vmem>>, vector<256x128xf32>
    %16 = arith.truncf %15 : vector<256x128xf32> to vector<256x128xbf16>
    %cst_11 = arith.constant dense<0.000000e+00> : vector<8x128xf32>
    %17 = tpu.matmul %14, %16, %cst_11 {dimension_numbers = #tpu.dot_dimension_numbers<[1], [0], [0], [1], [0, 0, 1, 1], [], []>} : vector<8x256xbf16>, vector<256x128xbf16>, vector<8x128xf32> -> vector<8x128xf32>
    %18 = arith.addf %13, %17 : vector<8x128xf32>
    %c0_12 = arith.constant 0 : index
    %c0_13 = arith.constant 0 : index
    %19 = vector.load %arg8[%c0_12, %c0_13] : memref<8x128xf32, #tpu.memory_space<vmem>>, vector<8x128xf32>
    tpu.vector_store %arg8[%c0_12, %c0_13], %18 {strides = array<i32>} : memref<8x128xf32, #tpu.memory_space<vmem>>, vector<8x128xf32>,
    %c0_i32_14 = arith.constant 0 : i32
    %20 = arith.cmpi eq, %arg1, %c0_i32_14 : i32
    %21 = arith.extui %20 : i1 to i32
    %c0_i32_15 = arith.constant 0 : i32
    %22 = arith.cmpi ne, %21, %c0_i32_15 : i32
    scf.if %22 {
      %c0_16 = arith.constant 0 : index
      %c0_17 = arith.constant 0 : index
      %23 = vector.load %arg8[%c0_16, %c0_17] : memref<8x128xf32, #tpu.memory_space<vmem>>, vector<8x128xf32>
      %c0_18 = arith.constant 0 : index
      %c0_19 = arith.constant 0 : index
      %24 = vector.load %arg6[%c0_18, %c0_19] : memref<1x128xf32, #tpu.memory_space<vmem>>, vector<1x128xf32>
      %25 = vector.broadcast %24 : vector<1x128xf32> to vector<8x128xf32>
      %26 = arith.addf %23, %25 : vector<8x128xf32>
      %c0_20 = arith.constant 0 : index
      %c0_21 = arith.constant 0 : index
      %27 = vector.load %arg7[%c0_20, %c0_21] : memref<8x128xf32, #tpu.memory_space<vmem>>, vector<8x128xf32>
      tpu.vector_store %arg7[%c0_20, %c0_21], %26 {strides = array<i32>} : memref<8x128xf32, #tpu.memory_space<vmem>>, vector<8x128xf32>,
    } else {
    }
    return
  }
  func.func @transform_0(%arg0: i32, %arg1: i32) -> (i32, i32) {
    %c0_i32 = arith.constant 0 : i32
    %c0_i32_0 = arith.constant 0 : i32
    return %arg0, %c0_i32 : i32, i32
  }
  func.func @transform_1(%arg0: i32, %arg1: i32) -> (i32, i32) {
    %c0_i32 = arith.constant 0 : i32
    %c0_i32_0 = arith.constant 0 : i32
    return %c0_i32, %arg1 : i32, i32
  }
  func.func @transform_2(%arg0: i32, %arg1: i32) -> (i32, i32) {
    %c0_i32 = arith.constant 0 : i32
    %c0_i32_0 = arith.constant 0 : i32
    return %c0_i32, %arg1 : i32, i32
  }
  func.func @transform_3(%arg0: i32, %arg1: i32) -> (i32, i32) {
    %c0_i32 = arith.constant 0 : i32
    %c0_i32_0 = arith.constant 0 : i32
    return %arg1, %c0_i32 : i32, i32
  }
  func.func @transform_4(%arg0: i32, %arg1: i32) -> (i32, i32) {
    %c0_i32 = arith.constant 0 : i32
    %c0_i32_0 = arith.constant 0 : i32
    %c0_i32_1 = arith.constant 0 : i32
    return %c0_i32, %c0_i32_0 : i32, i32
  }
  func.func @transform_5(%arg0: i32, %arg1: i32) -> (i32, i32) {
    %c0_i32 = arith.constant 0 : i32
    %c0_i32_0 = arith.constant 0 : i32
    return %arg0, %c0_i32 : i32, i32
  }
}

module attributes {stable_mosaic.version = 11 : i64} {
  func.func @_linear_kernel(%arg0: i32, %arg1: i32, %arg2: i32, %arg3: memref<8x128xf32, #tpu.memory_space<vmem>>, %arg4: memref<128x128xf32, #tpu.memory_space<vmem>>, %arg5: memref<1x128xf32, #tpu.memory_space<vmem>>, %arg6: memref<8x128xf32, #tpu.memory_space<vmem>>, %arg7: memref<8x128xf32, #tpu.memory_space<vmem>>) attributes {dimension_semantics = [#tpu.dimension_semantics<parallel>, #tpu.dimension_semantics<parallel>, #tpu.dimension_semantics<arbitrary>], iteration_bounds = array<i64: 3, 1, 1>, scalar_prefetch = 0 : i64, scratch_operands = 1 : i64, tpu.core_type = #tpu.core_type<tc>, window_params = [{transform_indices = @transform_0, window_bounds = array<i64: 8, 128>}, {transform_indices = @transform_1, window_bounds = array<i64: 128, 128>}, {transform_indices = @transform_2, window_bounds = array<i64: 1, 128>}, {transform_indices = @transform_3, window_bounds = array<i64: 8, 128>}]} {
    %c0_i32 = arith.constant 0 : i32
    %0 = arith.cmpi eq, %arg2, %c0_i32 : i32
    %1 = arith.extui %0 : i1 to i32
    %c0_i32_0 = arith.constant 0 : i32
    %2 = arith.cmpi ne, %1, %c0_i32_0 : i32
    scf.if %2 {
      %cst_10 = arith.constant 0.000000e+00 : f32
      %14 = vector.broadcast %cst_10 : f32 to vector<8x128xf32>
      %c0_11 = arith.constant 0 : index
      %c0_12 = arith.constant 0 : index
      %15 = vector.load %arg7[%c0_11, %c0_12] : memref<8x128xf32, #tpu.memory_space<vmem>>, vector<8x128xf32>
      tpu.vector_store %arg7[%c0_11, %c0_12], %14 {strides = array<i32>} : memref<8x128xf32, #tpu.memory_space<vmem>>, vector<8x128xf32>,
    } else {
    }
    %c0 = arith.constant 0 : index
    %c0_1 = arith.constant 0 : index
    %3 = vector.load %arg7[%c0, %c0_1] : memref<8x128xf32, #tpu.memory_space<vmem>>, vector<8x128xf32>
    %c0_2 = arith.constant 0 : index
    %c0_3 = arith.constant 0 : index
    %4 = vector.load %arg3[%c0_2, %c0_3] : memref<8x128xf32, #tpu.memory_space<vmem>>, vector<8x128xf32>
    %5 = arith.truncf %4 : vector<8x128xf32> to vector<8x128xbf16>
    %c0_4 = arith.constant 0 : index
    %c0_5 = arith.constant 0 : index
    %6 = vector.load %arg4[%c0_4, %c0_5] : memref<128x128xf32, #tpu.memory_space<vmem>>, vector<128x128xf32>
    %7 = arith.truncf %6 : vector<128x128xf32> to vector<128x128xbf16>
    %cst = arith.constant dense<0.000000e+00> : vector<8x128xf32>
    %8 = tpu.matmul %5, %7, %cst {dimension_numbers = #tpu.dot_dimension_numbers<[1], [0], [0], [1], [0, 0, 1, 1], [], []>} : vector<8x128xbf16>, vector<128x128xbf16>, vector<8x128xf32> -> vector<8x128xf32>
    %9 = arith.addf %3, %8 : vector<8x128xf32>
    %c0_6 = arith.constant 0 : index
    %c0_7 = arith.constant 0 : index
    %10 = vector.load %arg7[%c0_6, %c0_7] : memref<8x128xf32, #tpu.memory_space<vmem>>, vector<8x128xf32>
    tpu.vector_store %arg7[%c0_6, %c0_7], %9 {strides = array<i32>} : memref<8x128xf32, #tpu.memory_space<vmem>>, vector<8x128xf32>,
    %c0_i32_8 = arith.constant 0 : i32
    %11 = arith.cmpi eq, %arg2, %c0_i32_8 : i32
    %12 = arith.extui %11 : i1 to i32
    %c0_i32_9 = arith.constant 0 : i32
    %13 = arith.cmpi ne, %12, %c0_i32_9 : i32
    scf.if %13 {
      %c0_10 = arith.constant 0 : index
      %c0_11 = arith.constant 0 : index
      %14 = vector.load %arg7[%c0_10, %c0_11] : memref<8x128xf32, #tpu.memory_space<vmem>>, vector<8x128xf32>
      %c0_12 = arith.constant 0 : index
      %c0_13 = arith.constant 0 : index
      %15 = vector.load %arg5[%c0_12, %c0_13] : memref<1x128xf32, #tpu.memory_space<vmem>>, vector<1x128xf32>
      %16 = vector.broadcast %15 : vector<1x128xf32> to vector<8x128xf32>
      %17 = arith.addf %14, %16 : vector<8x128xf32>
      %c0_14 = arith.constant 0 : index
      %c0_15 = arith.constant 0 : index
      %18 = vector.load %arg6[%c0_14, %c0_15] : memref<8x128xf32, #tpu.memory_space<vmem>>, vector<8x128xf32>
      tpu.vector_store %arg6[%c0_14, %c0_15], %17 {strides = array<i32>} : memref<8x128xf32, #tpu.memory_space<vmem>>, vector<8x128xf32>,
    } else {
    }
    return
  }
  func.func @transform_0(%arg0: i32, %arg1: i32, %arg2: i32) -> (i32, i32) {
    %c0_i32 = arith.constant 0 : i32
    return %arg0, %arg2 : i32, i32
  }
  func.func @transform_1(%arg0: i32, %arg1: i32, %arg2: i32) -> (i32, i32) {
    %c0_i32 = arith.constant 0 : i32
    return %arg2, %arg1 : i32, i32
  }
  func.func @transform_2(%arg0: i32, %arg1: i32, %arg2: i32) -> (i32, i32) {
    %c0_i32 = arith.constant 0 : i32
    %c0_i32_0 = arith.constant 0 : i32
    return %c0_i32, %arg1 : i32, i32
  }
  func.func @transform_3(%arg0: i32, %arg1: i32, %arg2: i32) -> (i32, i32) {
    %c0_i32 = arith.constant 0 : i32
    return %arg0, %arg1 : i32, i32
  }
}

module attributes {stable_mosaic.version = 11 : i64} {
  func.func @_add_ln_kernel(%arg0: i32, %arg1: memref<8x128xf32, #tpu.memory_space<vmem>>, %arg2: memref<8x128xf32, #tpu.memory_space<vmem>>, %arg3: memref<1x128xf32, #tpu.memory_space<vmem>>, %arg4: memref<1x128xf32, #tpu.memory_space<vmem>>, %arg5: memref<8x128xf32, #tpu.memory_space<vmem>>) attributes {dimension_semantics = [#tpu.dimension_semantics<parallel>], iteration_bounds = array<i64: 3>, scalar_prefetch = 0 : i64, scratch_operands = 0 : i64, tpu.core_type = #tpu.core_type<tc>, window_params = [{transform_indices = @transform_0, window_bounds = array<i64: 8, 128>}, {transform_indices = @transform_1, window_bounds = array<i64: 8, 128>}, {pipeline_mode = #tpu.pipeline_mode<synchronous>, transform_indices = @transform_2, window_bounds = array<i64: 1, 128>}, {pipeline_mode = #tpu.pipeline_mode<synchronous>, transform_indices = @transform_3, window_bounds = array<i64: 1, 128>}, {transform_indices = @transform_4, window_bounds = array<i64: 8, 128>}]} {
    %c0 = arith.constant 0 : index
    %c0_0 = arith.constant 0 : index
    %0 = vector.load %arg1[%c0, %c0_0] : memref<8x128xf32, #tpu.memory_space<vmem>>, vector<8x128xf32>
    %c0_1 = arith.constant 0 : index
    %c0_2 = arith.constant 0 : index
    %1 = vector.load %arg2[%c0_1, %c0_2] : memref<8x128xf32, #tpu.memory_space<vmem>>, vector<8x128xf32>
    %2 = arith.addf %0, %1 : vector<8x128xf32>
    %cst = arith.constant dense<0.000000e+00> : vector<8xf32>
    %3 = vector.multi_reduction <add>, %2, %cst [1] : vector<8x128xf32> to vector<8xf32>
    %4 = vector.shape_cast %3 : vector<8xf32> to vector<8x1xf32>
    %cst_3 = arith.constant 1.280000e+02 : f32
    %5 = vector.broadcast %cst_3 : f32 to vector<8x1xf32>
    %6 = arith.divf %4, %5 : vector<8x1xf32>
    %7 = vector.broadcast %6 : vector<8x1xf32> to vector<8x128xf32>
    %8 = arith.subf %2, %7 : vector<8x128xf32>
    %9 = arith.mulf %8, %8 : vector<8x128xf32>
    %cst_4 = arith.constant dense<0.000000e+00> : vector<8xf32>
    %10 = vector.multi_reduction <add>, %9, %cst_4 [1] : vector<8x128xf32> to vector<8xf32>
    %11 = vector.shape_cast %10 : vector<8xf32> to vector<8x1xf32>
    %cst_5 = arith.constant 1.280000e+02 : f32
    %12 = vector.broadcast %cst_5 : f32 to vector<8x1xf32>
    %13 = arith.divf %11, %12 : vector<8x1xf32>
    %14 = vector.broadcast %6 : vector<8x1xf32> to vector<8x128xf32>
    %15 = arith.subf %2, %14 : vector<8x128xf32>
    %cst_6 = arith.constant 9.99999974E-6 : f32
    %16 = vector.broadcast %cst_6 : f32 to vector<8x1xf32>
    %17 = arith.addf %13, %16 : vector<8x1xf32>
    %18 = math.rsqrt %17 : vector<8x1xf32>
    %19 = vector.broadcast %18 : vector<8x1xf32> to vector<8x128xf32>
    %20 = arith.mulf %15, %19 : vector<8x128xf32>
    %c0_7 = arith.constant 0 : index
    %c0_8 = arith.constant 0 : index
    %21 = vector.load %arg3[%c0_7, %c0_8] : memref<1x128xf32, #tpu.memory_space<vmem>>, vector<1x128xf32>
    %22 = vector.broadcast %21 : vector<1x128xf32> to vector<8x128xf32>
    %23 = arith.mulf %20, %22 : vector<8x128xf32>
    %c0_9 = arith.constant 0 : index
    %c0_10 = arith.constant 0 : index
    %24 = vector.load %arg4[%c0_9, %c0_10] : memref<1x128xf32, #tpu.memory_space<vmem>>, vector<1x128xf32>
    %25 = vector.broadcast %24 : vector<1x128xf32> to vector<8x128xf32>
    %26 = arith.addf %23, %25 : vector<8x128xf32>
    %c0_11 = arith.constant 0 : index
    %c0_12 = arith.constant 0 : index
    %27 = vector.load %arg5[%c0_11, %c0_12] : memref<8x128xf32, #tpu.memory_space<vmem>>, vector<8x128xf32>
    tpu.vector_store %arg5[%c0_11, %c0_12], %26 {strides = array<i32>} : memref<8x128xf32, #tpu.memory_space<vmem>>, vector<8x128xf32>,
    return
  }
  func.func @transform_0(%arg0: i32) -> (i32, i32) {
    %c0_i32 = arith.constant 0 : i32
    %c0_i32_0 = arith.constant 0 : i32
    return %arg0, %c0_i32 : i32, i32
  }
  func.func @transform_1(%arg0: i32) -> (i32, i32) {
    %c0_i32 = arith.constant 0 : i32
    %c0_i32_0 = arith.constant 0 : i32
    return %arg0, %c0_i32 : i32, i32
  }
  func.func @transform_2(%arg0: i32) -> (i32, i32) {
    %c0_i32 = arith.constant 0 : i32
    %c0_i32_0 = arith.constant 0 : i32
    %c0_i32_1 = arith.constant 0 : i32
    return %c0_i32, %c0_i32_0 : i32, i32
  }
  func.func @transform_3(%arg0: i32) -> (i32, i32) {
    %c0_i32 = arith.constant 0 : i32
    %c0_i32_0 = arith.constant 0 : i32
    %c0_i32_1 = arith.constant 0 : i32
    return %c0_i32, %c0_i32_0 : i32, i32
  }
  func.func @transform_4(%arg0: i32) -> (i32, i32) {
    %c0_i32 = arith.constant 0 : i32
    %c0_i32_0 = arith.constant 0 : i32
    return %arg0, %c0_i32 : i32, i32
  }
}

module attributes {stable_mosaic.version = 11 : i64} {
  func.func @_linear_kernel(%arg0: i32, %arg1: i32, %arg2: i32, %arg3: memref<8x128xf32, #tpu.memory_space<vmem>>, %arg4: memref<128x128xf32, #tpu.memory_space<vmem>>, %arg5: memref<1x128xf32, #tpu.memory_space<vmem>>, %arg6: memref<8x128xf32, #tpu.memory_space<vmem>>, %arg7: memref<8x128xf32, #tpu.memory_space<vmem>>) attributes {dimension_semantics = [#tpu.dimension_semantics<parallel>, #tpu.dimension_semantics<parallel>, #tpu.dimension_semantics<arbitrary>], iteration_bounds = array<i64: 3, 3, 1>, scalar_prefetch = 0 : i64, scratch_operands = 1 : i64, tpu.core_type = #tpu.core_type<tc>, window_params = [{transform_indices = @transform_0, window_bounds = array<i64: 8, 128>}, {transform_indices = @transform_1, window_bounds = array<i64: 128, 128>}, {transform_indices = @transform_2, window_bounds = array<i64: 1, 128>}, {transform_indices = @transform_3, window_bounds = array<i64: 8, 128>}]} {
    %c0_i32 = arith.constant 0 : i32
    %0 = arith.cmpi eq, %arg2, %c0_i32 : i32
    %1 = arith.extui %0 : i1 to i32
    %c0_i32_0 = arith.constant 0 : i32
    %2 = arith.cmpi ne, %1, %c0_i32_0 : i32
    scf.if %2 {
      %cst_10 = arith.constant 0.000000e+00 : f32
      %14 = vector.broadcast %cst_10 : f32 to vector<8x128xf32>
      %c0_11 = arith.constant 0 : index
      %c0_12 = arith.constant 0 : index
      %15 = vector.load %arg7[%c0_11, %c0_12] : memref<8x128xf32, #tpu.memory_space<vmem>>, vector<8x128xf32>
      tpu.vector_store %arg7[%c0_11, %c0_12], %14 {strides = array<i32>} : memref<8x128xf32, #tpu.memory_space<vmem>>, vector<8x128xf32>,
    } else {
    }
    %c0 = arith.constant 0 : index
    %c0_1 = arith.constant 0 : index
    %3 = vector.load %arg7[%c0, %c0_1] : memref<8x128xf32, #tpu.memory_space<vmem>>, vector<8x128xf32>
    %c0_2 = arith.constant 0 : index
    %c0_3 = arith.constant 0 : index
    %4 = vector.load %arg3[%c0_2, %c0_3] : memref<8x128xf32, #tpu.memory_space<vmem>>, vector<8x128xf32>
    %5 = arith.truncf %4 : vector<8x128xf32> to vector<8x128xbf16>
    %c0_4 = arith.constant 0 : index
    %c0_5 = arith.constant 0 : index
    %6 = vector.load %arg4[%c0_4, %c0_5] : memref<128x128xf32, #tpu.memory_space<vmem>>, vector<128x128xf32>
    %7 = arith.truncf %6 : vector<128x128xf32> to vector<128x128xbf16>
    %cst = arith.constant dense<0.000000e+00> : vector<8x128xf32>
    %8 = tpu.matmul %5, %7, %cst {dimension_numbers = #tpu.dot_dimension_numbers<[1], [0], [0], [1], [0, 0, 1, 1], [], []>} : vector<8x128xbf16>, vector<128x128xbf16>, vector<8x128xf32> -> vector<8x128xf32>
    %9 = arith.addf %3, %8 : vector<8x128xf32>
    %c0_6 = arith.constant 0 : index
    %c0_7 = arith.constant 0 : index
    %10 = vector.load %arg7[%c0_6, %c0_7] : memref<8x128xf32, #tpu.memory_space<vmem>>, vector<8x128xf32>
    tpu.vector_store %arg7[%c0_6, %c0_7], %9 {strides = array<i32>} : memref<8x128xf32, #tpu.memory_space<vmem>>, vector<8x128xf32>,
    %c0_i32_8 = arith.constant 0 : i32
    %11 = arith.cmpi eq, %arg2, %c0_i32_8 : i32
    %12 = arith.extui %11 : i1 to i32
    %c0_i32_9 = arith.constant 0 : i32
    %13 = arith.cmpi ne, %12, %c0_i32_9 : i32
    scf.if %13 {
      %c0_10 = arith.constant 0 : index
      %c0_11 = arith.constant 0 : index
      %14 = vector.load %arg7[%c0_10, %c0_11] : memref<8x128xf32, #tpu.memory_space<vmem>>, vector<8x128xf32>
      %c0_12 = arith.constant 0 : index
      %c0_13 = arith.constant 0 : index
      %15 = vector.load %arg5[%c0_12, %c0_13] : memref<1x128xf32, #tpu.memory_space<vmem>>, vector<1x128xf32>
      %16 = vector.broadcast %15 : vector<1x128xf32> to vector<8x128xf32>
      %17 = arith.addf %14, %16 : vector<8x128xf32>
      %c0_14 = arith.constant 0 : index
      %c0_15 = arith.constant 0 : index
      %18 = vector.load %arg6[%c0_14, %c0_15] : memref<8x128xf32, #tpu.memory_space<vmem>>, vector<8x128xf32>
      tpu.vector_store %arg6[%c0_14, %c0_15], %17 {strides = array<i32>} : memref<8x128xf32, #tpu.memory_space<vmem>>, vector<8x128xf32>,
    } else {
    }
    return
  }
  func.func @transform_0(%arg0: i32, %arg1: i32, %arg2: i32) -> (i32, i32) {
    %c0_i32 = arith.constant 0 : i32
    return %arg0, %arg2 : i32, i32
  }
  func.func @transform_1(%arg0: i32, %arg1: i32, %arg2: i32) -> (i32, i32) {
    %c0_i32 = arith.constant 0 : i32
    return %arg2, %arg1 : i32, i32
  }
  func.func @transform_2(%arg0: i32, %arg1: i32, %arg2: i32) -> (i32, i32) {
    %c0_i32 = arith.constant 0 : i32
    %c0_i32_0 = arith.constant 0 : i32
    return %c0_i32, %arg1 : i32, i32
  }
  func.func @transform_3(%arg0: i32, %arg1: i32, %arg2: i32) -> (i32, i32) {
    %c0_i32 = arith.constant 0 : i32
    return %arg0, %arg1 : i32, i32
  }
}

module attributes {stable_mosaic.version = 11 : i64} {
  func.func @_linear_kernel(%arg0: i32, %arg1: i32, %arg2: i32, %arg3: memref<8x128xf32, #tpu.memory_space<vmem>>, %arg4: memref<128x128xf32, #tpu.memory_space<vmem>>, %arg5: memref<1x128xf32, #tpu.memory_space<vmem>>, %arg6: memref<8x128xf32, #tpu.memory_space<vmem>>, %arg7: memref<8x128xf32, #tpu.memory_space<vmem>>) attributes {dimension_semantics = [#tpu.dimension_semantics<parallel>, #tpu.dimension_semantics<parallel>, #tpu.dimension_semantics<arbitrary>], iteration_bounds = array<i64: 1, 1, 1>, scalar_prefetch = 0 : i64, scratch_operands = 1 : i64, tpu.core_type = #tpu.core_type<tc>, window_params = [{transform_indices = @transform_0, window_bounds = array<i64: 8, 128>}, {transform_indices = @transform_1, window_bounds = array<i64: 128, 128>}, {transform_indices = @transform_2, window_bounds = array<i64: 1, 128>}, {transform_indices = @transform_3, window_bounds = array<i64: 8, 128>}]} {
    %c0_i32 = arith.constant 0 : i32
    %0 = arith.cmpi eq, %arg2, %c0_i32 : i32
    %1 = arith.extui %0 : i1 to i32
    %c0_i32_0 = arith.constant 0 : i32
    %2 = arith.cmpi ne, %1, %c0_i32_0 : i32
    scf.if %2 {
      %cst_10 = arith.constant 0.000000e+00 : f32
      %14 = vector.broadcast %cst_10 : f32 to vector<8x128xf32>
      %c0_11 = arith.constant 0 : index
      %c0_12 = arith.constant 0 : index
      %15 = vector.load %arg7[%c0_11, %c0_12] : memref<8x128xf32, #tpu.memory_space<vmem>>, vector<8x128xf32>
      tpu.vector_store %arg7[%c0_11, %c0_12], %14 {strides = array<i32>} : memref<8x128xf32, #tpu.memory_space<vmem>>, vector<8x128xf32>,
    } else {
    }
    %c0 = arith.constant 0 : index
    %c0_1 = arith.constant 0 : index
    %3 = vector.load %arg7[%c0, %c0_1] : memref<8x128xf32, #tpu.memory_space<vmem>>, vector<8x128xf32>
    %c0_2 = arith.constant 0 : index
    %c0_3 = arith.constant 0 : index
    %4 = vector.load %arg3[%c0_2, %c0_3] : memref<8x128xf32, #tpu.memory_space<vmem>>, vector<8x128xf32>
    %5 = arith.truncf %4 : vector<8x128xf32> to vector<8x128xbf16>
    %c0_4 = arith.constant 0 : index
    %c0_5 = arith.constant 0 : index
    %6 = vector.load %arg4[%c0_4, %c0_5] : memref<128x128xf32, #tpu.memory_space<vmem>>, vector<128x128xf32>
    %7 = arith.truncf %6 : vector<128x128xf32> to vector<128x128xbf16>
    %cst = arith.constant dense<0.000000e+00> : vector<8x128xf32>
    %8 = tpu.matmul %5, %7, %cst {dimension_numbers = #tpu.dot_dimension_numbers<[1], [0], [0], [1], [0, 0, 1, 1], [], []>} : vector<8x128xbf16>, vector<128x128xbf16>, vector<8x128xf32> -> vector<8x128xf32>
    %9 = arith.addf %3, %8 : vector<8x128xf32>
    %c0_6 = arith.constant 0 : index
    %c0_7 = arith.constant 0 : index
    %10 = vector.load %arg7[%c0_6, %c0_7] : memref<8x128xf32, #tpu.memory_space<vmem>>, vector<8x128xf32>
    tpu.vector_store %arg7[%c0_6, %c0_7], %9 {strides = array<i32>} : memref<8x128xf32, #tpu.memory_space<vmem>>, vector<8x128xf32>,
    %c0_i32_8 = arith.constant 0 : i32
    %11 = arith.cmpi eq, %arg2, %c0_i32_8 : i32
    %12 = arith.extui %11 : i1 to i32
    %c0_i32_9 = arith.constant 0 : i32
    %13 = arith.cmpi ne, %12, %c0_i32_9 : i32
    scf.if %13 {
      %c0_10 = arith.constant 0 : index
      %c0_11 = arith.constant 0 : index
      %14 = vector.load %arg7[%c0_10, %c0_11] : memref<8x128xf32, #tpu.memory_space<vmem>>, vector<8x128xf32>
      %c0_12 = arith.constant 0 : index
      %c0_13 = arith.constant 0 : index
      %15 = vector.load %arg5[%c0_12, %c0_13] : memref<1x128xf32, #tpu.memory_space<vmem>>, vector<1x128xf32>
      %16 = vector.broadcast %15 : vector<1x128xf32> to vector<8x128xf32>
      %17 = arith.addf %14, %16 : vector<8x128xf32>
      %c0_14 = arith.constant 0 : index
      %c0_15 = arith.constant 0 : index
      %18 = vector.load %arg6[%c0_14, %c0_15] : memref<8x128xf32, #tpu.memory_space<vmem>>, vector<8x128xf32>
      tpu.vector_store %arg6[%c0_14, %c0_15], %17 {strides = array<i32>} : memref<8x128xf32, #tpu.memory_space<vmem>>, vector<8x128xf32>,
    } else {
    }
    return
  }
  func.func @transform_0(%arg0: i32, %arg1: i32, %arg2: i32) -> (i32, i32) {
    %c0_i32 = arith.constant 0 : i32
    return %arg0, %arg2 : i32, i32
  }
  func.func @transform_1(%arg0: i32, %arg1: i32, %arg2: i32) -> (i32, i32) {
    %c0_i32 = arith.constant 0 : i32
    return %arg2, %arg1 : i32, i32
  }
  func.func @transform_2(%arg0: i32, %arg1: i32, %arg2: i32) -> (i32, i32) {
    %c0_i32 = arith.constant 0 : i32
    %c0_i32_0 = arith.constant 0 : i32
    return %c0_i32, %arg1 : i32, i32
  }
  func.func @transform_3(%arg0: i32, %arg1: i32, %arg2: i32) -> (i32, i32) {
    %c0_i32 = arith.constant 0 : i32
    return %arg0, %arg1 : i32, i32
  }
}

</mosaic_0001>

<llo_original>
// kernel: transition_vit_forward.17
$region0: #{transition_vit_forward.17}
  #allocation0 [shape = 'u32[]', space=smem, size = 0x4, offset = 0x4, fixed_abs, tag = 'smem constant byte address 0x4 - core index']
  #allocation1 [shape = 'u32[144,128]{1,0:T(1,128)}', space=vmem, size = 0x12000, scoped, tag = 'internal scratch']
  #allocation2 [shape = 'f32[4,128]{1,0:T(4,128)}', space=vmem, size = 0x800, scoped, tag = 'scratch operand']
  %s0 = inlined_call_operand.vmem [shape: f32[4,6], index: 0, kind: input, shape index: {}]
  %s1 = inlined_call_operand.vmem [shape: f32[6,128], index: 1, kind: input, shape index: {}]
  %s2 = inlined_call_operand.vmem [shape: f32[1,128], index: 2, kind: input, shape index: {}]
  %s3 = inlined_call_operand.vmem [shape: f32[4,128], index: 3, kind: output, shape index: {}]
  %s4 = sld [smem:[#allocation0]]
  $region30: #{transition_vit_forward.17} parent=0
    _
  %s6 = ssub.s32 1, %s4
  %s7 = scalar_select 0, %s6, %s4
  // Predicated region
  $region2: #{transition_vit_forward.17} parent=0 // pred_check
    _
  $region3: #{transition_vit_forward.17} parent=0 // pred_check_branch
    %9 = sbr.rel (0) target = $region5
  $region4: #{transition_vit_forward.17} parent=0 // pred_region
    _
  $region5: #{transition_vit_forward.17} parent=0 // pred_fallthru
    _
  // Predicated region
  $region6: #{transition_vit_forward.17} parent=0 // pred_check
    _
  $region7: #{transition_vit_forward.17} parent=0 // pred_check_branch
    %11 = sbr.rel (0) target = $region9
  $region8: #{transition_vit_forward.17} parent=0 // pred_region
    _
  $region9: #{transition_vit_forward.17} parent=0 // pred_fallthru
    _
  // Predicated region
  $region10: #{transition_vit_forward.17} parent=0 // pred_check
    _
  $region11: #{transition_vit_forward.17} parent=0 // pred_check_branch
    %13 = sbr.rel (0) target = $region13
  $region12: #{transition_vit_forward.17} parent=0 // pred_region
    _
  $region13: #{transition_vit_forward.17} parent=0 // pred_fallthru
    _
  %p15 = scmp.eq.s32.totalorder 0, 0
  // Predicated region
  $region14: #{transition_vit_forward.17} parent=0 // pred_check
    %p16 = pneg %p15
  $region15: #{transition_vit_forward.17} parent=0 // pred_check_branch
    %18 = sbr.rel (%p16) target = $region17
  $region16: #{transition_vit_forward.17} parent=0 // pred_region
    %19 = vst [vmem:[#allocation2] sm:$0xf] 0.0
  $region17: #{transition_vit_forward.17} parent=0 // pred_fallthru
    _
  %v20 = vld [vmem:[#allocation2] sm:$0xf]
  %v21 = vld [vmem:[%s0] sm:$0xf]
  %v22 = vpack.c.bf16 %v21, %v21
  %v23 = vld [vmem:[%s1] sm:$0x3f]
  %v24 = vpack.c.bf16 %v23, %v23
  %vm25 = vcmask 48128
  %v27 = vsel %vm25, %v22, 0
  %vm29 = vcmask 1042432
  %v31 = vsel %vm29, %v24, 0
  %33 = vmatprep.subr.bf16.mxu0 0
  %34 = vmatpush1.bf16.msra.mxu0 0
  %35 = vmatprep.subr.bf16.mxu0 0
  %36 = vmatpush1.bf16.msra.mxu0 0
  %37 = vmatprep.subr.bf16.mxu0 0
  %38 = vmatpush1.bf16.msra.mxu0 0
  %39 = vmatprep.subr.bf16.mxu0 0
  %40 = vmatpush1.bf16.msra.mxu0 0
  %41 = vmatprep.subr.bf16.mxu0 0
  %42 = vmatpush1.bf16.msra.mxu0 0
  %43 = vmatprep.subr.bf16.mxu0 0
  %44 = vmatpush1.bf16.msra.mxu0 0
  %45 = vmatprep.subr.bf16.mxu0 0
  %46 = vmatpush1.bf16.msra.mxu0 0
  %47 = vmatprep.subr.bf16.mxu0 0
  %48 = vmatpush1.bf16.msra.mxu0 %v31
  %49 = vmatprep.subr.bf16.mxu0 0
  %50 = vmatpush2.bf16.msra.mxu0 0
  %51 = vmatprep.subr.bf16.mxu0 0
  %52 = vmatpush2.bf16.msra.mxu0 0
  %53 = vmatprep.subr.bf16.mxu0 0
  %54 = vmatpush2.bf16.msra.mxu0 0
  %55 = vmatprep.subr.bf16.mxu0 0
  %56 = vmatpush2.bf16.msra.mxu0 0
  %57 = vmatprep.subr.bf16.mxu0 0
  %58 = vmatpush2.bf16.msra.mxu0 0
  %59 = vmatprep.subr.bf16.mxu0 0
  %60 = vmatpush2.bf16.msra.mxu0 0
  %61 = vmatprep.subr.bf16.mxu0 0
  %62 = vmatpush2.bf16.msra.mxu0 0
  %63 = vmatprep.subr.bf16.mxu0 0
  %64 = vmatpush2.bf16.msra.mxu0 0
  %65 = vmatprep.mubr.bf16.mxu0 0
  %66 = vmatmul.mubr.bf16.gmra.mxu0 %v27
  %v67 = vpop.f32.mrf.mxu0
  %v68 = vadd.f32 0.0, %v67
  %v69 = vpop.f32.mrf.mxu0
  %v70 = vpop.f32.mrf.mxu0
  %v71 = vpop.f32.mrf.mxu0
  %72 = vdwg.mxu0
  %v73 = vadd.f32 %v20, %v68
  %74 = vst [vmem:[#allocation2] sm:$0xf] %v73
  // Predicated region
  $region18: #{transition_vit_forward.17} parent=0 // pred_check
    %p75 = pneg %p15
  $region19: #{transition_vit_forward.17} parent=0 // pred_check_branch
    %77 = sbr.rel (%p75) target = $region21
  $region20: #{transition_vit_forward.17} parent=0 // pred_region
    %v78 = vld [vmem:[#allocation2] sm:$0xf]
    %v79 = vld [vmem:[%s2] sm:$0x1]
    %v81 = vlaneseq
    %v82 = vshrl.u32 %v81, 7
    %v83 = vsub.s32 0, %v82
    %v84 = vrot.slane %v79, %v83
    %v86 = vadd.f32 %v78, %v84
    %v87 = vmax.f32 %v86, 0.0
    %88 = vst [vmem:[%s3] sm:$0xf] %v87
  $region21: #{transition_vit_forward.17} parent=0 // pred_fallthru
    _
  // Predicated region
  $region22: #{transition_vit_forward.17} parent=0 // pred_check
    _
  $region23: #{transition_vit_forward.17} parent=0 // pred_check_branch
    %90 = sbr.rel (0) target = $region25
  $region24: #{transition_vit_forward.17} parent=0 // pred_region
    _
  $region25: #{transition_vit_forward.17} parent=0 // pred_fallthru
    _
  // Predicated region
  $region26: #{transition_vit_forward.17} parent=0 // pred_check
    _
  $region27: #{transition_vit_forward.17} parent=0 // pred_check_branch
    %92 = sbr.rel (0) target = $region29
  $region28: #{transition_vit_forward.17} parent=0 // pred_region
    _
  $region29: #{transition_vit_forward.17} parent=0 // pred_fallthru
    _

// kernel: transition_vit_forward.19
$region0: #{transition_vit_forward.19}
  #allocation0 [shape = 'u32[]', space=smem, size = 0x4, offset = 0x4, fixed_abs, tag = 'smem constant byte address 0x4 - core index']
  #allocation1 [shape = 'u32[144,128]{1,0:T(1,128)}', space=vmem, size = 0x12000, scoped, tag = 'internal scratch']
  #allocation2 [shape = 'f32[2,128]{1,0:T(2,128)}', space=vmem, size = 0x400, scoped, tag = 'scratch operand']
  %s0 = inlined_call_operand.vmem [shape: f32[2,6], index: 0, kind: input, shape index: {}]
  %s1 = inlined_call_operand.vmem [shape: f32[6,128], index: 1, kind: input, shape index: {}]
  %s2 = inlined_call_operand.vmem [shape: f32[1,128], index: 2, kind: input, shape index: {}]
  %s3 = inlined_call_operand.vmem [shape: f32[2,128], index: 3, kind: output, shape index: {}]
  %s4 = sld [smem:[#allocation0]]
  $region30: #{transition_vit_forward.19} parent=0
    _
  %s6 = ssub.s32 1, %s4
  %s7 = scalar_select 0, %s6, %s4
  // Predicated region
  $region2: #{transition_vit_forward.19} parent=0 // pred_check
    _
  $region3: #{transition_vit_forward.19} parent=0 // pred_check_branch
    %9 = sbr.rel (0) target = $region5
  $region4: #{transition_vit_forward.19} parent=0 // pred_region
    _
  $region5: #{transition_vit_forward.19} parent=0 // pred_fallthru
    _
  // Predicated region
  $region6: #{transition_vit_forward.19} parent=0 // pred_check
    _
  $region7: #{transition_vit_forward.19} parent=0 // pred_check_branch
    %11 = sbr.rel (0) target = $region9
  $region8: #{transition_vit_forward.19} parent=0 // pred_region
    _
  $region9: #{transition_vit_forward.19} parent=0 // pred_fallthru
    _
  // Predicated region
  $region10: #{transition_vit_forward.19} parent=0 // pred_check
    _
  $region11: #{transition_vit_forward.19} parent=0 // pred_check_branch
    %13 = sbr.rel (0) target = $region13
  $region12: #{transition_vit_forward.19} parent=0 // pred_region
    _
  $region13: #{transition_vit_forward.19} parent=0 // pred_fallthru
    _
  %p15 = scmp.eq.s32.totalorder 0, 0
  // Predicated region
  $region14: #{transition_vit_forward.19} parent=0 // pred_check
    %p16 = pneg %p15
  $region15: #{transition_vit_forward.19} parent=0 // pred_check_branch
    %18 = sbr.rel (%p16) target = $region17
  $region16: #{transition_vit_forward.19} parent=0 // pred_region
    %19 = vst [vmem:[#allocation2] sm:$0x3] 0.0
  $region17: #{transition_vit_forward.19} parent=0 // pred_fallthru
    _
  %v20 = vld [vmem:[#allocation2] sm:$0x3]
  %v21 = vld [vmem:[%s0] sm:$0x3]
  %v22 = vpack.c.bf16 %v21, %v21
  %v23 = vld [vmem:[%s1] sm:$0x3f]
  %v24 = vpack.c.bf16 %v23, %v23
  %vm25 = vcmask 48128
  %v27 = vsel %vm25, %v22, 0
  %vm29 = vcmask 1042432
  %v31 = vsel %vm29, %v24, 0
  %33 = vmatprep.subr.bf16.mxu0 0
  %34 = vmatpush1.bf16.msra.mxu0 0
  %35 = vmatprep.subr.bf16.mxu0 0
  %36 = vmatpush1.bf16.msra.mxu0 0
  %37 = vmatprep.subr.bf16.mxu0 0
  %38 = vmatpush1.bf16.msra.mxu0 0
  %39 = vmatprep.subr.bf16.mxu0 0
  %40 = vmatpush1.bf16.msra.mxu0 0
  %41 = vmatprep.subr.bf16.mxu0 0
  %42 = vmatpush1.bf16.msra.mxu0 0
  %43 = vmatprep.subr.bf16.mxu0 0
  %44 = vmatpush1.bf16.msra.mxu0 0
  %45 = vmatprep.subr.bf16.mxu0 0
  %46 = vmatpush1.bf16.msra.mxu0 0
  %47 = vmatprep.subr.bf16.mxu0 0
  %48 = vmatpush1.bf16.msra.mxu0 %v31
  %49 = vmatprep.subr.bf16.mxu0 0
  %50 = vmatpush2.bf16.msra.mxu0 0
  %51 = vmatprep.subr.bf16.mxu0 0
  %52 = vmatpush2.bf16.msra.mxu0 0
  %53 = vmatprep.subr.bf16.mxu0 0
  %54 = vmatpush2.bf16.msra.mxu0 0
  %55 = vmatprep.subr.bf16.mxu0 0
  %56 = vmatpush2.bf16.msra.mxu0 0
  %57 = vmatprep.subr.bf16.mxu0 0
  %58 = vmatpush2.bf16.msra.mxu0 0
  %59 = vmatprep.subr.bf16.mxu0 0
  %60 = vmatpush2.bf16.msra.mxu0 0
  %61 = vmatprep.subr.bf16.mxu0 0
  %62 = vmatpush2.bf16.msra.mxu0 0
  %63 = vmatprep.subr.bf16.mxu0 0
  %64 = vmatpush2.bf16.msra.mxu0 0
  %65 = vmatprep.mubr.bf16.mxu0 0
  %66 = vmatmul.mubr.bf16.gmra.mxu0 %v27
  %v67 = vpop.f32.mrf.mxu0
  %v68 = vadd.f32 0.0, %v67
  %v69 = vpop.f32.mrf.mxu0
  %v70 = vpop.f32.mrf.mxu0
  %v71 = vpop.f32.mrf.mxu0
  %72 = vdwg.mxu0
  %v73 = vadd.f32 %v20, %v68
  %74 = vst [vmem:[#allocation2] sm:$0x3] %v73
  // Predicated region
  $region18: #{transition_vit_forward.19} parent=0 // pred_check
    %p75 = pneg %p15
  $region19: #{transition_vit_forward.19} parent=0 // pred_check_branch
    %77 = sbr.rel (%p75) target = $region21
  $region20: #{transition_vit_forward.19} parent=0 // pred_region
    %v78 = vld [vmem:[#allocation2] sm:$0x3]
    %v79 = vld [vmem:[%s2] sm:$0x1]
    %v81 = vlaneseq
    %v82 = vshrl.u32 %v81, 7
    %v83 = vsub.s32 0, %v82
    %v84 = vrot.slane %v79, %v83
    %v86 = vadd.f32 %v78, %v84
    %v87 = vmax.f32 %v86, 0.0
    %88 = vst [vmem:[%s3] sm:$0x3] %v87
  $region21: #{transition_vit_forward.19} parent=0 // pred_fallthru
    _
  // Predicated region
  $region22: #{transition_vit_forward.19} parent=0 // pred_check
    _
  $region23: #{transition_vit_forward.19} parent=0 // pred_check_branch
    %90 = sbr.rel (0) target = $region25
  $region24: #{transition_vit_forward.19} parent=0 // pred_region
    _
  $region25: #{transition_vit_forward.19} parent=0 // pred_fallthru
    _
  // Predicated region
  $region26: #{transition_vit_forward.19} parent=0 // pred_check
    _
  $region27: #{transition_vit_forward.19} parent=0 // pred_check_branch
    %92 = sbr.rel (0) target = $region29
  $region28: #{transition_vit_forward.19} parent=0 // pred_region
    _
  $region29: #{transition_vit_forward.19} parent=0 // pred_fallthru
    _

// kernel: transition_vit_forward.18
$region0: #{transition_vit_forward.18}
  #allocation0 [shape = 'u32[]', space=smem, size = 0x4, offset = 0x4, fixed_abs, tag = 'smem constant byte address 0x4 - core index']
  #allocation1 [shape = 'u32[144,128]{1,0:T(1,128)}', space=vmem, size = 0x12000, scoped, tag = 'internal scratch']
  #allocation2 [shape = 'f32[4,128]{1,0:T(4,128)}', space=vmem, size = 0x800, scoped, tag = 'scratch operand']
  %s0 = inlined_call_operand.vmem [shape: f32[4,128], index: 0, kind: input, shape index: {}]
  %s1 = inlined_call_operand.hbm [shape: f32[128,128], index: 1, kind: input, shape index: {}]
  %s2 = inlined_call_operand.vmem [shape: f32[1,128], index: 2, kind: input, shape index: {}]
  %s3 = inlined_call_operand.vmem [shape: f32[4,128], index: 3, kind: output, shape index: {}]
  %s4 = sld [smem:[#allocation0]]
  $region34: #{transition_vit_forward.18} parent=0
    _
  %s6 = ssub.s32 1, %s4
  %s7 = scalar_select 0, %s6, %s4
  $region1: #{transition_vit_forward.18} parent=0
    #allocation3 [shape = 'u8[65536]{0}', space=vmem, size = 0x10000, scoped, tag = 'input window, operand 1, single buffered']
    #allocation4 [shape = 's32[1]{0}', space=sflag, size = 0x4, scoped, tag = 'scoped memory for transition_vit_forward.18']
    %8 = vsyncpa [#allocation4], 0
    // Predicated region
    $region2: #{transition_vit_forward.18} parent=1 // pred_check
      _
    $region3: #{transition_vit_forward.18} parent=1 // pred_check_branch
      %10 = sbr.rel (0) target = $region5
    $region4: #{transition_vit_forward.18} parent=1 // pred_region
      _
    $region5: #{transition_vit_forward.18} parent=1 // pred_fallthru
      _
    // Predicated region
    $region6: #{transition_vit_forward.18} parent=1 // pred_check
      _
    $region7: #{transition_vit_forward.18} parent=1 // pred_check_branch
      %12 = sbr.rel (0) target = $region9
    $region8: #{transition_vit_forward.18} parent=1 // pred_region
      %s14 = ssub.s32 2048, 2048
      %15 = vsyncadd [#allocation4], %s14
      %s16 = sshll.u32 [#allocation3], 4
      %s17 = int_to_ptr.vmem [resolvable:$true] %s16
      %22 = dma.hbm_to_vmem [thread:$0]  %s1, 2048, %s17, [#allocation4], 128, 128, 8
    $region9: #{transition_vit_forward.18} parent=1 // pred_fallthru
      _
    // Predicated region
    $region10: #{transition_vit_forward.18} parent=1 // pred_check
      _
    $region11: #{transition_vit_forward.18} parent=1 // pred_check_branch
      %24 = sbr.rel (0) target = $region13
    $region12: #{transition_vit_forward.18} parent=1 // pred_region
      _
    $region13: #{transition_vit_forward.18} parent=1 // pred_fallthru
      _
    // Predicated region
    $region14: #{transition_vit_forward.18} parent=1 // pred_check
      _
    $region15: #{transition_vit_forward.18} parent=1 // pred_check_branch
      %26 = sbr.rel (0) target = $region17
    $region16: #{transition_vit_forward.18} parent=1 // pred_region
      %27 = dma.done [#allocation4], 2048
    $region17: #{transition_vit_forward.18} parent=1 // pred_fallthru
      _
    %p29 = scmp.eq.s32.totalorder 0, 0
    // Predicated region
    $region18: #{transition_vit_forward.18} parent=1 // pred_check
      %p30 = pneg %p29
    $region19: #{transition_vit_forward.18} parent=1 // pred_check_branch
      %32 = sbr.rel (%p30) target = $region21
    $region20: #{transition_vit_forward.18} parent=1 // pred_region
      %33 = vst [vmem:[#allocation2] sm:$0xf] 0.0
    $region21: #{transition_vit_forward.18} parent=1 // pred_fallthru
      _
    %v34 = vld [vmem:[#allocation2] sm:$0xf]
    %v35 = vld [vmem:[%s0] sm:$0xf]
    %v36 = vpack.c.bf16 %v35, %v35
    %v37 = vld [vmem:[#allocation3] sm:$0xff]
    %v38 = vld [vmem:[#allocation3 + $0x8] sm:$0xff]
    %v39 = vld [vmem:[#allocation3 + $0x10] sm:$0xff]
    %v40 = vld [vmem:[#allocation3 + $0x18] sm:$0xff]
    %v41 = vld [vmem:[#allocation3 + $0x20] sm:$0xff]
    %v42 = vld [vmem:[#allocation3 + $0x28] sm:$0xff]
    %v43 = vld [vmem:[#allocation3 + $0x30] sm:$0xff]
    %v44 = vld [vmem:[#allocation3 + $0x38] sm:$0xff]
    %v45 = vld [vmem:[#allocation3 + $0x40] sm:$0xff]
    %v46 = vld [vmem:[#allocation3 + $0x48] sm:$0xff]
    %v47 = vld [vmem:[#allocation3 + $0x50] sm:$0xff]
    %v48 = vld [vmem:[#allocation3 + $0x58] sm:$0xff]
    %v49 = vld [vmem:[#allocation3 + $0x60] sm:$0xff]
    %v50 = vld [vmem:[#allocation3 + $0x68] sm:$0xff]
    %v51 = vld [vmem:[#allocation3 + $0x70] sm:$0xff]
    %v52 = vld [vmem:[#allocation3 + $0x78] sm:$0xff]
    %v53 = vpack.c.bf16 %v38, %v37
    %v54 = vpack.c.bf16 %v40, %v39
    %v55 = vpack.c.bf16 %v42, %v41
    %v56 = vpack.c.bf16 %v44, %v43
    %v57 = vpack.c.bf16 %v46, %v45
    %v58 = vpack.c.bf16 %v48, %v47
    %v59 = vpack.c.bf16 %v50, %v49
    %v60 = vpack.c.bf16 %v52, %v51
    %61 = vmatprep.subr.bf16.mxu0 0
    %62 = vmatpush1.bf16.msra.mxu0 %v60
    %63 = vmatprep.subr.bf16.mxu0 0
    %64 = vmatpush1.bf16.msra.mxu0 %v59
    %65 = vmatprep.subr.bf16.mxu0 0
    %66 = vmatpush1.bf16.msra.mxu0 %v58
    %67 = vmatprep.subr.bf16.mxu0 0
    %68 = vmatpush1.bf16.msra.mxu0 %v57
    %69 = vmatprep.subr.bf16.mxu0 0
    %70 = vmatpush1.bf16.msra.mxu0 %v56
    %71 = vmatprep.subr.bf16.mxu0 0
    %72 = vmatpush1.bf16.msra.mxu0 %v55
    %73 = vmatprep.subr.bf16.mxu0 0
    %74 = vmatpush1.bf16.msra.mxu0 %v54
    %75 = vmatprep.subr.bf16.mxu0 0
    %76 = vmatpush1.bf16.msra.mxu0 %v53
    %77 = vmatprep.subr.bf16.mxu0 0
    %78 = vmatpush2.bf16.msra.mxu0 0
    %79 = vmatprep.subr.bf16.mxu0 0
    %80 = vmatpush2.bf16.msra.mxu0 0
    %81 = vmatprep.subr.bf16.mxu0 0
    %82 = vmatpush2.bf16.msra.mxu0 0
    %83 = vmatprep.subr.bf16.mxu0 0
    %84 = vmatpush2.bf16.msra.mxu0 0
    %85 = vmatprep.subr.bf16.mxu0 0
    %86 = vmatpush2.bf16.msra.mxu0 0
    %87 = vmatprep.subr.bf16.mxu0 0
    %88 = vmatpush2.bf16.msra.mxu0 0
    %89 = vmatprep.subr.bf16.mxu0 0
    %90 = vmatpush2.bf16.msra.mxu0 0
    %91 = vmatprep.subr.bf16.mxu0 0
    %92 = vmatpush2.bf16.msra.mxu0 0
    %93 = vmatprep.mubr.bf16.mxu0 0
    %94 = vmatmul.mubr.bf16.gmra.mxu0 %v36
    %v95 = vpop.f32.mrf.mxu0
    %v96 = vadd.f32 0.0, %v95
    %v97 = vpop.f32.mrf.mxu0
    %v98 = vpop.f32.mrf.mxu0
    %v99 = vpop.f32.mrf.mxu0
    %100 = vdwg.mxu0
    %v101 = vadd.f32 %v34, %v96
    %102 = vst [vmem:[#allocation2] sm:$0xf] %v101
    // Predicated region
    $region22: #{transition_vit_forward.18} parent=1 // pred_check
      %p103 = pneg %p29
    $region23: #{transition_vit_forward.18} parent=1 // pred_check_branch
      %105 = sbr.rel (%p103) target = $region25
    $region24: #{transition_vit_forward.18} parent=1 // pred_region
      %v106 = vld [vmem:[#allocation2] sm:$0xf]
      %v107 = vld [vmem:[%s2] sm:$0x1]
      %v109 = vlaneseq
      %v110 = vshrl.u32 %v109, 7
      %v111 = vsub.s32 0, %v110
      %v112 = vrot.slane %v107, %v111
      %v114 = vadd.f32 %v106, %v112
      %115 = vst [vmem:[%s3] sm:$0xf] %v114
    $region25: #{transition_vit_forward.18} parent=1 // pred_fallthru
      _
    // Predicated region
    $region26: #{transition_vit_forward.18} parent=1 // pred_check
      _
    $region27: #{transition_vit_forward.18} parent=1 // pred_check_branch
      %117 = sbr.rel (0) target = $region29
    $region28: #{transition_vit_forward.18} parent=1 // pred_region
      _
    $region29: #{transition_vit_forward.18} parent=1 // pred_fallthru
      _
    // Predicated region
    $region30: #{transition_vit_forward.18} parent=1 // pred_check
      _
    $region31: #{transition_vit_forward.18} parent=1 // pred_check_branch
      %119 = sbr.rel (0) target = $region33
    $region32: #{transition_vit_forward.18} parent=1 // pred_region
      _
    $region33: #{transition_vit_forward.18} parent=1 // pred_fallthru
      _
    %120 = vsyncpa [#allocation4], 1

// kernel: transition_vit_forward.20
$region0: #{transition_vit_forward.20}
  #allocation0 [shape = 'u32[]', space=smem, size = 0x4, offset = 0x4, fixed_abs, tag = 'smem constant byte address 0x4 - core index']
  #allocation1 [shape = 'u32[144,128]{1,0:T(1,128)}', space=vmem, size = 0x12000, scoped, tag = 'internal scratch']
  #allocation2 [shape = 'f32[2,128]{1,0:T(2,128)}', space=vmem, size = 0x400, scoped, tag = 'scratch operand']
  %s0 = inlined_call_operand.vmem [shape: f32[2,128], index: 0, kind: input, shape index: {}]
  %s1 = inlined_call_operand.vmem [shape: f32[128,128], index: 1, kind: input, shape index: {}]
  %s2 = inlined_call_operand.vmem [shape: f32[1,128], index: 2, kind: input, shape index: {}]
  %s3 = inlined_call_operand.vmem [shape: f32[2,128], index: 3, kind: output, shape index: {}]
  %s4 = sld [smem:[#allocation0]]
  $region30: #{transition_vit_forward.20} parent=0
    _
  %s6 = ssub.s32 1, %s4
  %s7 = scalar_select 0, %s6, %s4
  // Predicated region
  $region2: #{transition_vit_forward.20} parent=0 // pred_check
    _
  $region3: #{transition_vit_forward.20} parent=0 // pred_check_branch
    %9 = sbr.rel (0) target = $region5
  $region4: #{transition_vit_forward.20} parent=0 // pred_region
    _
  $region5: #{transition_vit_forward.20} parent=0 // pred_fallthru
    _
  // Predicated region
  $region6: #{transition_vit_forward.20} parent=0 // pred_check
    _
  $region7: #{transition_vit_forward.20} parent=0 // pred_check_branch
    %11 = sbr.rel (0) target = $region9
  $region8: #{transition_vit_forward.20} parent=0 // pred_region
    _
  $region9: #{transition_vit_forward.20} parent=0 // pred_fallthru
    _
  // Predicated region
  $region10: #{transition_vit_forward.20} parent=0 // pred_check
    _
  $region11: #{transition_vit_forward.20} parent=0 // pred_check_branch
    %13 = sbr.rel (0) target = $region13
  $region12: #{transition_vit_forward.20} parent=0 // pred_region
    _
  $region13: #{transition_vit_forward.20} parent=0 // pred_fallthru
    _
  %p15 = scmp.eq.s32.totalorder 0, 0
  // Predicated region
  $region14: #{transition_vit_forward.20} parent=0 // pred_check
    %p16 = pneg %p15
  $region15: #{transition_vit_forward.20} parent=0 // pred_check_branch
    %18 = sbr.rel (%p16) target = $region17
  $region16: #{transition_vit_forward.20} parent=0 // pred_region
    %19 = vst [vmem:[#allocation2] sm:$0x3] 0.0
  $region17: #{transition_vit_forward.20} parent=0 // pred_fallthru
    _
  %v20 = vld [vmem:[#allocation2] sm:$0x3]
  %v21 = vld [vmem:[%s0] sm:$0x3]
  %v22 = vpack.c.bf16 %v21, %v21
  %v23 = vld [vmem:[%s1] sm:$0xff]
  %v24 = vld [vmem:[%s1 + $0x8] sm:$0xff]
  %v25 = vld [vmem:[%s1 + $0x10] sm:$0xff]
  %v26 = vld [vmem:[%s1 + $0x18] sm:$0xff]
  %v27 = vld [vmem:[%s1 + $0x20] sm:$0xff]
  %v28 = vld [vmem:[%s1 + $0x28] sm:$0xff]
  %v29 = vld [vmem:[%s1 + $0x30] sm:$0xff]
  %v30 = vld [vmem:[%s1 + $0x38] sm:$0xff]
  %v31 = vld [vmem:[%s1 + $0x40] sm:$0xff]
  %v32 = vld [vmem:[%s1 + $0x48] sm:$0xff]
  %v33 = vld [vmem:[%s1 + $0x50] sm:$0xff]
  %v34 = vld [vmem:[%s1 + $0x58] sm:$0xff]
  %v35 = vld [vmem:[%s1 + $0x60] sm:$0xff]
  %v36 = vld [vmem:[%s1 + $0x68] sm:$0xff]
  %v37 = vld [vmem:[%s1 + $0x70] sm:$0xff]
  %v38 = vld [vmem:[%s1 + $0x78] sm:$0xff]
  %v39 = vpack.c.bf16 %v24, %v23
  %v40 = vpack.c.bf16 %v26, %v25
  %v41 = vpack.c.bf16 %v28, %v27
  %v42 = vpack.c.bf16 %v30, %v29
  %v43 = vpack.c.bf16 %v32, %v31
  %v44 = vpack.c.bf16 %v34, %v33
  %v45 = vpack.c.bf16 %v36, %v35
  %v46 = vpack.c.bf16 %v38, %v37
  %47 = vmatprep.subr.bf16.mxu0 0
  %48 = vmatpush1.bf16.msra.mxu0 %v46
  %49 = vmatprep.subr.bf16.mxu0 0
  %50 = vmatpush1.bf16.msra.mxu0 %v45
  %51 = vmatprep.subr.bf16.mxu0 0
  %52 = vmatpush1.bf16.msra.mxu0 %v44
  %53 = vmatprep.subr.bf16.mxu0 0
  %54 = vmatpush1.bf16.msra.mxu0 %v43
  %55 = vmatprep.subr.bf16.mxu0 0
  %56 = vmatpush1.bf16.msra.mxu0 %v42
  %57 = vmatprep.subr.bf16.mxu0 0
  %58 = vmatpush1.bf16.msra.mxu0 %v41
  %59 = vmatprep.subr.bf16.mxu0 0
  %60 = vmatpush1.bf16.msra.mxu0 %v40
  %61 = vmatprep.subr.bf16.mxu0 0
  %62 = vmatpush1.bf16.msra.mxu0 %v39
  %63 = vmatprep.subr.bf16.mxu0 0
  %64 = vmatpush2.bf16.msra.mxu0 0
  %65 = vmatprep.subr.bf16.mxu0 0
  %66 = vmatpush2.bf16.msra.mxu0 0
  %67 = vmatprep.subr.bf16.mxu0 0
  %68 = vmatpush2.bf16.msra.mxu0 0
  %69 = vmatprep.subr.bf16.mxu0 0
  %70 = vmatpush2.bf16.msra.mxu0 0
  %71 = vmatprep.subr.bf16.mxu0 0
  %72 = vmatpush2.bf16.msra.mxu0 0
  %73 = vmatprep.subr.bf16.mxu0 0
  %74 = vmatpush2.bf16.msra.mxu0 0
  %75 = vmatprep.subr.bf16.mxu0 0
  %76 = vmatpush2.bf16.msra.mxu0 0
  %77 = vmatprep.subr.bf16.mxu0 0
  %78 = vmatpush2.bf16.msra.mxu0 0
  %79 = vmatprep.mubr.bf16.mxu0 0
  %80 = vmatmul.mubr.bf16.gmra.mxu0 %v22
  %v81 = vpop.f32.mrf.mxu0
  %v82 = vadd.f32 0.0, %v81
  %v83 = vpop.f32.mrf.mxu0
  %v84 = vpop.f32.mrf.mxu0
  %v85 = vpop.f32.mrf.mxu0
  %86 = vdwg.mxu0
  %v87 = vadd.f32 %v20, %v82
  %88 = vst [vmem:[#allocation2] sm:$0x3] %v87
  // Predicated region
  $region18: #{transition_vit_forward.20} parent=0 // pred_check
    %p89 = pneg %p15
  $region19: #{transition_vit_forward.20} parent=0 // pred_check_branch
    %91 = sbr.rel (%p89) target = $region21
  $region20: #{transition_vit_forward.20} parent=0 // pred_region
    %v92 = vld [vmem:[#allocation2] sm:$0x3]
    %v93 = vld [vmem:[%s2] sm:$0x1]
    %v95 = vlaneseq
    %v96 = vshrl.u32 %v95, 7
    %v97 = vsub.s32 0, %v96
    %v98 = vrot.slane %v93, %v97
    %v100 = vadd.f32 %v92, %v98
    %101 = vst [vmem:[%s3] sm:$0x3] %v100
  $region21: #{transition_vit_forward.20} parent=0 // pred_fallthru
    _
  // Predicated region
  $region22: #{transition_vit_forward.20} parent=0 // pred_check
    _
  $region23: #{transition_vit_forward.20} parent=0 // pred_check_branch
    %103 = sbr.rel (0) target = $region25
  $region24: #{transition_vit_forward.20} parent=0 // pred_region
    _
  $region25: #{transition_vit_forward.20} parent=0 // pred_fallthru
    _
  // Predicated region
  $region26: #{transition_vit_forward.20} parent=0 // pred_check
    _
  $region27: #{transition_vit_forward.20} parent=0 // pred_check_branch
    %105 = sbr.rel (0) target = $region29
  $region28: #{transition_vit_forward.20} parent=0 // pred_region
    _
  $region29: #{transition_vit_forward.20} parent=0 // pred_fallthru
    _

// kernel: transition_vit_forward.21
$region0: #{transition_vit_forward.21}
  #allocation0 [shape = 'u32[]', space=smem, size = 0x4, offset = 0x4, fixed_abs, tag = 'smem constant byte address 0x4 - core index']
  #allocation1 [shape = 'u32[144,128]{1,0:T(1,128)}', space=vmem, size = 0x12000, scoped, tag = 'internal scratch']
  #allocation2 [shape = 'f32[8,128]{1,0:T(8,128)}', space=vmem, size = 0x1000, scoped, tag = 'scratch operand']
  %s0 = inlined_call_operand.vmem [shape: f32[24,128], index: 0, kind: input, shape index: {}]
  %s1 = inlined_call_operand.hbm [shape: f32[128,384], index: 1, kind: input, shape index: {}]
  %s2 = inlined_call_operand.vmem [shape: f32[1,384], index: 2, kind: input, shape index: {}]
  %s3 = inlined_call_operand.vmem [shape: f32[24,384], index: 3, kind: output, shape index: {}]
  %s4 = sld [smem:[#allocation0]]
  $region57: #{transition_vit_forward.21} parent=0
    _
  %s6 = ssub.s32 1, %s4
  %s7 = scalar_select 0, %s6, %s4
  $region1: #{transition_vit_forward.21} parent=0
    #allocation3 [shape = 'u8[131072]{0}', space=vmem, size = 0x20000, scoped, tag = 'input window, operand 1']
    #allocation4 [shape = 's32[2]{0}', space=sflag, size = 0x8, scoped, tag = 'scoped memory for transition_vit_forward.21']
    %8 = vsyncpa [#allocation4], 0
    %s9 = scalar_lea.sflag [#allocation4], 1
    %10 = vsyncpa %s9, 0
    loop: start=0, step=1, limit=11
    $region2: #{transition_vit_forward.21} parent=1 // loop_pre_header
      _
    $region3: #{transition_vit_forward.21} parent=1 // loop_header
      %s12 = sphi 0, %s16
      %p13 = scmp.ge.s32.totalorder %s12, 11
      %s19 = sphi 0, %s38
      %s20 = sphi 0, %s34
      %s21 = sphi 0, %s30
      %s22 = sphi 0, %s19
      %s23 = sphi 0, %s20
      %s24 = sphi 0, %s21
      %s25 = sphi 0, %s22
      %s26 = sphi 0, %s23
      %s27 = sphi 0, %s24
      %s43 = sphi 0, %s45
      %s46 = sphi 0, %s43
      %s47 = sphi 0, %s46
      %s63 = sphi 0, %s47
      %s71 = sphi 0, %s73
      %s74 = sphi 0, %s71
      %s75 = sphi 0, %s74
      %s91 = sphi 0, %s75
      %s97 = sphi 0, %s99
      %s100 = sphi 0, %s97
      %s101 = sphi 0, %s100
      %s117 = sphi 0, %s101
      %s125 = sphi 0, %s127
      %s128 = sphi 0, %s125
      %s129 = sphi 0, %s128
      %s145 = sphi 0, %s129
    $region4: #{transition_vit_forward.21} parent=1 // loop_header_branch
      %15 = sbr.rel (%p13) target = $region8
    $region5: #{transition_vit_forward.21} parent=1 // loop_body
      %s17 = ssub.s32 %s12, 1
      %s18 = ssub.s32 %s12, 2
      %s28 = sadd.s32 1, %s21
      %p29 = scmp.ge.s32.totalorder %s28, 1
      %s30 = scalar_select %p29, 0, %s28
      %s31 = sadd.s32 1, %s20
      %s32 = scalar_select %p29, %s31, %s20
      %p33 = scmp.ge.s32.totalorder %s32, 3
      %s34 = scalar_select %p33, 0, %s32
      %s35 = sadd.s32 1, %s19
      %s36 = scalar_select %p33, %s35, %s19
      %p37 = scmp.ge.s32.totalorder %s36, 3
      %s38 = scalar_select %p37, 0, %s36
      %s39 = ssub.s32 %s19, %s38
      %s40 = ssub.s32 %s21, %s30
      %s41 = sor.u32 %s39, %s40
      %p42 = scmp.eq.s32.totalorder %s41, 0
      %s44 = sadd.s32 %s43, 1
      %s45 = scalar_select %p42, %s43, %s44
      %p48 = pneg %p42
      %p49 = scmp.eq.s32.totalorder %s12, 8
      %p50 = por %p48, %p49
      %p51 = scmp.ne.s32.totalorder %s43, %s46
      %p52 = scmp.eq.s32.totalorder %s12, 0
      %p53 = por %p51, %p52
      %p54 = scmp.ne.s32.totalorder %s43, %s46
      %p55 = scmp.eq.s32.totalorder %s17, 8
      %p56 = por %p54, %p55
      %p57 = scmp.ne.s32.totalorder %s46, %s47
      %p58 = scmp.eq.s32.totalorder %s17, 0
      %p59 = por %p57, %p58
      %p60 = scmp.ne.s32.totalorder %s46, %s47
      %p61 = scmp.eq.s32.totalorder %s18, 8
      %p62 = por %p60, %p61
      %p64 = scmp.ne.s32.totalorder %s47, %s63
      %p65 = scmp.eq.s32.totalorder %s18, 0
      %p66 = por %p64, %p65
      %s67 = ssub.s32 %s21, %s30
      %s68 = ssub.s32 %s20, %s34
      %s69 = sor.u32 %s67, %s68
      %p70 = scmp.eq.s32.totalorder %s69, 0
      %s72 = sadd.s32 %s71, 1
      %s73 = scalar_select %p70, %s71, %s72
      %p76 = pneg %p70
      %p77 = scmp.eq.s32.totalorder %s12, 8
      %p78 = por %p76, %p77
      %p79 = scmp.ne.s32.totalorder %s71, %s74
      %p80 = scmp.eq.s32.totalorder %s12, 0
      %p81 = por %p79, %p80
      %p82 = scmp.ne.s32.totalorder %s71, %s74
      %p83 = scmp.eq.s32.totalorder %s17, 8
      %p84 = por %p82, %p83
      %p85 = scmp.ne.s32.totalorder %s74, %s75
      %p86 = scmp.eq.s32.totalorder %s17, 0
      %p87 = por %p85, %p86
      %p88 = scmp.ne.s32.totalorder %s74, %s75
      %p89 = scmp.eq.s32.totalorder %s18, 8
      %p90 = por %p88, %p89
      %p92 = scmp.ne.s32.totalorder %s75, %s91
      %p93 = scmp.eq.s32.totalorder %s18, 0
      %p94 = por %p92, %p93
      %s95 = ssub.s32 %s20, %s34
      %p96 = scmp.eq.s32.totalorder %s95, 0
      %s98 = sadd.s32 %s97, 1
      %s99 = scalar_select %p96, %s97, %s98
      %p102 = pneg %p96
      %p103 = scmp.eq.s32.totalorder %s12, 8
      %p104 = por %p102, %p103
      %p105 = scmp.ne.s32.totalorder %s97, %s100
      %p106 = scmp.eq.s32.totalorder %s12, 0
      %p107 = por %p105, %p106
      %p108 = scmp.ne.s32.totalorder %s97, %s100
      %p109 = scmp.eq.s32.totalorder %s17, 8
      %p110 = por %p108, %p109
      %p111 = scmp.ne.s32.totalorder %s100, %s101
      %p112 = scmp.eq.s32.totalorder %s17, 0
      %p113 = por %p111, %p112
      %p114 = scmp.ne.s32.totalorder %s100, %s101
      %p115 = scmp.eq.s32.totalorder %s18, 8
      %p116 = por %p114, %p115
      %p118 = scmp.ne.s32.totalorder %s101, %s117
      %p119 = scmp.eq.s32.totalorder %s18, 0
      %p120 = por %p118, %p119
      %s121 = ssub.s32 %s19, %s38
      %s122 = ssub.s32 %s20, %s34
      %s123 = sor.u32 %s121, %s122
      %p124 = scmp.eq.s32.totalorder %s123, 0
      %s126 = sadd.s32 %s125, 1
      %s127 = scalar_select %p124, %s125, %s126
      %p130 = pneg %p124
      %p131 = scmp.eq.s32.totalorder %s12, 8
      %p132 = por %p130, %p131
      %p133 = scmp.ne.s32.totalorder %s125, %s128
      %p134 = scmp.eq.s32.totalorder %s12, 0
      %p135 = por %p133, %p134
      %p136 = scmp.ne.s32.totalorder %s125, %s128
      %p137 = scmp.eq.s32.totalorder %s17, 8
      %p138 = por %p136, %p137
      %p139 = scmp.ne.s32.totalorder %s128, %s129
      %p140 = scmp.eq.s32.totalorder %s17, 0
      %p141 = por %p139, %p140
      %p142 = scmp.ne.s32.totalorder %s128, %s129
      %p143 = scmp.eq.s32.totalorder %s18, 8
      %p144 = por %p142, %p143
      %p146 = scmp.ne.s32.totalorder %s129, %s145
      %p147 = scmp.eq.s32.totalorder %s18, 0
      %p148 = por %p146, %p147
      %p149 = scmp.le.s32.totalorder 1, %s12
      %p150 = scmp.lt.s32.totalorder %s12, 10
      %p151 = pnand %p149, %p150
      %p152 = pneg %p151
      // Predicated region
      $region9: #{transition_vit_forward.21} parent=5 // pred_check
        _
      $region10: #{transition_vit_forward.21} parent=5 // pred_check_branch
        %154 = sbr.rel (%p151) target = $region12
      $region11: #{transition_vit_forward.21} parent=5 // pred_region
        %s155 = ssub.s32 %s12, 1
      $region12: #{transition_vit_forward.21} parent=5 // pred_fallthru
        _
      %p156 = scmp.lt.s32.totalorder %s12, 9
      // Predicated region
      $region13: #{transition_vit_forward.21} parent=5 // pred_check
        %p157 = pneg %p156
      $region14: #{transition_vit_forward.21} parent=5 // pred_check_branch
        %159 = sbr.rel (%p157) target = $region16
      $region15: #{transition_vit_forward.21} parent=5 // pred_region
        // Predicated region
        $region17: #{transition_vit_forward.21} parent=15 // pred_check
          %p160 = pneg %p53
        $region18: #{transition_vit_forward.21} parent=15 // pred_check_branch
          %162 = sbr.rel (%p160) target = $region20
        $region19: #{transition_vit_forward.21} parent=15 // pred_region
          %p163 = scmp.lt.s32.totalorder %s19, 2
          %s164 = scalar_select %p163, %s19, 2
          %p165 = scmp.lt.s32.totalorder %s21, 0
          %s166 = scalar_select %p165, %s21, 0
          %s167 = sadd.s32 %s166, %s164
          %s168 = smul.addr %s167, 8
          %s169 = scalar_lea.vmem %s0, %s168
        $region20: #{transition_vit_forward.21} parent=15 // pred_fallthru
          _
        // Predicated region
        $region21: #{transition_vit_forward.21} parent=15 // pred_check
          %p170 = pneg %p81
        $region22: #{transition_vit_forward.21} parent=15 // pred_check_branch
          %172 = sbr.rel (%p170) target = $region24
        $region23: #{transition_vit_forward.21} parent=15 // pred_region
          %s173 = sand.u32 %s71, 1
          %s174 = scalar_lea.sflag [#allocation4], %s173
          %s175 = sand.u32 %s71, 1
          %s176 = smul.addr %s175, 128
          %s177 = scalar_lea.vmem [#allocation3], %s176
          %s178 = smul.u32 16, %s21
          %s180 = ssub.s32 2048, 2048
          %181 = vsyncadd %s174, %s180
          %s182 = smul.addr %s178, 3
          %s183 = sadd.s32 %s20, %s182
          %s184 = smul.addr %s183, 128
          %s185 = scalar_lea.hbm %s1, %s184
          %s186 = sshll.u32 %s177, 4
          %s187 = int_to_ptr.vmem [resolvable:$true] %s186
          %192 = dma.hbm_to_vmem [thread:$0]  %s185, 2048, %s187, %s174, 384, 128, 8
        $region24: #{transition_vit_forward.21} parent=15 // pred_fallthru
          _
        // Predicated region
        $region25: #{transition_vit_forward.21} parent=15 // pred_check
          %p193 = pneg %p107
        $region26: #{transition_vit_forward.21} parent=15 // pred_check_branch
          %195 = sbr.rel (%p193) target = $region28
        $region27: #{transition_vit_forward.21} parent=15 // pred_region
          %p196 = scmp.lt.s32.totalorder %s20, 2
          %s197 = scalar_select %p196, %s20, 2
          %s198 = scalar_lea.vmem %s2, %s197
        $region28: #{transition_vit_forward.21} parent=15 // pred_fallthru
          _
      $region16: #{transition_vit_forward.21} parent=5 // pred_fallthru
        _
      %p199 = scmp.le.s32.totalorder 1, %s12
      %p200 = scmp.lt.s32.totalorder %s12, 10
      %p201 = pnand %p199, %p200
      %p202 = pneg %p201
      // Predicated region
      $region29: #{transition_vit_forward.21} parent=5 // pred_check
        _
      $region30: #{transition_vit_forward.21} parent=5 // pred_check_branch
        %204 = sbr.rel (%p201) target = $region32
      $region31: #{transition_vit_forward.21} parent=5 // pred_region
        %s205 = ssub.s32 %s12, 1
        %s206 = sand.u32 %s74, 1
        %s207 = scalar_lea.sflag [#allocation4], %s206
        %s208 = sand.u32 %s74, 1
        %s209 = smul.addr %s208, 128
        %s210 = scalar_lea.vmem [#allocation3], %s209
        // Predicated region
        $region33: #{transition_vit_forward.21} parent=31 // pred_check
          %p211 = pneg %p87
        $region34: #{transition_vit_forward.21} parent=31 // pred_check_branch
          %213 = sbr.rel (%p211) target = $region36
        $region35: #{transition_vit_forward.21} parent=31 // pred_region
          %214 = dma.done %s207, 2048
        $region36: #{transition_vit_forward.21} parent=31 // pred_fallthru
          _
        %p215 = scmp.lt.s32.totalorder %s22, 2
        %s216 = scalar_select %p215, %s22, 2
        %p217 = scmp.lt.s32.totalorder %s24, 0
        %s218 = scalar_select %p217, %s24, 0
        %s219 = sadd.s32 %s218, %s216
        %s220 = smul.addr %s219, 8
        %s221 = scalar_lea.vmem %s0, %s220
        %p222 = pneg %p59
        %p223 = pneg %p56
        %s224 = sand.u32 %s74, 1
        %s225 = scalar_lea.sflag [#allocation4], %s224
        %s226 = sand.u32 %s74, 1
        %s227 = smul.addr %s226, 128
        %s228 = scalar_lea.vmem [#allocation3], %s227
        %p229 = pneg %p87
        %p230 = pneg %p84
        %p231 = scmp.lt.s32.totalorder %s23, 2
        %s232 = scalar_select %p231, %s23, 2
        %s233 = scalar_lea.vmem %s2, %s232
        %p234 = pneg %p113
        %p235 = pneg %p110
        %p236 = pneg %p141
        %p237 = pneg %p138
        %p238 = scmp.lt.s32.totalorder %s22, 2
        %s239 = scalar_select %p238, %s22, 2
        %p240 = scmp.lt.s32.totalorder %s23, 2
        %s241 = scalar_select %p240, %s23, 2
        %s242 = smul.addr %s239, 3
        %s243 = sadd.s32 %s241, %s242
        %s244 = smul.addr %s243, 8
        %s245 = scalar_lea.vmem %s3, %s244
        %p246 = scmp.lt.s32.totalorder %s22, 2
        %s247 = scalar_select %p246, %s22, 2
        %p248 = scmp.lt.s32.totalorder %s24, 0
        %s249 = scalar_select %p248, %s24, 0
        %s250 = sadd.s32 %s249, %s247
        %s251 = smul.addr %s250, 8
        %s252 = scalar_lea.vmem %s0, %s251
        %s253 = smul.u32 16, %s24
        %p254 = scmp.lt.s32.totalorder %s23, 2
        %s255 = scalar_select %p254, %s23, 2
        %s256 = scalar_lea.vmem %s2, %s255
        %p257 = scmp.lt.s32.totalorder %s22, 2
        %s258 = scalar_select %p257, %s22, 2
        %p259 = scmp.lt.s32.totalorder %s23, 2
        %s260 = scalar_select %p259, %s23, 2
        %s261 = smul.addr %s258, 3
        %s262 = sadd.s32 %s260, %s261
        %s263 = smul.addr %s262, 8
        %s264 = scalar_lea.vmem %s3, %s263
        %p266 = scmp.eq.s32.totalorder %s24, 0
        // Predicated region
        $region37: #{transition_vit_forward.21} parent=31 // pred_check
          %p267 = pneg %p266
        $region38: #{transition_vit_forward.21} parent=31 // pred_check_branch
          %269 = sbr.rel (%p267) target = $region40
        $region39: #{transition_vit_forward.21} parent=31 // pred_region
          %270 = vst [vmem:[#allocation2] sm:$0xff] 0.0
        $region40: #{transition_vit_forward.21} parent=31 // pred_fallthru
          _
        %v271 = vld [vmem:[#allocation2] sm:$0xff]
        %v272 = vld [vmem:[%s252] sm:$0xff]
        %v273 = vpack.c.bf16 %v272, %v272
        %v274 = vld [vmem:[%s210] sm:$0xff]
        %v275 = vld [vmem:[%s210 + $0x8] sm:$0xff]
        %v276 = vld [vmem:[%s210 + $0x10] sm:$0xff]
        %v277 = vld [vmem:[%s210 + $0x18] sm:$0xff]
        %v278 = vld [vmem:[%s210 + $0x20] sm:$0xff]
        %v279 = vld [vmem:[%s210 + $0x28] sm:$0xff]
        %v280 = vld [vmem:[%s210 + $0x30] sm:$0xff]
        %v281 = vld [vmem:[%s210 + $0x38] sm:$0xff]
        %v282 = vld [vmem:[%s210 + $0x40] sm:$0xff]
        %v283 = vld [vmem:[%s210 + $0x48] sm:$0xff]
        %v284 = vld [vmem:[%s210 + $0x50] sm:$0xff]
        %v285 = vld [vmem:[%s210 + $0x58] sm:$0xff]
        %v286 = vld [vmem:[%s210 + $0x60] sm:$0xff]
        %v287 = vld [vmem:[%s210 + $0x68] sm:$0xff]
        %v288 = vld [vmem:[%s210 + $0x70] sm:$0xff]
        %v289 = vld [vmem:[%s210 + $0x78] sm:$0xff]
        %v290 = vpack.c.bf16 %v275, %v274
        %v291 = vpack.c.bf16 %v277, %v276
        %v292 = vpack.c.bf16 %v279, %v278
        %v293 = vpack.c.bf16 %v281, %v280
        %v294 = vpack.c.bf16 %v283, %v282
        %v295 = vpack.c.bf16 %v285, %v284
        %v296 = vpack.c.bf16 %v287, %v286
        %v297 = vpack.c.bf16 %v289, %v288
        %298 = vmatprep.subr.bf16.mxu0 0
        %299 = vmatpush1.bf16.msra.mxu0 %v297
        %300 = vmatprep.subr.bf16.mxu0 0
        %301 = vmatpush1.bf16.msra.mxu0 %v296
        %302 = vmatprep.subr.bf16.mxu0 0
        %303 = vmatpush1.bf16.msra.mxu0 %v295
        %304 = vmatprep.subr.bf16.mxu0 0
        %305 = vmatpush1.bf16.msra.mxu0 %v294
        %306 = vmatprep.subr.bf16.mxu0 0
        %307 = vmatpush1.bf16.msra.mxu0 %v293
        %308 = vmatprep.subr.bf16.mxu0 0
        %309 = vmatpush1.bf16.msra.mxu0 %v292
        %310 = vmatprep.subr.bf16.mxu0 0
        %311 = vmatpush1.bf16.msra.mxu0 %v291
        %312 = vmatprep.subr.bf16.mxu0 0
        %313 = vmatpush1.bf16.msra.mxu0 %v290
        %314 = vmatprep.subr.bf16.mxu0 0
        %315 = vmatpush2.bf16.msra.mxu0 0
        %316 = vmatprep.subr.bf16.mxu0 0
        %317 = vmatpush2.bf16.msra.mxu0 0
        %318 = vmatprep.subr.bf16.mxu0 0
        %319 = vmatpush2.bf16.msra.mxu0 0
        %320 = vmatprep.subr.bf16.mxu0 0
        %321 = vmatpush2.bf16.msra.mxu0 0
        %322 = vmatprep.subr.bf16.mxu0 0
        %323 = vmatpush2.bf16.msra.mxu0 0
        %324 = vmatprep.subr.bf16.mxu0 0
        %325 = vmatpush2.bf16.msra.mxu0 0
        %326 = vmatprep.subr.bf16.mxu0 0
        %327 = vmatpush2.bf16.msra.mxu0 0
        %328 = vmatprep.subr.bf16.mxu0 0
        %329 = vmatpush2.bf16.msra.mxu0 0
        %330 = vmatprep.mubr.bf16.mxu0 0
        %331 = vmatmul.mubr.bf16.gmra.mxu0 %v273
        %v332 = vpop.f32.mrf.mxu0
        %v333 = vadd.f32 0.0, %v332
        %v334 = vpop.f32.mrf.mxu0
        %v335 = vpop.f32.mrf.mxu0
        %v336 = vpop.f32.mrf.mxu0
        %337 = vdwg.mxu0
        %v338 = vadd.f32 %v271, %v333
        %339 = vst [vmem:[#allocation2] sm:$0xff] %v338
        // Predicated region
        $region41: #{transition_vit_forward.21} parent=31 // pred_check
          %p340 = pneg %p266
        $region42: #{transition_vit_forward.21} parent=31 // pred_check_branch
          %342 = sbr.rel (%p340) target = $region44
        $region43: #{transition_vit_forward.21} parent=31 // pred_region
          %v343 = vld [vmem:[#allocation2] sm:$0xff]
          %v344 = vld [vmem:[%s256] sm:$0x1]
          %v346 = vlaneseq
          %v347 = vshrl.u32 %v346, 7
          %v348 = vsub.s32 0, %v347
          %v349 = vrot.slane %v344, %v348
          %v351 = vadd.f32 %v343, %v349
          %352 = vst [vmem:[%s264] sm:$0xff] %v351
        $region44: #{transition_vit_forward.21} parent=31 // pred_fallthru
          _
        %p353 = scmp.lt.s32.totalorder %s22, 2
        %s354 = scalar_select %p353, %s22, 2
        %p355 = scmp.lt.s32.totalorder %s23, 2
        %s356 = scalar_select %p355, %s23, 2
        %s357 = smul.addr %s354, 3
        %s358 = sadd.s32 %s356, %s357
        %s359 = smul.addr %s358, 8
        %s360 = scalar_lea.vmem %s3, %s359
        // Predicated region
        $region45: #{transition_vit_forward.21} parent=31 // pred_check
          %p361 = pneg %p138
        $region46: #{transition_vit_forward.21} parent=31 // pred_check_branch
          %363 = sbr.rel (%p361) target = $region48
        $region47: #{transition_vit_forward.21} parent=31 // pred_region
          _
        $region48: #{transition_vit_forward.21} parent=31 // pred_fallthru
          _
      $region32: #{transition_vit_forward.21} parent=5 // pred_fallthru
        _
      %p364 = scmp.le.s32.totalorder 2, %s12
      // Predicated region
      $region49: #{transition_vit_forward.21} parent=5 // pred_check
        %p365 = pneg %p364
      $region50: #{transition_vit_forward.21} parent=5 // pred_check_branch
        %367 = sbr.rel (%p365) target = $region52
      $region51: #{transition_vit_forward.21} parent=5 // pred_region
        %s368 = ssub.s32 %s12, 2
        // Predicated region
        $region53: #{transition_vit_forward.21} parent=51 // pred_check
          %p369 = pneg %p144
        $region54: #{transition_vit_forward.21} parent=51 // pred_check_branch
          %371 = sbr.rel (%p369) target = $region56
        $region55: #{transition_vit_forward.21} parent=51 // pred_region
          %p372 = scmp.lt.s32.totalorder %s25, 2
          %s373 = scalar_select %p372, %s25, 2
          %p374 = scmp.lt.s32.totalorder %s26, 2
          %s375 = scalar_select %p374, %s26, 2
          %s376 = smul.addr %s373, 3
          %s377 = sadd.s32 %s375, %s376
          %s378 = smul.addr %s377, 8
          %s379 = scalar_lea.vmem %s3, %s378
        $region56: #{transition_vit_forward.21} parent=51 // pred_fallthru
          _
      $region52: #{transition_vit_forward.21} parent=5 // pred_fallthru
        _
    $region6: #{transition_vit_forward.21} parent=1 // loop_footer
      %s16 = sadd.s32 1, %s12
    $region7: #{transition_vit_forward.21} parent=1 // loop_footer_branch
      %11 = sbr.rel target = $region3
    $region8: #{transition_vit_forward.21} parent=1 // loop_exit
      _
    %380 = vsyncpa [#allocation4], 1
    %s381 = scalar_lea.sflag [#allocation4], 1
    %382 = vsyncpa %s381, 1

// kernel: transition_vit_forward.24
$region0: #{transition_vit_forward.24}
  #allocation0 [shape = 'u32[]', space=smem, size = 0x4, offset = 0x4, fixed_abs, tag = 'smem constant byte address 0x4 - core index']
  #allocation1 [shape = 'u32[144,128]{1,0:T(1,128)}', space=vmem, size = 0x12000, scoped, tag = 'internal scratch']
  %s0 = inlined_call_operand.vmem [shape: f32[24,128], index: 0, kind: input, shape index: {}]
  %s1 = inlined_call_operand.vmem [shape: f32[24,128], index: 1, kind: input, shape index: {}]
  %s2 = inlined_call_operand.vmem [shape: f32[1,128], index: 2, kind: input, shape index: {}]
  %s3 = inlined_call_operand.vmem [shape: f32[1,128], index: 3, kind: input, shape index: {}]
  %s4 = inlined_call_operand.vmem [shape: f32[24,128], index: 4, kind: output, shape index: {}]
  %s5 = sld [smem:[#allocation0]]
  $region49: #{transition_vit_forward.24} parent=0
    _
  %s7 = ssub.s32 1, %s5
  %s8 = scalar_select 0, %s7, %s5
  loop: start=0, step=1, limit=5
  $region2: #{transition_vit_forward.24} parent=0 // loop_pre_header
    _
  $region3: #{transition_vit_forward.24} parent=0 // loop_header
    %s10 = sphi 0, %s14
    %p11 = scmp.ge.s32.totalorder %s10, 5
    %s20 = sphi 0, %s22
    %s23 = sphi 0, %s20
    %s24 = sphi 0, %s23
    %s40 = sphi 0, %s24
    %s46 = sphi 0, %s48
    %s49 = sphi 0, %s46
    %s50 = sphi 0, %s49
    %s66 = sphi 0, %s50
    %s70 = sphi 0, %s70
    %s72 = sphi 0, %s70
    %s73 = sphi 0, %s72
    %s87 = sphi 0, %s73
    %s91 = sphi 0, %s91
    %s93 = sphi 0, %s91
    %s94 = sphi 0, %s93
    %s108 = sphi 0, %s94
    %s114 = sphi 0, %s116
    %s117 = sphi 0, %s114
    %s118 = sphi 0, %s117
    %s134 = sphi 0, %s118
  $region4: #{transition_vit_forward.24} parent=0 // loop_header_branch
    %13 = sbr.rel (%p11) target = $region8
  $region5: #{transition_vit_forward.24} parent=0 // loop_body
    %s15 = ssub.s32 %s10, 1
    %s16 = ssub.s32 %s10, 2
    %s17 = sadd.s32 %s10, 1
    %s18 = ssub.s32 %s10, %s17
    %p19 = scmp.eq.s32.totalorder %s18, 0
    %s21 = sadd.s32 %s20, 1
    %s22 = scalar_select %p19, %s20, %s21
    %p25 = pneg %p19
    %p26 = scmp.eq.s32.totalorder %s10, 2
    %p27 = por %p25, %p26
    %p28 = scmp.ne.s32.totalorder %s20, %s23
    %p29 = scmp.eq.s32.totalorder %s10, 0
    %p30 = por %p28, %p29
    %p31 = scmp.ne.s32.totalorder %s20, %s23
    %p32 = scmp.eq.s32.totalorder %s15, 2
    %p33 = por %p31, %p32
    %p34 = scmp.ne.s32.totalorder %s23, %s24
    %p35 = scmp.eq.s32.totalorder %s15, 0
    %p36 = por %p34, %p35
    %p37 = scmp.ne.s32.totalorder %s23, %s24
    %p38 = scmp.eq.s32.totalorder %s16, 2
    %p39 = por %p37, %p38
    %p41 = scmp.ne.s32.totalorder %s24, %s40
    %p42 = scmp.eq.s32.totalorder %s16, 0
    %p43 = por %p41, %p42
    %s44 = ssub.s32 %s10, %s17
    %p45 = scmp.eq.s32.totalorder %s44, 0
    %s47 = sadd.s32 %s46, 1
    %s48 = scalar_select %p45, %s46, %s47
    %p51 = pneg %p45
    %p52 = scmp.eq.s32.totalorder %s10, 2
    %p53 = por %p51, %p52
    %p54 = scmp.ne.s32.totalorder %s46, %s49
    %p55 = scmp.eq.s32.totalorder %s10, 0
    %p56 = por %p54, %p55
    %p57 = scmp.ne.s32.totalorder %s46, %s49
    %p58 = scmp.eq.s32.totalorder %s15, 2
    %p59 = por %p57, %p58
    %p60 = scmp.ne.s32.totalorder %s49, %s50
    %p61 = scmp.eq.s32.totalorder %s15, 0
    %p62 = por %p60, %p61
    %p63 = scmp.ne.s32.totalorder %s49, %s50
    %p64 = scmp.eq.s32.totalorder %s16, 2
    %p65 = por %p63, %p64
    %p67 = scmp.ne.s32.totalorder %s50, %s66
    %p68 = scmp.eq.s32.totalorder %s16, 0
    %p69 = por %p67, %p68
    %s71 = sadd.s32 %s70, 1
    %p74 = scmp.eq.s32.totalorder %s10, 2
    %p75 = scmp.ne.s32.totalorder %s70, %s72
    %p76 = scmp.eq.s32.totalorder %s10, 0
    %p77 = por %p75, %p76
    %p78 = scmp.ne.s32.totalorder %s70, %s72
    %p79 = scmp.eq.s32.totalorder %s15, 2
    %p80 = por %p78, %p79
    %p81 = scmp.ne.s32.totalorder %s72, %s73
    %p82 = scmp.eq.s32.totalorder %s15, 0
    %p83 = por %p81, %p82
    %p84 = scmp.ne.s32.totalorder %s72, %s73
    %p85 = scmp.eq.s32.totalorder %s16, 2
    %p86 = por %p84, %p85
    %p88 = scmp.ne.s32.totalorder %s73, %s87
    %p89 = scmp.eq.s32.totalorder %s16, 0
    %p90 = por %p88, %p89
    %s92 = sadd.s32 %s91, 1
    %p95 = scmp.eq.s32.totalorder %s10, 2
    %p96 = scmp.ne.s32.totalorder %s91, %s93
    %p97 = scmp.eq.s32.totalorder %s10, 0
    %p98 = por %p96, %p97
    %p99 = scmp.ne.s32.totalorder %s91, %s93
    %p100 = scmp.eq.s32.totalorder %s15, 2
    %p101 = por %p99, %p100
    %p102 = scmp.ne.s32.totalorder %s93, %s94
    %p103 = scmp.eq.s32.totalorder %s15, 0
    %p104 = por %p102, %p103
    %p105 = scmp.ne.s32.totalorder %s93, %s94
    %p106 = scmp.eq.s32.totalorder %s16, 2
    %p107 = por %p105, %p106
    %p109 = scmp.ne.s32.totalorder %s94, %s108
    %p110 = scmp.eq.s32.totalorder %s16, 0
    %p111 = por %p109, %p110
    %s112 = ssub.s32 %s10, %s17
    %p113 = scmp.eq.s32.totalorder %s112, 0
    %s115 = sadd.s32 %s114, 1
    %s116 = scalar_select %p113, %s114, %s115
    %p119 = pneg %p113
    %p120 = scmp.eq.s32.totalorder %s10, 2
    %p121 = por %p119, %p120
    %p122 = scmp.ne.s32.totalorder %s114, %s117
    %p123 = scmp.eq.s32.totalorder %s10, 0
    %p124 = por %p122, %p123
    %p125 = scmp.ne.s32.totalorder %s114, %s117
    %p126 = scmp.eq.s32.totalorder %s15, 2
    %p127 = por %p125, %p126
    %p128 = scmp.ne.s32.totalorder %s117, %s118
    %p129 = scmp.eq.s32.totalorder %s15, 0
    %p130 = por %p128, %p129
    %p131 = scmp.ne.s32.totalorder %s117, %s118
    %p132 = scmp.eq.s32.totalorder %s16, 2
    %p133 = por %p131, %p132
    %p135 = scmp.ne.s32.totalorder %s118, %s134
    %p136 = scmp.eq.s32.totalorder %s16, 0
    %p137 = por %p135, %p136
    %p138 = scmp.le.s32.totalorder 1, %s10
    %p139 = scmp.lt.s32.totalorder %s10, 4
    %p140 = pnand %p138, %p139
    %p141 = pneg %p140
    // Predicated region
    $region9: #{transition_vit_forward.24} parent=5 // pred_check
      _
    $region10: #{transition_vit_forward.24} parent=5 // pred_check_branch
      %143 = sbr.rel (%p140) target = $region12
    $region11: #{transition_vit_forward.24} parent=5 // pred_region
      %s144 = ssub.s32 %s10, 1
      // Predicated region
      $region13: #{transition_vit_forward.24} parent=11 // pred_check
        %p145 = pneg %p83
      $region14: #{transition_vit_forward.24} parent=11 // pred_check_branch
        %147 = sbr.rel (%p145) target = $region16
      $region15: #{transition_vit_forward.24} parent=11 // pred_region
        _
      $region16: #{transition_vit_forward.24} parent=11 // pred_fallthru
        _
      // Predicated region
      $region17: #{transition_vit_forward.24} parent=11 // pred_check
        %p148 = pneg %p104
      $region18: #{transition_vit_forward.24} parent=11 // pred_check_branch
        %150 = sbr.rel (%p148) target = $region20
      $region19: #{transition_vit_forward.24} parent=11 // pred_region
        _
      $region20: #{transition_vit_forward.24} parent=11 // pred_fallthru
        _
    $region12: #{transition_vit_forward.24} parent=5 // pred_fallthru
      _
    %p151 = scmp.lt.s32.totalorder %s10, 3
    // Predicated region
    $region21: #{transition_vit_forward.24} parent=5 // pred_check
      %p152 = pneg %p151
    $region22: #{transition_vit_forward.24} parent=5 // pred_check_branch
      %154 = sbr.rel (%p152) target = $region24
    $region23: #{transition_vit_forward.24} parent=5 // pred_region
      // Predicated region
      $region25: #{transition_vit_forward.24} parent=23 // pred_check
        %p155 = pneg %p30
      $region26: #{transition_vit_forward.24} parent=23 // pred_check_branch
        %157 = sbr.rel (%p155) target = $region28
      $region27: #{transition_vit_forward.24} parent=23 // pred_region
        %p158 = scmp.lt.s32.totalorder %s10, 2
        %s159 = scalar_select %p158, %s10, 2
        %s160 = smul.addr %s159, 8
        %s161 = scalar_lea.vmem %s0, %s160
      $region28: #{transition_vit_forward.24} parent=23 // pred_fallthru
        _
      // Predicated region
      $region29: #{transition_vit_forward.24} parent=23 // pred_check
        %p162 = pneg %p56
      $region30: #{transition_vit_forward.24} parent=23 // pred_check_branch
        %164 = sbr.rel (%p162) target = $region32
      $region31: #{transition_vit_forward.24} parent=23 // pred_region
        %p165 = scmp.lt.s32.totalorder %s10, 2
        %s166 = scalar_select %p165, %s10, 2
        %s167 = smul.addr %s166, 8
        %s168 = scalar_lea.vmem %s1, %s167
      $region32: #{transition_vit_forward.24} parent=23 // pred_fallthru
        _
    $region24: #{transition_vit_forward.24} parent=5 // pred_fallthru
      _
    %p169 = scmp.le.s32.totalorder 1, %s10
    %p170 = scmp.lt.s32.totalorder %s10, 4
    %p171 = pnand %p169, %p170
    %p172 = pneg %p171
    // Predicated region
    $region33: #{transition_vit_forward.24} parent=5 // pred_check
      _
    $region34: #{transition_vit_forward.24} parent=5 // pred_check_branch
      %174 = sbr.rel (%p171) target = $region36
    $region35: #{transition_vit_forward.24} parent=5 // pred_region
      %s175 = ssub.s32 %s10, 1
      %p176 = scmp.lt.s32.totalorder %s15, 2
      %s177 = scalar_select %p176, %s15, 2
      %s178 = smul.addr %s177, 8
      %s179 = scalar_lea.vmem %s0, %s178
      %p180 = pneg %p36
      %p181 = pneg %p33
      %p182 = scmp.lt.s32.totalorder %s15, 2
      %s183 = scalar_select %p182, %s15, 2
      %s184 = smul.addr %s183, 8
      %s185 = scalar_lea.vmem %s1, %s184
      %p186 = pneg %p62
      %p187 = pneg %p59
      %p188 = pneg %p83
      %p189 = pneg %p80
      %p190 = pneg %p104
      %p191 = pneg %p101
      %p192 = pneg %p130
      %p193 = pneg %p127
      %p194 = scmp.lt.s32.totalorder %s15, 2
      %s195 = scalar_select %p194, %s15, 2
      %s196 = smul.addr %s195, 8
      %s197 = scalar_lea.vmem %s4, %s196
      %p198 = scmp.lt.s32.totalorder %s15, 2
      %s199 = scalar_select %p198, %s15, 2
      %s200 = smul.addr %s199, 8
      %s201 = scalar_lea.vmem %s0, %s200
      %p202 = scmp.lt.s32.totalorder %s15, 2
      %s203 = scalar_select %p202, %s15, 2
      %s204 = smul.addr %s203, 8
      %s205 = scalar_lea.vmem %s1, %s204
      %p206 = scmp.lt.s32.totalorder %s15, 2
      %s207 = scalar_select %p206, %s15, 2
      %s208 = smul.addr %s207, 8
      %s209 = scalar_lea.vmem %s4, %s208
      %v210 = vld [vmem:[%s201] sm:$0xff]
      %v211 = vld [vmem:[%s205] sm:$0xff]
      %v212 = vadd.f32 %v210, %v211
      %213 = vadd.xlane.f32.xlu0 %v212
      %v214 = vpop.xlane.xlu0 %213
      %v215 = vrcp.pop 128.0
      %v216 = vmul.f32 %v214, %v215
      %v217 = vsub.f32 %v212, %v216
      %v218 = vmul.f32 %v217, %v217
      %219 = vadd.xlane.f32.xlu0 %v218
      %v220 = vpop.xlane.xlu0 %219
      %v221 = vmul.f32 %v220, %v215
      %v222 = vadd.f32 %v221, 1e-05
      %v223 = vrsqrt.pop %v222
      %v224 = vmul.f32 %v217, %v223
      %v225 = vld [vmem:[%s2] sm:$0x1]
      %v227 = vlaneseq
      %v228 = vshrl.u32 %v227, 7
      %v229 = vsub.s32 0, %v228
      %v230 = vrot.slane %v225, %v229
      %v232 = vmul.f32 %v224, %v230
      %v233 = vld [vmem:[%s3] sm:$0x1]
      %v235 = vlaneseq
      %v236 = vshrl.u32 %v235, 7
      %v237 = vsub.s32 0, %v236
      %v238 = vrot.slane %v233, %v237
      %v240 = vadd.f32 %v232, %v238
      %241 = vst [vmem:[%s209] sm:$0xff] %v240
      %p242 = scmp.lt.s32.totalorder %s15, 2
      %s243 = scalar_select %p242, %s15, 2
      %s244 = smul.addr %s243, 8
      %s245 = scalar_lea.vmem %s4, %s244
      // Predicated region
      $region37: #{transition_vit_forward.24} parent=35 // pred_check
        %p246 = pneg %p127
      $region38: #{transition_vit_forward.24} parent=35 // pred_check_branch
        %248 = sbr.rel (%p246) target = $region40
      $region39: #{transition_vit_forward.24} parent=35 // pred_region
        _
      $region40: #{transition_vit_forward.24} parent=35 // pred_fallthru
        _
    $region36: #{transition_vit_forward.24} parent=5 // pred_fallthru
      _
    %p249 = scmp.le.s32.totalorder 2, %s10
    // Predicated region
    $region41: #{transition_vit_forward.24} parent=5 // pred_check
      %p250 = pneg %p249
    $region42: #{transition_vit_forward.24} parent=5 // pred_check_branch
      %252 = sbr.rel (%p250) target = $region44
    $region43: #{transition_vit_forward.24} parent=5 // pred_region
      %s253 = ssub.s32 %s10, 2
      // Predicated region
      $region45: #{transition_vit_forward.24} parent=43 // pred_check
        %p254 = pneg %p133
      $region46: #{transition_vit_forward.24} parent=43 // pred_check_branch
        %256 = sbr.rel (%p254) target = $region48
      $region47: #{transition_vit_forward.24} parent=43 // pred_region
        %p257 = scmp.lt.s32.totalorder %s16, 2
        %s258 = scalar_select %p257, %s16, 2
        %s259 = smul.addr %s258, 8
        %s260 = scalar_lea.vmem %s4, %s259
      $region48: #{transition_vit_forward.24} parent=43 // pred_fallthru
        _
    $region44: #{transition_vit_forward.24} parent=5 // pred_fallthru
      _
  $region6: #{transition_vit_forward.24} parent=0 // loop_footer
    %s14 = sadd.s32 1, %s10
  $region7: #{transition_vit_forward.24} parent=0 // loop_footer_branch
    %9 = sbr.rel target = $region3
  $region8: #{transition_vit_forward.24} parent=0 // loop_exit
    _

// kernel: transition_vit_forward.25
$region0: #{transition_vit_forward.25}
  #allocation0 [shape = 'u32[]', space=smem, size = 0x4, offset = 0x4, fixed_abs, tag = 'smem constant byte address 0x4 - core index']
  #allocation1 [shape = 'u32[144,128]{1,0:T(1,128)}', space=vmem, size = 0x12000, scoped, tag = 'internal scratch']
  #allocation2 [shape = 'f32[8,128]{1,0:T(8,128)}', space=vmem, size = 0x1000, scoped, tag = 'scratch operand']
  %s0 = inlined_call_operand.vmem [shape: f32[24,128], index: 0, kind: input, shape index: {}]
  %s1 = inlined_call_operand.vmem [shape: f32[128,256], index: 1, kind: input, shape index: {}]
  %s2 = inlined_call_operand.vmem [shape: f32[1,256], index: 2, kind: input, shape index: {}]
  %s3 = inlined_call_operand.vmem [shape: f32[256,128], index: 3, kind: input, shape index: {}]
  %s4 = inlined_call_operand.vmem [shape: f32[1,128], index: 4, kind: input, shape index: {}]
  %s5 = inlined_call_operand.vmem [shape: f32[24,128], index: 5, kind: output, shape index: {}]
  %s6 = sld [smem:[#allocation0]]
  $region61: #{transition_vit_forward.25} parent=0
    _
  %s8 = ssub.s32 1, %s6
  %s9 = scalar_select 0, %s8, %s6
  loop: start=0, step=1, limit=5
  $region2: #{transition_vit_forward.25} parent=0 // loop_pre_header
    _
  $region3: #{transition_vit_forward.25} parent=0 // loop_header
    %s11 = sphi 0, %s15
    %p12 = scmp.ge.s32.totalorder %s11, 5
    %s18 = sphi 0, %s30
    %s19 = sphi 0, %s26
    %s20 = sphi 0, %s18
    %s21 = sphi 0, %s19
    %s22 = sphi 0, %s20
    %s23 = sphi 0, %s21
    %s33 = sphi 0, %s35
    %s36 = sphi 0, %s33
    %s37 = sphi 0, %s36
    %s53 = sphi 0, %s37
    %s59 = sphi 0, %s61
    %s62 = sphi 0, %s59
    %s63 = sphi 0, %s62
    %s79 = sphi 0, %s63
    %s85 = sphi 0, %s87
    %s88 = sphi 0, %s85
    %s89 = sphi 0, %s88
    %s105 = sphi 0, %s89
    %s111 = sphi 0, %s113
    %s114 = sphi 0, %s111
    %s115 = sphi 0, %s114
    %s131 = sphi 0, %s115
    %s135 = sphi 0, %s135
    %s137 = sphi 0, %s135
    %s138 = sphi 0, %s137
    %s152 = sphi 0, %s138
    %s158 = sphi 0, %s160
    %s161 = sphi 0, %s158
    %s162 = sphi 0, %s161
    %s178 = sphi 0, %s162
  $region4: #{transition_vit_forward.25} parent=0 // loop_header_branch
    %14 = sbr.rel (%p12) target = $region8
  $region5: #{transition_vit_forward.25} parent=0 // loop_body
    %s16 = ssub.s32 %s11, 1
    %s17 = ssub.s32 %s11, 2
    %s24 = sadd.s32 1, %s19
    %p25 = scmp.ge.s32.totalorder %s24, 1
    %s26 = scalar_select %p25, 0, %s24
    %s27 = sadd.s32 1, %s18
    %s28 = scalar_select %p25, %s27, %s18
    %p29 = scmp.ge.s32.totalorder %s28, 3
    %s30 = scalar_select %p29, 0, %s28
    %s31 = ssub.s32 %s18, %s30
    %p32 = scmp.eq.s32.totalorder %s31, 0
    %s34 = sadd.s32 %s33, 1
    %s35 = scalar_select %p32, %s33, %s34
    %p38 = pneg %p32
    %p39 = scmp.eq.s32.totalorder %s11, 2
    %p40 = por %p38, %p39
    %p41 = scmp.ne.s32.totalorder %s33, %s36
    %p42 = scmp.eq.s32.totalorder %s11, 0
    %p43 = por %p41, %p42
    %p44 = scmp.ne.s32.totalorder %s33, %s36
    %p45 = scmp.eq.s32.totalorder %s16, 2
    %p46 = por %p44, %p45
    %p47 = scmp.ne.s32.totalorder %s36, %s37
    %p48 = scmp.eq.s32.totalorder %s16, 0
    %p49 = por %p47, %p48
    %p50 = scmp.ne.s32.totalorder %s36, %s37
    %p51 = scmp.eq.s32.totalorder %s17, 2
    %p52 = por %p50, %p51
    %p54 = scmp.ne.s32.totalorder %s37, %s53
    %p55 = scmp.eq.s32.totalorder %s17, 0
    %p56 = por %p54, %p55
    %s57 = ssub.s32 %s19, %s26
    %p58 = scmp.eq.s32.totalorder %s57, 0
    %s60 = sadd.s32 %s59, 1
    %s61 = scalar_select %p58, %s59, %s60
    %p64 = pneg %p58
    %p65 = scmp.eq.s32.totalorder %s11, 2
    %p66 = por %p64, %p65
    %p67 = scmp.ne.s32.totalorder %s59, %s62
    %p68 = scmp.eq.s32.totalorder %s11, 0
    %p69 = por %p67, %p68
    %p70 = scmp.ne.s32.totalorder %s59, %s62
    %p71 = scmp.eq.s32.totalorder %s16, 2
    %p72 = por %p70, %p71
    %p73 = scmp.ne.s32.totalorder %s62, %s63
    %p74 = scmp.eq.s32.totalorder %s16, 0
    %p75 = por %p73, %p74
    %p76 = scmp.ne.s32.totalorder %s62, %s63
    %p77 = scmp.eq.s32.totalorder %s17, 2
    %p78 = por %p76, %p77
    %p80 = scmp.ne.s32.totalorder %s63, %s79
    %p81 = scmp.eq.s32.totalorder %s17, 0
    %p82 = por %p80, %p81
    %s83 = ssub.s32 %s19, %s26
    %p84 = scmp.eq.s32.totalorder %s83, 0
    %s86 = sadd.s32 %s85, 1
    %s87 = scalar_select %p84, %s85, %s86
    %p90 = pneg %p84
    %p91 = scmp.eq.s32.totalorder %s11, 2
    %p92 = por %p90, %p91
    %p93 = scmp.ne.s32.totalorder %s85, %s88
    %p94 = scmp.eq.s32.totalorder %s11, 0
    %p95 = por %p93, %p94
    %p96 = scmp.ne.s32.totalorder %s85, %s88
    %p97 = scmp.eq.s32.totalorder %s16, 2
    %p98 = por %p96, %p97
    %p99 = scmp.ne.s32.totalorder %s88, %s89
    %p100 = scmp.eq.s32.totalorder %s16, 0
    %p101 = por %p99, %p100
    %p102 = scmp.ne.s32.totalorder %s88, %s89
    %p103 = scmp.eq.s32.totalorder %s17, 2
    %p104 = por %p102, %p103
    %p106 = scmp.ne.s32.totalorder %s89, %s105
    %p107 = scmp.eq.s32.totalorder %s17, 0
    %p108 = por %p106, %p107
    %s109 = ssub.s32 %s19, %s26
    %p110 = scmp.eq.s32.totalorder %s109, 0
    %s112 = sadd.s32 %s111, 1
    %s113 = scalar_select %p110, %s111, %s112
    %p116 = pneg %p110
    %p117 = scmp.eq.s32.totalorder %s11, 2
    %p118 = por %p116, %p117
    %p119 = scmp.ne.s32.totalorder %s111, %s114
    %p120 = scmp.eq.s32.totalorder %s11, 0
    %p121 = por %p119, %p120
    %p122 = scmp.ne.s32.totalorder %s111, %s114
    %p123 = scmp.eq.s32.totalorder %s16, 2
    %p124 = por %p122, %p123
    %p125 = scmp.ne.s32.totalorder %s114, %s115
    %p126 = scmp.eq.s32.totalorder %s16, 0
    %p127 = por %p125, %p126
    %p128 = scmp.ne.s32.totalorder %s114, %s115
    %p129 = scmp.eq.s32.totalorder %s17, 2
    %p130 = por %p128, %p129
    %p132 = scmp.ne.s32.totalorder %s115, %s131
    %p133 = scmp.eq.s32.totalorder %s17, 0
    %p134 = por %p132, %p133
    %s136 = sadd.s32 %s135, 1
    %p139 = scmp.eq.s32.totalorder %s11, 2
    %p140 = scmp.ne.s32.totalorder %s135, %s137
    %p141 = scmp.eq.s32.totalorder %s11, 0
    %p142 = por %p140, %p141
    %p143 = scmp.ne.s32.totalorder %s135, %s137
    %p144 = scmp.eq.s32.totalorder %s16, 2
    %p145 = por %p143, %p144
    %p146 = scmp.ne.s32.totalorder %s137, %s138
    %p147 = scmp.eq.s32.totalorder %s16, 0
    %p148 = por %p146, %p147
    %p149 = scmp.ne.s32.totalorder %s137, %s138
    %p150 = scmp.eq.s32.totalorder %s17, 2
    %p151 = por %p149, %p150
    %p153 = scmp.ne.s32.totalorder %s138, %s152
    %p154 = scmp.eq.s32.totalorder %s17, 0
    %p155 = por %p153, %p154
    %s156 = ssub.s32 %s18, %s30
    %p157 = scmp.eq.s32.totalorder %s156, 0
    %s159 = sadd.s32 %s158, 1
    %s160 = scalar_select %p157, %s158, %s159
    %p163 = pneg %p157
    %p164 = scmp.eq.s32.totalorder %s11, 2
    %p165 = por %p163, %p164
    %p166 = scmp.ne.s32.totalorder %s158, %s161
    %p167 = scmp.eq.s32.totalorder %s11, 0
    %p168 = por %p166, %p167
    %p169 = scmp.ne.s32.totalorder %s158, %s161
    %p170 = scmp.eq.s32.totalorder %s16, 2
    %p171 = por %p169, %p170
    %p172 = scmp.ne.s32.totalorder %s161, %s162
    %p173 = scmp.eq.s32.totalorder %s16, 0
    %p174 = por %p172, %p173
    %p175 = scmp.ne.s32.totalorder %s161, %s162
    %p176 = scmp.eq.s32.totalorder %s17, 2
    %p177 = por %p175, %p176
    %p179 = scmp.ne.s32.totalorder %s162, %s178
    %p180 = scmp.eq.s32.totalorder %s17, 0
    %p181 = por %p179, %p180
    %p182 = scmp.le.s32.totalorder 1, %s11
    %p183 = scmp.lt.s32.totalorder %s11, 4
    %p184 = pnand %p182, %p183
    %p185 = pneg %p184
    // Predicated region
    $region9: #{transition_vit_forward.25} parent=5 // pred_check
      _
    $region10: #{transition_vit_forward.25} parent=5 // pred_check_branch
      %187 = sbr.rel (%p184) target = $region12
    $region11: #{transition_vit_forward.25} parent=5 // pred_region
      %s188 = ssub.s32 %s11, 1
      // Predicated region
      $region13: #{transition_vit_forward.25} parent=11 // pred_check
        %p189 = pneg %p75
      $region14: #{transition_vit_forward.25} parent=11 // pred_check_branch
        %191 = sbr.rel (%p189) target = $region16
      $region15: #{transition_vit_forward.25} parent=11 // pred_region
        %s192 = smul.u32 2, %s21
        %p193 = scmp.lt.s32.totalorder %s192, 1
        %s194 = scalar_select %p193, %s192, 1
        %s195 = smul.addr %s194, 8
        %s196 = scalar_lea.vmem %s1, %s195
        %s197 = smul.u32 2, %s21
      $region16: #{transition_vit_forward.25} parent=11 // pred_fallthru
        _
      // Predicated region
      $region17: #{transition_vit_forward.25} parent=11 // pred_check
        %p198 = pneg %p101
      $region18: #{transition_vit_forward.25} parent=11 // pred_check_branch
        %200 = sbr.rel (%p198) target = $region20
      $region19: #{transition_vit_forward.25} parent=11 // pred_region
        %s201 = smul.u32 2, %s21
        %p202 = scmp.lt.s32.totalorder %s201, 1
        %s203 = scalar_select %p202, %s201, 1
        %s204 = scalar_lea.vmem %s2, %s203
        %s205 = smul.u32 2, %s21
      $region20: #{transition_vit_forward.25} parent=11 // pred_fallthru
        _
      // Predicated region
      $region21: #{transition_vit_forward.25} parent=11 // pred_check
        %p206 = pneg %p127
      $region22: #{transition_vit_forward.25} parent=11 // pred_check_branch
        %208 = sbr.rel (%p206) target = $region24
      $region23: #{transition_vit_forward.25} parent=11 // pred_region
        %s209 = smul.u32 32, %s21
        %p210 = scmp.lt.s32.totalorder %s209, 31
        %s211 = scalar_select %p210, %s209, 31
        %s212 = smul.addr %s211, 8
        %s213 = scalar_lea.vmem %s3, %s212
        %s214 = smul.u32 32, %s21
      $region24: #{transition_vit_forward.25} parent=11 // pred_fallthru
        _
      // Predicated region
      $region25: #{transition_vit_forward.25} parent=11 // pred_check
        %p215 = pneg %p148
      $region26: #{transition_vit_forward.25} parent=11 // pred_check_branch
        %217 = sbr.rel (%p215) target = $region28
      $region27: #{transition_vit_forward.25} parent=11 // pred_region
        _
      $region28: #{transition_vit_forward.25} parent=11 // pred_fallthru
        _
    $region12: #{transition_vit_forward.25} parent=5 // pred_fallthru
      _
    %p218 = scmp.lt.s32.totalorder %s11, 3
    // Predicated region
    $region29: #{transition_vit_forward.25} parent=5 // pred_check
      %p219 = pneg %p218
    $region30: #{transition_vit_forward.25} parent=5 // pred_check_branch
      %221 = sbr.rel (%p219) target = $region32
    $region31: #{transition_vit_forward.25} parent=5 // pred_region
      // Predicated region
      $region33: #{transition_vit_forward.25} parent=31 // pred_check
        %p222 = pneg %p43
      $region34: #{transition_vit_forward.25} parent=31 // pred_check_branch
        %224 = sbr.rel (%p222) target = $region36
      $region35: #{transition_vit_forward.25} parent=31 // pred_region
        %p225 = scmp.lt.s32.totalorder %s18, 2
        %s226 = scalar_select %p225, %s18, 2
        %s227 = smul.addr %s226, 8
        %s228 = scalar_lea.vmem %s0, %s227
      $region36: #{transition_vit_forward.25} parent=31 // pred_fallthru
        _
    $region32: #{transition_vit_forward.25} parent=5 // pred_fallthru
      _
    %p229 = scmp.le.s32.totalorder 1, %s11
    %p230 = scmp.lt.s32.totalorder %s11, 4
    %p231 = pnand %p229, %p230
    %p232 = pneg %p231
    // Predicated region
    $region37: #{transition_vit_forward.25} parent=5 // pred_check
      _
    $region38: #{transition_vit_forward.25} parent=5 // pred_check_branch
      %234 = sbr.rel (%p231) target = $region40
    $region39: #{transition_vit_forward.25} parent=5 // pred_region
      %s235 = ssub.s32 %s11, 1
      %p236 = scmp.lt.s32.totalorder %s20, 2
      %s237 = scalar_select %p236, %s20, 2
      %s238 = smul.addr %s237, 8
      %s239 = scalar_lea.vmem %s0, %s238
      %p240 = pneg %p49
      %p241 = pneg %p46
      %s242 = smul.u32 2, %s21
      %p243 = scmp.lt.s32.totalorder %s242, 1
      %s244 = scalar_select %p243, %s242, 1
      %s245 = smul.addr %s244, 8
      %s246 = scalar_lea.vmem %s1, %s245
      %p247 = pneg %p75
      %p248 = pneg %p72
      %s249 = smul.u32 2, %s21
      %p250 = scmp.lt.s32.totalorder %s249, 1
      %s251 = scalar_select %p250, %s249, 1
      %s252 = scalar_lea.vmem %s2, %s251
      %p253 = pneg %p101
      %p254 = pneg %p98
      %s255 = smul.u32 32, %s21
      %p256 = scmp.lt.s32.totalorder %s255, 31
      %s257 = scalar_select %p256, %s255, 31
      %s258 = smul.addr %s257, 8
      %s259 = scalar_lea.vmem %s3, %s258
      %p260 = pneg %p127
      %p261 = pneg %p124
      %p262 = pneg %p148
      %p263 = pneg %p145
      %p264 = pneg %p174
      %p265 = pneg %p171
      %p266 = scmp.lt.s32.totalorder %s20, 2
      %s267 = scalar_select %p266, %s20, 2
      %s268 = smul.addr %s267, 8
      %s269 = scalar_lea.vmem %s5, %s268
      %p270 = scmp.lt.s32.totalorder %s20, 2
      %s271 = scalar_select %p270, %s20, 2
      %s272 = smul.addr %s271, 8
      %s273 = scalar_lea.vmem %s0, %s272
      %s274 = smul.u32 2, %s21
      %p275 = scmp.lt.s32.totalorder %s274, 1
      %s276 = scalar_select %p275, %s274, 1
      %s277 = smul.addr %s276, 8
      %s278 = scalar_lea.vmem %s1, %s277
      %s279 = smul.u32 2, %s21
      %s280 = smul.u32 2, %s21
      %p281 = scmp.lt.s32.totalorder %s280, 1
      %s282 = scalar_select %p281, %s280, 1
      %s283 = scalar_lea.vmem %s2, %s282
      %s284 = smul.u32 2, %s21
      %s285 = smul.u32 32, %s21
      %p286 = scmp.lt.s32.totalorder %s285, 31
      %s287 = scalar_select %p286, %s285, 31
      %s288 = smul.addr %s287, 8
      %s289 = scalar_lea.vmem %s3, %s288
      %s290 = smul.u32 32, %s21
      %p291 = scmp.lt.s32.totalorder %s20, 2
      %s292 = scalar_select %p291, %s20, 2
      %s293 = smul.addr %s292, 8
      %s294 = scalar_lea.vmem %s5, %s293
      %p296 = scmp.eq.s32.totalorder %s21, 0
      // Predicated region
      $region41: #{transition_vit_forward.25} parent=39 // pred_check
        %p297 = pneg %p296
      $region42: #{transition_vit_forward.25} parent=39 // pred_check_branch
        %299 = sbr.rel (%p297) target = $region44
      $region43: #{transition_vit_forward.25} parent=39 // pred_region
        %300 = vst [vmem:[#allocation2] sm:$0xff] 0.0
      $region44: #{transition_vit_forward.25} parent=39 // pred_fallthru
        _
      %v301 = vld [vmem:[%s273] sm:$0xff]
      %v302 = vpack.c.bf16 %v301, %v301
      %v303 = vld [vmem:[%s278] sm:$0xff]
      %v304 = vld [vmem:[%s278 + $0x8] sm:$0xff]
      %v305 = vld [vmem:[%s278 + $0x10] sm:$0xff]
      %v306 = vld [vmem:[%s278 + $0x18] sm:$0xff]
      %v307 = vld [vmem:[%s278 + $0x20] sm:$0xff]
      %v308 = vld [vmem:[%s278 + $0x28] sm:$0xff]
      %v309 = vld [vmem:[%s278 + $0x30] sm:$0xff]
      %v310 = vld [vmem:[%s278 + $0x38] sm:$0xff]
      %v311 = vld [vmem:[%s278 + $0x40] sm:$0xff]
      %v312 = vld [vmem:[%s278 + $0x48] sm:$0xff]
      %v313 = vld [vmem:[%s278 + $0x50] sm:$0xff]
      %v314 = vld [vmem:[%s278 + $0x58] sm:$0xff]
      %v315 = vld [vmem:[%s278 + $0x60] sm:$0xff]
      %v316 = vld [vmem:[%s278 + $0x68] sm:$0xff]
      %v317 = vld [vmem:[%s278 + $0x70] sm:$0xff]
      %v318 = vld [vmem:[%s278 + $0x78] sm:$0xff]
      %v319 = vld [vmem:[%s278 + $0x80] sm:$0xff]
      %v320 = vld [vmem:[%s278 + $0x88] sm:$0xff]
      %v321 = vld [vmem:[%s278 + $0x90] sm:$0xff]
      %v322 = vld [vmem:[%s278 + $0x98] sm:$0xff]
      %v323 = vld [vmem:[%s278 + $0xa0] sm:$0xff]
      %v324 = vld [vmem:[%s278 + $0xa8] sm:$0xff]
      %v325 = vld [vmem:[%s278 + $0xb0] sm:$0xff]
      %v326 = vld [vmem:[%s278 + $0xb8] sm:$0xff]
      %v327 = vld [vmem:[%s278 + $0xc0] sm:$0xff]
      %v328 = vld [vmem:[%s278 + $0xc8] sm:$0xff]
      %v329 = vld [vmem:[%s278 + $0xd0] sm:$0xff]
      %v330 = vld [vmem:[%s278 + $0xd8] sm:$0xff]
      %v331 = vld [vmem:[%s278 + $0xe0] sm:$0xff]
      %v332 = vld [vmem:[%s278 + $0xe8] sm:$0xff]
      %v333 = vld [vmem:[%s278 + $0xf0] sm:$0xff]
      %v334 = vld [vmem:[%s278 + $0xf8] sm:$0xff]
      %v335 = vpack.c.bf16 %v305, %v303
      %v336 = vpack.c.bf16 %v306, %v304
      %v337 = vpack.c.bf16 %v309, %v307
      %v338 = vpack.c.bf16 %v310, %v308
      %v339 = vpack.c.bf16 %v313, %v311
      %v340 = vpack.c.bf16 %v314, %v312
      %v341 = vpack.c.bf16 %v317, %v315
      %v342 = vpack.c.bf16 %v318, %v316
      %v343 = vpack.c.bf16 %v321, %v319
      %v344 = vpack.c.bf16 %v322, %v320
      %v345 = vpack.c.bf16 %v325, %v323
      %v346 = vpack.c.bf16 %v326, %v324
      %v347 = vpack.c.bf16 %v329, %v327
      %v348 = vpack.c.bf16 %v330, %v328
      %v349 = vpack.c.bf16 %v333, %v331
      %v350 = vpack.c.bf16 %v334, %v332
      %v351 = vld [vmem:[%s283] sm:$0x3]
      %v353 = vlaneseq
      %v354 = vshrl.u32 %v353, 7
      %v355 = vsub.s32 0, %v354
      %v356 = vrot.slane %v351, %v355
      %v357 = vlaneseq
      %v358 = vshrl.u32 %v357, 7
      %v359 = vsub.s32 1, %v358
      %v360 = vrot.slane %v351, %v359
      %363 = vmatprep.subr.bf16.mxu0 %v350
      %364 = vmatpush1.bf16.msra.mxu0 %v349
      %365 = vmatprep.subr.bf16.mxu0 %v348
      %366 = vmatpush1.bf16.msra.mxu0 %v347
      %367 = vmatprep.subr.bf16.mxu0 %v346
      %368 = vmatpush1.bf16.msra.mxu0 %v345
      %369 = vmatprep.subr.bf16.mxu0 %v344
      %370 = vmatpush1.bf16.msra.mxu0 %v343
      %371 = vmatprep.subr.bf16.mxu0 %v342
      %372 = vmatpush1.bf16.msra.mxu0 %v341
      %373 = vmatprep.subr.bf16.mxu0 %v340
      %374 = vmatpush1.bf16.msra.mxu0 %v339
      %375 = vmatprep.subr.bf16.mxu0 %v338
      %376 = vmatpush1.bf16.msra.mxu0 %v337
      %377 = vmatprep.subr.bf16.mxu0 %v336
      %378 = vmatpush1.bf16.msra.mxu0 %v335
      %379 = vmatprep.subr.bf16.mxu0 0
      %380 = vmatpush2.bf16.msra.mxu0 0
      %381 = vmatprep.subr.bf16.mxu0 0
      %382 = vmatpush2.bf16.msra.mxu0 0
      %383 = vmatprep.subr.bf16.mxu0 0
      %384 = vmatpush2.bf16.msra.mxu0 0
      %385 = vmatprep.subr.bf16.mxu0 0
      %386 = vmatpush2.bf16.msra.mxu0 0
      %387 = vmatprep.subr.bf16.mxu0 0
      %388 = vmatpush2.bf16.msra.mxu0 0
      %389 = vmatprep.subr.bf16.mxu0 0
      %390 = vmatpush2.bf16.msra.mxu0 0
      %391 = vmatprep.subr.bf16.mxu0 0
      %392 = vmatpush2.bf16.msra.mxu0 0
      %393 = vmatprep.subr.bf16.mxu0 0
      %394 = vmatpush2.bf16.msra.mxu0 0
      %395 = vmatprep.mubr.bf16.mxu0 0
      %396 = vmatmul.mubr.bf16.gmra.mxu0 %v302
      %v397 = vpop.f32.mrf.mxu0
      %v398 = vadd.f32 %v356, %v397
      %v399 = vpop.f32.mrf.mxu0
      %v400 = vadd.f32 %v360, %v399
      %v401 = vpop.f32.mrf.mxu0
      %v402 = vpop.f32.mrf.mxu0
      %403 = vdwg.mxu0
      %v404 = vmax.f32 %v398, 0.0
      %v405 = vmax.f32 %v400, 0.0
      %v406 = vld [vmem:[#allocation2] sm:$0xff]
      %v407 = vpack.c.bf16 %v404, %v404
      %v408 = vpack.c.bf16 %v405, %v405
      %v409 = vld [vmem:[%s289] sm:$0xff]
      %v410 = vld [vmem:[%s289 + $0x8] sm:$0xff]
      %v411 = vld [vmem:[%s289 + $0x10] sm:$0xff]
      %v412 = vld [vmem:[%s289 + $0x18] sm:$0xff]
      %v413 = vld [vmem:[%s289 + $0x20] sm:$0xff]
      %v414 = vld [vmem:[%s289 + $0x28] sm:$0xff]
      %v415 = vld [vmem:[%s289 + $0x30] sm:$0xff]
      %v416 = vld [vmem:[%s289 + $0x38] sm:$0xff]
      %v417 = vld [vmem:[%s289 + $0x40] sm:$0xff]
      %v418 = vld [vmem:[%s289 + $0x48] sm:$0xff]
      %v419 = vld [vmem:[%s289 + $0x50] sm:$0xff]
      %v420 = vld [vmem:[%s289 + $0x58] sm:$0xff]
      %v421 = vld [vmem:[%s289 + $0x60] sm:$0xff]
      %v422 = vld [vmem:[%s289 + $0x68] sm:$0xff]
      %v423 = vld [vmem:[%s289 + $0x70] sm:$0xff]
      %v424 = vld [vmem:[%s289 + $0x78] sm:$0xff]
      %v425 = vld [vmem:[%s289 + $0x80] sm:$0xff]
      %v426 = vld [vmem:[%s289 + $0x88] sm:$0xff]
      %v427 = vld [vmem:[%s289 + $0x90] sm:$0xff]
      %v428 = vld [vmem:[%s289 + $0x98] sm:$0xff]
      %v429 = vld [vmem:[%s289 + $0xa0] sm:$0xff]
      %v430 = vld [vmem:[%s289 + $0xa8] sm:$0xff]
      %v431 = vld [vmem:[%s289 + $0xb0] sm:$0xff]
      %v432 = vld [vmem:[%s289 + $0xb8] sm:$0xff]
      %v433 = vld [vmem:[%s289 + $0xc0] sm:$0xff]
      %v434 = vld [vmem:[%s289 + $0xc8] sm:$0xff]
      %v435 = vld [vmem:[%s289 + $0xd0] sm:$0xff]
      %v436 = vld [vmem:[%s289 + $0xd8] sm:$0xff]
      %v437 = vld [vmem:[%s289 + $0xe0] sm:$0xff]
      %v438 = vld [vmem:[%s289 + $0xe8] sm:$0xff]
      %v439 = vld [vmem:[%s289 + $0xf0] sm:$0xff]
      %v440 = vld [vmem:[%s289 + $0xf8] sm:$0xff]
      %v441 = vpack.c.bf16 %v410, %v409
      %v442 = vpack.c.bf16 %v412, %v411
      %v443 = vpack.c.bf16 %v414, %v413
      %v444 = vpack.c.bf16 %v416, %v415
      %v445 = vpack.c.bf16 %v418, %v417
      %v446 = vpack.c.bf16 %v420, %v419
      %v447 = vpack.c.bf16 %v422, %v421
      %v448 = vpack.c.bf16 %v424, %v423
      %v449 = vpack.c.bf16 %v426, %v425
      %v450 = vpack.c.bf16 %v428, %v427
      %v451 = vpack.c.bf16 %v430, %v429
      %v452 = vpack.c.bf16 %v432, %v431
      %v453 = vpack.c.bf16 %v434, %v433
      %v454 = vpack.c.bf16 %v436, %v435
      %v455 = vpack.c.bf16 %v438, %v437
      %v456 = vpack.c.bf16 %v440, %v439
      %457 = vmatprep.subr.bf16.mxu0 0
      %458 = vmatpush1.bf16.msra.mxu0 %v448
      %459 = vmatprep.subr.bf16.mxu0 0
      %460 = vmatpush1.bf16.msra.mxu0 %v447
      %461 = vmatprep.subr.bf16.mxu0 0
      %462 = vmatpush1.bf16.msra.mxu0 %v446
      %463 = vmatprep.subr.bf16.mxu0 0
      %464 = vmatpush1.bf16.msra.mxu0 %v445
      %465 = vmatprep.subr.bf16.mxu0 0
      %466 = vmatpush1.bf16.msra.mxu0 %v444
      %467 = vmatprep.subr.bf16.mxu0 0
      %468 = vmatpush1.bf16.msra.mxu0 %v443
      %469 = vmatprep.subr.bf16.mxu0 0
      %470 = vmatpush1.bf16.msra.mxu0 %v442
      %471 = vmatprep.subr.bf16.mxu0 0
      %472 = vmatpush1.bf16.msra.mxu0 %v441
      %473 = vmatprep.subr.bf16.mxu0 0
      %474 = vmatpush2.bf16.msra.mxu0 %v456
      %475 = vmatprep.subr.bf16.mxu0 0
      %476 = vmatpush2.bf16.msra.mxu0 %v455
      %477 = vmatprep.subr.bf16.mxu0 0
      %478 = vmatpush2.bf16.msra.mxu0 %v454
      %479 = vmatprep.subr.bf16.mxu0 0
      %480 = vmatpush2.bf16.msra.mxu0 %v453
      %481 = vmatprep.subr.bf16.mxu0 0
      %482 = vmatpush2.bf16.msra.mxu0 %v452
      %483 = vmatprep.subr.bf16.mxu0 0
      %484 = vmatpush2.bf16.msra.mxu0 %v451
      %485 = vmatprep.subr.bf16.mxu0 0
      %486 = vmatpush2.bf16.msra.mxu0 %v450
      %487 = vmatprep.subr.bf16.mxu0 0
      %488 = vmatpush2.bf16.msra.mxu0 %v449
      %489 = vmatprep.mubr.bf16.mxu0 %v408
      %490 = vmatmul.mubr.bf16.gmra.mxu0 %v407
      %v491 = vpop.f32.mrf.mxu0
      %v492 = vadd.f32 0.0, %v491
      %v493 = vpop.f32.mrf.mxu0
      %v494 = vpop.f32.mrf.mxu0
      %v495 = vpop.f32.mrf.mxu0
      %496 = vdwg.mxu0
      %v497 = vadd.f32 %v406, %v492
      %498 = vst [vmem:[#allocation2] sm:$0xff] %v497
      // Predicated region
      $region45: #{transition_vit_forward.25} parent=39 // pred_check
        %p499 = pneg %p296
      $region46: #{transition_vit_forward.25} parent=39 // pred_check_branch
        %501 = sbr.rel (%p499) target = $region48
      $region47: #{transition_vit_forward.25} parent=39 // pred_region
        %v502 = vld [vmem:[#allocation2] sm:$0xff]
        %v503 = vld [vmem:[%s4] sm:$0x1]
        %v505 = vlaneseq
        %v506 = vshrl.u32 %v505, 7
        %v507 = vsub.s32 0, %v506
        %v508 = vrot.slane %v503, %v507
        %v510 = vadd.f32 %v502, %v508
        %511 = vst [vmem:[%s294] sm:$0xff] %v510
      $region48: #{transition_vit_forward.25} parent=39 // pred_fallthru
        _
      %p512 = scmp.lt.s32.totalorder %s20, 2
      %s513 = scalar_select %p512, %s20, 2
      %s514 = smul.addr %s513, 8
      %s515 = scalar_lea.vmem %s5, %s514
      // Predicated region
      $region49: #{transition_vit_forward.25} parent=39 // pred_check
        %p516 = pneg %p171
      $region50: #{transition_vit_forward.25} parent=39 // pred_check_branch
        %518 = sbr.rel (%p516) target = $region52
      $region51: #{transition_vit_forward.25} parent=39 // pred_region
        _
      $region52: #{transition_vit_forward.25} parent=39 // pred_fallthru
        _
    $region40: #{transition_vit_forward.25} parent=5 // pred_fallthru
      _
    %p519 = scmp.le.s32.totalorder 2, %s11
    // Predicated region
    $region53: #{transition_vit_forward.25} parent=5 // pred_check
      %p520 = pneg %p519
    $region54: #{transition_vit_forward.25} parent=5 // pred_check_branch
      %522 = sbr.rel (%p520) target = $region56
    $region55: #{transition_vit_forward.25} parent=5 // pred_region
      %s523 = ssub.s32 %s11, 2
      // Predicated region
      $region57: #{transition_vit_forward.25} parent=55 // pred_check
        %p524 = pneg %p177
      $region58: #{transition_vit_forward.25} parent=55 // pred_check_branch
        %526 = sbr.rel (%p524) target = $region60
      $region59: #{transition_vit_forward.25} parent=55 // pred_region
        %p527 = scmp.lt.s32.totalorder %s22, 2
        %s528 = scalar_select %p527, %s22, 2
        %s529 = smul.addr %s528, 8
        %s530 = scalar_lea.vmem %s5, %s529
      $region60: #{transition_vit_forward.25} parent=55 // pred_fallthru
        _
    $region56: #{transition_vit_forward.25} parent=5 // pred_fallthru
      _
  $region6: #{transition_vit_forward.25} parent=0 // loop_footer
    %s15 = sadd.s32 1, %s11
  $region7: #{transition_vit_forward.25} parent=0 // loop_footer_branch
    %10 = sbr.rel target = $region3
  $region8: #{transition_vit_forward.25} parent=0 // loop_exit
    _

// kernel: transition_vit_forward.23
$region0: #{transition_vit_forward.23}
  #allocation0 [shape = 'u32[]', space=smem, size = 0x4, offset = 0x4, fixed_abs, tag = 'smem constant byte address 0x4 - core index']
  #allocation1 [shape = 'u32[144,128]{1,0:T(1,128)}', space=vmem, size = 0x12000, scoped, tag = 'internal scratch']
  #allocation2 [shape = 'f32[8,128]{1,0:T(8,128)}', space=vmem, size = 0x1000, scoped, tag = 'scratch operand']
  %s0 = inlined_call_operand.vmem [shape: f32[24,128], index: 0, kind: input, shape index: {}]
  %s1 = inlined_call_operand.vmem [shape: f32[128,128], index: 1, kind: input, shape index: {}]
  %s2 = inlined_call_operand.vmem [shape: f32[1,128], index: 2, kind: input, shape index: {}]
  %s3 = inlined_call_operand.vmem [shape: f32[24,128], index: 3, kind: output, shape index: {}]
  %s4 = sld [smem:[#allocation0]]
  $region53: #{transition_vit_forward.23} parent=0
    _
  %s6 = ssub.s32 1, %s4
  %s7 = scalar_select 0, %s6, %s4
  loop: start=0, step=1, limit=5
  $region2: #{transition_vit_forward.23} parent=0 // loop_pre_header
    _
  $region3: #{transition_vit_forward.23} parent=0 // loop_header
    %s9 = sphi 0, %s13
    %p10 = scmp.ge.s32.totalorder %s9, 5
    %s16 = sphi 0, %s35
    %s17 = sphi 0, %s31
    %s18 = sphi 0, %s27
    %s19 = sphi 0, %s16
    %s20 = sphi 0, %s17
    %s21 = sphi 0, %s18
    %s22 = sphi 0, %s19
    %s23 = sphi 0, %s20
    %s24 = sphi 0, %s21
    %s40 = sphi 0, %s42
    %s43 = sphi 0, %s40
    %s44 = sphi 0, %s43
    %s60 = sphi 0, %s44
    %s68 = sphi 0, %s70
    %s71 = sphi 0, %s68
    %s72 = sphi 0, %s71
    %s88 = sphi 0, %s72
    %s94 = sphi 0, %s96
    %s97 = sphi 0, %s94
    %s98 = sphi 0, %s97
    %s114 = sphi 0, %s98
    %s122 = sphi 0, %s124
    %s125 = sphi 0, %s122
    %s126 = sphi 0, %s125
    %s142 = sphi 0, %s126
  $region4: #{transition_vit_forward.23} parent=0 // loop_header_branch
    %12 = sbr.rel (%p10) target = $region8
  $region5: #{transition_vit_forward.23} parent=0 // loop_body
    %s14 = ssub.s32 %s9, 1
    %s15 = ssub.s32 %s9, 2
    %s25 = sadd.s32 1, %s18
    %p26 = scmp.ge.s32.totalorder %s25, 1
    %s27 = scalar_select %p26, 0, %s25
    %s28 = sadd.s32 1, %s17
    %s29 = scalar_select %p26, %s28, %s17
    %p30 = scmp.ge.s32.totalorder %s29, 1
    %s31 = scalar_select %p30, 0, %s29
    %s32 = sadd.s32 1, %s16
    %s33 = scalar_select %p30, %s32, %s16
    %p34 = scmp.ge.s32.totalorder %s33, 3
    %s35 = scalar_select %p34, 0, %s33
    %s36 = ssub.s32 %s16, %s35
    %s37 = ssub.s32 %s18, %s27
    %s38 = sor.u32 %s36, %s37
    %p39 = scmp.eq.s32.totalorder %s38, 0
    %s41 = sadd.s32 %s40, 1
    %s42 = scalar_select %p39, %s40, %s41
    %p45 = pneg %p39
    %p46 = scmp.eq.s32.totalorder %s9, 2
    %p47 = por %p45, %p46
    %p48 = scmp.ne.s32.totalorder %s40, %s43
    %p49 = scmp.eq.s32.totalorder %s9, 0
    %p50 = por %p48, %p49
    %p51 = scmp.ne.s32.totalorder %s40, %s43
    %p52 = scmp.eq.s32.totalorder %s14, 2
    %p53 = por %p51, %p52
    %p54 = scmp.ne.s32.totalorder %s43, %s44
    %p55 = scmp.eq.s32.totalorder %s14, 0
    %p56 = por %p54, %p55
    %p57 = scmp.ne.s32.totalorder %s43, %s44
    %p58 = scmp.eq.s32.totalorder %s15, 2
    %p59 = por %p57, %p58
    %p61 = scmp.ne.s32.totalorder %s44, %s60
    %p62 = scmp.eq.s32.totalorder %s15, 0
    %p63 = por %p61, %p62
    %s64 = ssub.s32 %s18, %s27
    %s65 = ssub.s32 %s17, %s31
    %s66 = sor.u32 %s64, %s65
    %p67 = scmp.eq.s32.totalorder %s66, 0
    %s69 = sadd.s32 %s68, 1
    %s70 = scalar_select %p67, %s68, %s69
    %p73 = pneg %p67
    %p74 = scmp.eq.s32.totalorder %s9, 2
    %p75 = por %p73, %p74
    %p76 = scmp.ne.s32.totalorder %s68, %s71
    %p77 = scmp.eq.s32.totalorder %s9, 0
    %p78 = por %p76, %p77
    %p79 = scmp.ne.s32.totalorder %s68, %s71
    %p80 = scmp.eq.s32.totalorder %s14, 2
    %p81 = por %p79, %p80
    %p82 = scmp.ne.s32.totalorder %s71, %s72
    %p83 = scmp.eq.s32.totalorder %s14, 0
    %p84 = por %p82, %p83
    %p85 = scmp.ne.s32.totalorder %s71, %s72
    %p86 = scmp.eq.s32.totalorder %s15, 2
    %p87 = por %p85, %p86
    %p89 = scmp.ne.s32.totalorder %s72, %s88
    %p90 = scmp.eq.s32.totalorder %s15, 0
    %p91 = por %p89, %p90
    %s92 = ssub.s32 %s17, %s31
    %p93 = scmp.eq.s32.totalorder %s92, 0
    %s95 = sadd.s32 %s94, 1
    %s96 = scalar_select %p93, %s94, %s95
    %p99 = pneg %p93
    %p100 = scmp.eq.s32.totalorder %s9, 2
    %p101 = por %p99, %p100
    %p102 = scmp.ne.s32.totalorder %s94, %s97
    %p103 = scmp.eq.s32.totalorder %s9, 0
    %p104 = por %p102, %p103
    %p105 = scmp.ne.s32.totalorder %s94, %s97
    %p106 = scmp.eq.s32.totalorder %s14, 2
    %p107 = por %p105, %p106
    %p108 = scmp.ne.s32.totalorder %s97, %s98
    %p109 = scmp.eq.s32.totalorder %s14, 0
    %p110 = por %p108, %p109
    %p111 = scmp.ne.s32.totalorder %s97, %s98
    %p112 = scmp.eq.s32.totalorder %s15, 2
    %p113 = por %p111, %p112
    %p115 = scmp.ne.s32.totalorder %s98, %s114
    %p116 = scmp.eq.s32.totalorder %s15, 0
    %p117 = por %p115, %p116
    %s118 = ssub.s32 %s16, %s35
    %s119 = ssub.s32 %s17, %s31
    %s120 = sor.u32 %s118, %s119
    %p121 = scmp.eq.s32.totalorder %s120, 0
    %s123 = sadd.s32 %s122, 1
    %s124 = scalar_select %p121, %s122, %s123
    %p127 = pneg %p121
    %p128 = scmp.eq.s32.totalorder %s9, 2
    %p129 = por %p127, %p128
    %p130 = scmp.ne.s32.totalorder %s122, %s125
    %p131 = scmp.eq.s32.totalorder %s9, 0
    %p132 = por %p130, %p131
    %p133 = scmp.ne.s32.totalorder %s122, %s125
    %p134 = scmp.eq.s32.totalorder %s14, 2
    %p135 = por %p133, %p134
    %p136 = scmp.ne.s32.totalorder %s125, %s126
    %p137 = scmp.eq.s32.totalorder %s14, 0
    %p138 = por %p136, %p137
    %p139 = scmp.ne.s32.totalorder %s125, %s126
    %p140 = scmp.eq.s32.totalorder %s15, 2
    %p141 = por %p139, %p140
    %p143 = scmp.ne.s32.totalorder %s126, %s142
    %p144 = scmp.eq.s32.totalorder %s15, 0
    %p145 = por %p143, %p144
    %p146 = scmp.le.s32.totalorder 1, %s9
    %p147 = scmp.lt.s32.totalorder %s9, 4
    %p148 = pnand %p146, %p147
    %p149 = pneg %p148
    // Predicated region
    $region9: #{transition_vit_forward.23} parent=5 // pred_check
      _
    $region10: #{transition_vit_forward.23} parent=5 // pred_check_branch
      %151 = sbr.rel (%p148) target = $region12
    $region11: #{transition_vit_forward.23} parent=5 // pred_region
      %s152 = ssub.s32 %s9, 1
      // Predicated region
      $region13: #{transition_vit_forward.23} parent=11 // pred_check
        %p153 = pneg %p84
      $region14: #{transition_vit_forward.23} parent=11 // pred_check_branch
        %155 = sbr.rel (%p153) target = $region16
      $region15: #{transition_vit_forward.23} parent=11 // pred_region
        %s156 = smul.u32 16, %s21
        %p157 = scmp.lt.s32.totalorder %s156, 15
        %s158 = scalar_select %p157, %s156, 15
        %p159 = scmp.lt.s32.totalorder %s20, 0
        %s160 = scalar_select %p159, %s20, 0
        %s161 = sadd.s32 %s160, %s158
        %s162 = smul.addr %s161, 8
        %s163 = scalar_lea.vmem %s1, %s162
        %s164 = smul.u32 16, %s21
      $region16: #{transition_vit_forward.23} parent=11 // pred_fallthru
        _
      // Predicated region
      $region17: #{transition_vit_forward.23} parent=11 // pred_check
        %p165 = pneg %p110
      $region18: #{transition_vit_forward.23} parent=11 // pred_check_branch
        %167 = sbr.rel (%p165) target = $region20
      $region19: #{transition_vit_forward.23} parent=11 // pred_region
        %p168 = scmp.lt.s32.totalorder %s20, 0
        %s169 = scalar_select %p168, %s20, 0
        %s170 = scalar_lea.vmem %s2, %s169
      $region20: #{transition_vit_forward.23} parent=11 // pred_fallthru
        _
    $region12: #{transition_vit_forward.23} parent=5 // pred_fallthru
      _
    %p171 = scmp.lt.s32.totalorder %s9, 3
    // Predicated region
    $region21: #{transition_vit_forward.23} parent=5 // pred_check
      %p172 = pneg %p171
    $region22: #{transition_vit_forward.23} parent=5 // pred_check_branch
      %174 = sbr.rel (%p172) target = $region24
    $region23: #{transition_vit_forward.23} parent=5 // pred_region
      // Predicated region
      $region25: #{transition_vit_forward.23} parent=23 // pred_check
        %p175 = pneg %p50
      $region26: #{transition_vit_forward.23} parent=23 // pred_check_branch
        %177 = sbr.rel (%p175) target = $region28
      $region27: #{transition_vit_forward.23} parent=23 // pred_region
        %p178 = scmp.lt.s32.totalorder %s16, 2
        %s179 = scalar_select %p178, %s16, 2
        %p180 = scmp.lt.s32.totalorder %s18, 0
        %s181 = scalar_select %p180, %s18, 0
        %s182 = sadd.s32 %s181, %s179
        %s183 = smul.addr %s182, 8
        %s184 = scalar_lea.vmem %s0, %s183
      $region28: #{transition_vit_forward.23} parent=23 // pred_fallthru
        _
    $region24: #{transition_vit_forward.23} parent=5 // pred_fallthru
      _
    %p185 = scmp.le.s32.totalorder 1, %s9
    %p186 = scmp.lt.s32.totalorder %s9, 4
    %p187 = pnand %p185, %p186
    %p188 = pneg %p187
    // Predicated region
    $region29: #{transition_vit_forward.23} parent=5 // pred_check
      _
    $region30: #{transition_vit_forward.23} parent=5 // pred_check_branch
      %190 = sbr.rel (%p187) target = $region32
    $region31: #{transition_vit_forward.23} parent=5 // pred_region
      %s191 = ssub.s32 %s9, 1
      %p192 = scmp.lt.s32.totalorder %s19, 2
      %s193 = scalar_select %p192, %s19, 2
      %p194 = scmp.lt.s32.totalorder %s21, 0
      %s195 = scalar_select %p194, %s21, 0
      %s196 = sadd.s32 %s195, %s193
      %s197 = smul.addr %s196, 8
      %s198 = scalar_lea.vmem %s0, %s197
      %p199 = pneg %p56
      %p200 = pneg %p53
      %s201 = smul.u32 16, %s21
      %p202 = scmp.lt.s32.totalorder %s201, 15
      %s203 = scalar_select %p202, %s201, 15
      %p204 = scmp.lt.s32.totalorder %s20, 0
      %s205 = scalar_select %p204, %s20, 0
      %s206 = sadd.s32 %s205, %s203
      %s207 = smul.addr %s206, 8
      %s208 = scalar_lea.vmem %s1, %s207
      %p209 = pneg %p84
      %p210 = pneg %p81
      %p211 = scmp.lt.s32.totalorder %s20, 0
      %s212 = scalar_select %p211, %s20, 0
      %s213 = scalar_lea.vmem %s2, %s212
      %p214 = pneg %p110
      %p215 = pneg %p107
      %p216 = pneg %p138
      %p217 = pneg %p135
      %p218 = scmp.lt.s32.totalorder %s19, 2
      %s219 = scalar_select %p218, %s19, 2
      %p220 = scmp.lt.s32.totalorder %s20, 0
      %s221 = scalar_select %p220, %s20, 0
      %s222 = sadd.s32 %s221, %s219
      %s223 = smul.addr %s222, 8
      %s224 = scalar_lea.vmem %s3, %s223
      %p225 = scmp.lt.s32.totalorder %s19, 2
      %s226 = scalar_select %p225, %s19, 2
      %p227 = scmp.lt.s32.totalorder %s21, 0
      %s228 = scalar_select %p227, %s21, 0
      %s229 = sadd.s32 %s228, %s226
      %s230 = smul.addr %s229, 8
      %s231 = scalar_lea.vmem %s0, %s230
      %s232 = smul.u32 16, %s21
      %p233 = scmp.lt.s32.totalorder %s232, 15
      %s234 = scalar_select %p233, %s232, 15
      %p235 = scmp.lt.s32.totalorder %s20, 0
      %s236 = scalar_select %p235, %s20, 0
      %s237 = sadd.s32 %s236, %s234
      %s238 = smul.addr %s237, 8
      %s239 = scalar_lea.vmem %s1, %s238
      %s240 = smul.u32 16, %s21
      %p241 = scmp.lt.s32.totalorder %s20, 0
      %s242 = scalar_select %p241, %s20, 0
      %s243 = scalar_lea.vmem %s2, %s242
      %p244 = scmp.lt.s32.totalorder %s19, 2
      %s245 = scalar_select %p244, %s19, 2
      %p246 = scmp.lt.s32.totalorder %s20, 0
      %s247 = scalar_select %p246, %s20, 0
      %s248 = sadd.s32 %s247, %s245
      %s249 = smul.addr %s248, 8
      %s250 = scalar_lea.vmem %s3, %s249
      %p252 = scmp.eq.s32.totalorder %s21, 0
      // Predicated region
      $region33: #{transition_vit_forward.23} parent=31 // pred_check
        %p253 = pneg %p252
      $region34: #{transition_vit_forward.23} parent=31 // pred_check_branch
        %255 = sbr.rel (%p253) target = $region36
      $region35: #{transition_vit_forward.23} parent=31 // pred_region
        %256 = vst [vmem:[#allocation2] sm:$0xff] 0.0
      $region36: #{transition_vit_forward.23} parent=31 // pred_fallthru
        _
      %v257 = vld [vmem:[#allocation2] sm:$0xff]
      %v258 = vld [vmem:[%s231] sm:$0xff]
      %v259 = vpack.c.bf16 %v258, %v258
      %v260 = vld [vmem:[%s239] sm:$0xff]
      %v261 = vld [vmem:[%s239 + $0x8] sm:$0xff]
      %v262 = vld [vmem:[%s239 + $0x10] sm:$0xff]
      %v263 = vld [vmem:[%s239 + $0x18] sm:$0xff]
      %v264 = vld [vmem:[%s239 + $0x20] sm:$0xff]
      %v265 = vld [vmem:[%s239 + $0x28] sm:$0xff]
      %v266 = vld [vmem:[%s239 + $0x30] sm:$0xff]
      %v267 = vld [vmem:[%s239 + $0x38] sm:$0xff]
      %v268 = vld [vmem:[%s239 + $0x40] sm:$0xff]
      %v269 = vld [vmem:[%s239 + $0x48] sm:$0xff]
      %v270 = vld [vmem:[%s239 + $0x50] sm:$0xff]
      %v271 = vld [vmem:[%s239 + $0x58] sm:$0xff]
      %v272 = vld [vmem:[%s239 + $0x60] sm:$0xff]
      %v273 = vld [vmem:[%s239 + $0x68] sm:$0xff]
      %v274 = vld [vmem:[%s239 + $0x70] sm:$0xff]
      %v275 = vld [vmem:[%s239 + $0x78] sm:$0xff]
      %v276 = vpack.c.bf16 %v261, %v260
      %v277 = vpack.c.bf16 %v263, %v262
      %v278 = vpack.c.bf16 %v265, %v264
      %v279 = vpack.c.bf16 %v267, %v266
      %v280 = vpack.c.bf16 %v269, %v268
      %v281 = vpack.c.bf16 %v271, %v270
      %v282 = vpack.c.bf16 %v273, %v272
      %v283 = vpack.c.bf16 %v275, %v274
      %284 = vmatprep.subr.bf16.mxu0 0
      %285 = vmatpush1.bf16.msra.mxu0 %v283
      %286 = vmatprep.subr.bf16.mxu0 0
      %287 = vmatpush1.bf16.msra.mxu0 %v282
      %288 = vmatprep.subr.bf16.mxu0 0
      %289 = vmatpush1.bf16.msra.mxu0 %v281
      %290 = vmatprep.subr.bf16.mxu0 0
      %291 = vmatpush1.bf16.msra.mxu0 %v280
      %292 = vmatprep.subr.bf16.mxu0 0
      %293 = vmatpush1.bf16.msra.mxu0 %v279
      %294 = vmatprep.subr.bf16.mxu0 0
      %295 = vmatpush1.bf16.msra.mxu0 %v278
      %296 = vmatprep.subr.bf16.mxu0 0
      %297 = vmatpush1.bf16.msra.mxu0 %v277
      %298 = vmatprep.subr.bf16.mxu0 0
      %299 = vmatpush1.bf16.msra.mxu0 %v276
      %300 = vmatprep.subr.bf16.mxu0 0
      %301 = vmatpush2.bf16.msra.mxu0 0
      %302 = vmatprep.subr.bf16.mxu0 0
      %303 = vmatpush2.bf16.msra.mxu0 0
      %304 = vmatprep.subr.bf16.mxu0 0
      %305 = vmatpush2.bf16.msra.mxu0 0
      %306 = vmatprep.subr.bf16.mxu0 0
      %307 = vmatpush2.bf16.msra.mxu0 0
      %308 = vmatprep.subr.bf16.mxu0 0
      %309 = vmatpush2.bf16.msra.mxu0 0
      %310 = vmatprep.subr.bf16.mxu0 0
      %311 = vmatpush2.bf16.msra.mxu0 0
      %312 = vmatprep.subr.bf16.mxu0 0
      %313 = vmatpush2.bf16.msra.mxu0 0
      %314 = vmatprep.subr.bf16.mxu0 0
      %315 = vmatpush2.bf16.msra.mxu0 0
      %316 = vmatprep.mubr.bf16.mxu0 0
      %317 = vmatmul.mubr.bf16.gmra.mxu0 %v259
      %v318 = vpop.f32.mrf.mxu0
      %v319 = vadd.f32 0.0, %v318
      %v320 = vpop.f32.mrf.mxu0
      %v321 = vpop.f32.mrf.mxu0
      %v322 = vpop.f32.mrf.mxu0
      %323 = vdwg.mxu0
      %v324 = vadd.f32 %v257, %v319
      %325 = vst [vmem:[#allocation2] sm:$0xff] %v324
      // Predicated region
      $region37: #{transition_vit_forward.23} parent=31 // pred_check
        %p326 = pneg %p252
      $region38: #{transition_vit_forward.23} parent=31 // pred_check_branch
        %328 = sbr.rel (%p326) target = $region40
      $region39: #{transition_vit_forward.23} parent=31 // pred_region
        %v329 = vld [vmem:[#allocation2] sm:$0xff]
        %v330 = vld [vmem:[%s243] sm:$0x1]
        %v332 = vlaneseq
        %v333 = vshrl.u32 %v332, 7
        %v334 = vsub.s32 0, %v333
        %v335 = vrot.slane %v330, %v334
        %v337 = vadd.f32 %v329, %v335
        %338 = vst [vmem:[%s250] sm:$0xff] %v337
      $region40: #{transition_vit_forward.23} parent=31 // pred_fallthru
        _
      %p339 = scmp.lt.s32.totalorder %s19, 2
      %s340 = scalar_select %p339, %s19, 2
      %p341 = scmp.lt.s32.totalorder %s20, 0
      %s342 = scalar_select %p341, %s20, 0
      %s343 = sadd.s32 %s342, %s340
      %s344 = smul.addr %s343, 8
      %s345 = scalar_lea.vmem %s3, %s344
      // Predicated region
      $region41: #{transition_vit_forward.23} parent=31 // pred_check
        %p346 = pneg %p135
      $region42: #{transition_vit_forward.23} parent=31 // pred_check_branch
        %348 = sbr.rel (%p346) target = $region44
      $region43: #{transition_vit_forward.23} parent=31 // pred_region
        _
      $region44: #{transition_vit_forward.23} parent=31 // pred_fallthru
        _
    $region32: #{transition_vit_forward.23} parent=5 // pred_fallthru
      _
    %p349 = scmp.le.s32.totalorder 2, %s9
    // Predicated region
    $region45: #{transition_vit_forward.23} parent=5 // pred_check
      %p350 = pneg %p349
    $region46: #{transition_vit_forward.23} parent=5 // pred_check_branch
      %352 = sbr.rel (%p350) target = $region48
    $region47: #{transition_vit_forward.23} parent=5 // pred_region
      %s353 = ssub.s32 %s9, 2
      // Predicated region
      $region49: #{transition_vit_forward.23} parent=47 // pred_check
        %p354 = pneg %p141
      $region50: #{transition_vit_forward.23} parent=47 // pred_check_branch
        %356 = sbr.rel (%p354) target = $region52
      $region51: #{transition_vit_forward.23} parent=47 // pred_region
        %p357 = scmp.lt.s32.totalorder %s22, 2
        %s358 = scalar_select %p357, %s22, 2
        %p359 = scmp.lt.s32.totalorder %s23, 0
        %s360 = scalar_select %p359, %s23, 0
        %s361 = sadd.s32 %s360, %s358
        %s362 = smul.addr %s361, 8
        %s363 = scalar_lea.vmem %s3, %s362
      $region52: #{transition_vit_forward.23} parent=47 // pred_fallthru
        _
    $region48: #{transition_vit_forward.23} parent=5 // pred_fallthru
      _
  $region6: #{transition_vit_forward.23} parent=0 // loop_footer
    %s13 = sadd.s32 1, %s9
  $region7: #{transition_vit_forward.23} parent=0 // loop_footer_branch
    %8 = sbr.rel target = $region3
  $region8: #{transition_vit_forward.23} parent=0 // loop_exit
    _

// kernel: transition_vit_forward.22
$region0: #{transition_vit_forward.22}
  #allocation0 [shape = 'u32[]', space=smem, size = 0x4, offset = 0x4, fixed_abs, tag = 'smem constant byte address 0x4 - core index']
  #allocation1 [shape = 'u32[144,128]{1,0:T(1,128)}', space=vmem, size = 0x12000, scoped, tag = 'internal scratch']
  %s0 = inlined_call_operand.vmem [shape: f32[16,12,16], index: 0, kind: input, shape index: {}]
  %s1 = inlined_call_operand.vmem [shape: f32[16,12,16], index: 1, kind: input, shape index: {}]
  %s2 = inlined_call_operand.vmem [shape: f32[16,12,16], index: 2, kind: input, shape index: {}]
  %s3 = inlined_call_operand.vmem [shape: f32[16,12,16], index: 3, kind: output, shape index: {}]
  %s4 = sld [smem:[#allocation0]]
  $region45: #{transition_vit_forward.22} parent=0
    _
  %s6 = ssub.s32 1, %s4
  %s7 = scalar_select 0, %s6, %s4
  loop: start=0, step=1, limit=4
  $region2: #{transition_vit_forward.22} parent=0 // loop_pre_header
    _
  $region3: #{transition_vit_forward.22} parent=0 // loop_header
    %s9 = sphi 0, %s13
    %p10 = scmp.ge.s32.totalorder %s9, 4
    %s19 = sphi 0, %s21
    %s22 = sphi 0, %s19
    %s23 = sphi 0, %s22
    %s39 = sphi 0, %s23
    %s45 = sphi 0, %s47
    %s48 = sphi 0, %s45
    %s49 = sphi 0, %s48
    %s65 = sphi 0, %s49
    %s71 = sphi 0, %s73
    %s74 = sphi 0, %s71
    %s75 = sphi 0, %s74
    %s91 = sphi 0, %s75
    %s97 = sphi 0, %s99
    %s100 = sphi 0, %s97
    %s101 = sphi 0, %s100
    %s117 = sphi 0, %s101
  $region4: #{transition_vit_forward.22} parent=0 // loop_header_branch
    %12 = sbr.rel (%p10) target = $region8
  $region5: #{transition_vit_forward.22} parent=0 // loop_body
    %s14 = ssub.s32 %s9, 1
    %s15 = ssub.s32 %s9, 2
    %s16 = sadd.s32 %s9, 1
    %s17 = ssub.s32 %s9, %s16
    %p18 = scmp.eq.s32.totalorder %s17, 0
    %s20 = sadd.s32 %s19, 1
    %s21 = scalar_select %p18, %s19, %s20
    %p24 = pneg %p18
    %p25 = scmp.eq.s32.totalorder %s9, 1
    %p26 = por %p24, %p25
    %p27 = scmp.ne.s32.totalorder %s19, %s22
    %p28 = scmp.eq.s32.totalorder %s9, 0
    %p29 = por %p27, %p28
    %p30 = scmp.ne.s32.totalorder %s19, %s22
    %p31 = scmp.eq.s32.totalorder %s14, 1
    %p32 = por %p30, %p31
    %p33 = scmp.ne.s32.totalorder %s22, %s23
    %p34 = scmp.eq.s32.totalorder %s14, 0
    %p35 = por %p33, %p34
    %p36 = scmp.ne.s32.totalorder %s22, %s23
    %p37 = scmp.eq.s32.totalorder %s15, 1
    %p38 = por %p36, %p37
    %p40 = scmp.ne.s32.totalorder %s23, %s39
    %p41 = scmp.eq.s32.totalorder %s15, 0
    %p42 = por %p40, %p41
    %s43 = ssub.s32 %s9, %s16
    %p44 = scmp.eq.s32.totalorder %s43, 0
    %s46 = sadd.s32 %s45, 1
    %s47 = scalar_select %p44, %s45, %s46
    %p50 = pneg %p44
    %p51 = scmp.eq.s32.totalorder %s9, 1
    %p52 = por %p50, %p51
    %p53 = scmp.ne.s32.totalorder %s45, %s48
    %p54 = scmp.eq.s32.totalorder %s9, 0
    %p55 = por %p53, %p54
    %p56 = scmp.ne.s32.totalorder %s45, %s48
    %p57 = scmp.eq.s32.totalorder %s14, 1
    %p58 = por %p56, %p57
    %p59 = scmp.ne.s32.totalorder %s48, %s49
    %p60 = scmp.eq.s32.totalorder %s14, 0
    %p61 = por %p59, %p60
    %p62 = scmp.ne.s32.totalorder %s48, %s49
    %p63 = scmp.eq.s32.totalorder %s15, 1
    %p64 = por %p62, %p63
    %p66 = scmp.ne.s32.totalorder %s49, %s65
    %p67 = scmp.eq.s32.totalorder %s15, 0
    %p68 = por %p66, %p67
    %s69 = ssub.s32 %s9, %s16
    %p70 = scmp.eq.s32.totalorder %s69, 0
    %s72 = sadd.s32 %s71, 1
    %s73 = scalar_select %p70, %s71, %s72
    %p76 = pneg %p70
    %p77 = scmp.eq.s32.totalorder %s9, 1
    %p78 = por %p76, %p77
    %p79 = scmp.ne.s32.totalorder %s71, %s74
    %p80 = scmp.eq.s32.totalorder %s9, 0
    %p81 = por %p79, %p80
    %p82 = scmp.ne.s32.totalorder %s71, %s74
    %p83 = scmp.eq.s32.totalorder %s14, 1
    %p84 = por %p82, %p83
    %p85 = scmp.ne.s32.totalorder %s74, %s75
    %p86 = scmp.eq.s32.totalorder %s14, 0
    %p87 = por %p85, %p86
    %p88 = scmp.ne.s32.totalorder %s74, %s75
    %p89 = scmp.eq.s32.totalorder %s15, 1
    %p90 = por %p88, %p89
    %p92 = scmp.ne.s32.totalorder %s75, %s91
    %p93 = scmp.eq.s32.totalorder %s15, 0
    %p94 = por %p92, %p93
    %s95 = ssub.s32 %s9, %s16
    %p96 = scmp.eq.s32.totalorder %s95, 0
    %s98 = sadd.s32 %s97, 1
    %s99 = scalar_select %p96, %s97, %s98
    %p102 = pneg %p96
    %p103 = scmp.eq.s32.totalorder %s9, 1
    %p104 = por %p102, %p103
    %p105 = scmp.ne.s32.totalorder %s97, %s100
    %p106 = scmp.eq.s32.totalorder %s9, 0
    %p107 = por %p105, %p106
    %p108 = scmp.ne.s32.totalorder %s97, %s100
    %p109 = scmp.eq.s32.totalorder %s14, 1
    %p110 = por %p108, %p109
    %p111 = scmp.ne.s32.totalorder %s100, %s101
    %p112 = scmp.eq.s32.totalorder %s14, 0
    %p113 = por %p111, %p112
    %p114 = scmp.ne.s32.totalorder %s100, %s101
    %p115 = scmp.eq.s32.totalorder %s15, 1
    %p116 = por %p114, %p115
    %p118 = scmp.ne.s32.totalorder %s101, %s117
    %p119 = scmp.eq.s32.totalorder %s15, 0
    %p120 = por %p118, %p119
    %p121 = scmp.le.s32.totalorder 1, %s9
    %p122 = scmp.lt.s32.totalorder %s9, 3
    %p123 = pnand %p121, %p122
    %p124 = pneg %p123
    // Predicated region
    $region9: #{transition_vit_forward.22} parent=5 // pred_check
      _
    $region10: #{transition_vit_forward.22} parent=5 // pred_check_branch
      %126 = sbr.rel (%p123) target = $region12
    $region11: #{transition_vit_forward.22} parent=5 // pred_region
      %s127 = ssub.s32 %s9, 1
    $region12: #{transition_vit_forward.22} parent=5 // pred_fallthru
      _
    %p128 = scmp.lt.s32.totalorder %s9, 2
    // Predicated region
    $region13: #{transition_vit_forward.22} parent=5 // pred_check
      %p129 = pneg %p128
    $region14: #{transition_vit_forward.22} parent=5 // pred_check_branch
      %131 = sbr.rel (%p129) target = $region16
    $region15: #{transition_vit_forward.22} parent=5 // pred_region
      // Predicated region
      $region17: #{transition_vit_forward.22} parent=15 // pred_check
        %p132 = pneg %p29
      $region18: #{transition_vit_forward.22} parent=15 // pred_check_branch
        %134 = sbr.rel (%p132) target = $region20
      $region19: #{transition_vit_forward.22} parent=15 // pred_region
        %s135 = smul.u32 8, %s9
        %p136 = scmp.lt.s32.totalorder %s135, 15
        %s137 = scalar_select %p136, %s135, 15
        %s138 = smul.addr %s137, 2
        %s139 = smul.addr %s138, 8
        %s140 = scalar_lea.vmem %s0, %s139
        %s141 = smul.u32 8, %s9
      $region20: #{transition_vit_forward.22} parent=15 // pred_fallthru
        _
      // Predicated region
      $region21: #{transition_vit_forward.22} parent=15 // pred_check
        %p142 = pneg %p55
      $region22: #{transition_vit_forward.22} parent=15 // pred_check_branch
        %144 = sbr.rel (%p142) target = $region24
      $region23: #{transition_vit_forward.22} parent=15 // pred_region
        %s145 = smul.u32 8, %s9
        %p146 = scmp.lt.s32.totalorder %s145, 15
        %s147 = scalar_select %p146, %s145, 15
        %s148 = smul.addr %s147, 2
        %s149 = smul.addr %s148, 8
        %s150 = scalar_lea.vmem %s1, %s149
        %s151 = smul.u32 8, %s9
      $region24: #{transition_vit_forward.22} parent=15 // pred_fallthru
        _
      // Predicated region
      $region25: #{transition_vit_forward.22} parent=15 // pred_check
        %p152 = pneg %p81
      $region26: #{transition_vit_forward.22} parent=15 // pred_check_branch
        %154 = sbr.rel (%p152) target = $region28
      $region27: #{transition_vit_forward.22} parent=15 // pred_region
        %s155 = smul.u32 8, %s9
        %p156 = scmp.lt.s32.totalorder %s155, 15
        %s157 = scalar_select %p156, %s155, 15
        %s158 = smul.addr %s157, 2
        %s159 = smul.addr %s158, 8
        %s160 = scalar_lea.vmem %s2, %s159
        %s161 = smul.u32 8, %s9
      $region28: #{transition_vit_forward.22} parent=15 // pred_fallthru
        _
    $region16: #{transition_vit_forward.22} parent=5 // pred_fallthru
      _
    %p162 = scmp.le.s32.totalorder 1, %s9
    %p163 = scmp.lt.s32.totalorder %s9, 3
    %p164 = pnand %p162, %p163
    %p165 = pneg %p164
    // Predicated region
    $region29: #{transition_vit_forward.22} parent=5 // pred_check
      _
    $region30: #{transition_vit_forward.22} parent=5 // pred_check_branch
      %167 = sbr.rel (%p164) target = $region32
    $region31: #{transition_vit_forward.22} parent=5 // pred_region
      %s168 = ssub.s32 %s9, 1
      %s169 = smul.u32 8, %s14
      %p170 = scmp.lt.s32.totalorder %s169, 15
      %s171 = scalar_select %p170, %s169, 15
      %s172 = smul.addr %s171, 2
      %s173 = smul.addr %s172, 8
      %s174 = scalar_lea.vmem %s0, %s173
      %p175 = pneg %p35
      %p176 = pneg %p32
      %s177 = smul.u32 8, %s14
      %p178 = scmp.lt.s32.totalorder %s177, 15
      %s179 = scalar_select %p178, %s177, 15
      %s180 = smul.addr %s179, 2
      %s181 = smul.addr %s180, 8
      %s182 = scalar_lea.vmem %s1, %s181
      %p183 = pneg %p61
      %p184 = pneg %p58
      %s185 = smul.u32 8, %s14
      %p186 = scmp.lt.s32.totalorder %s185, 15
      %s187 = scalar_select %p186, %s185, 15
      %s188 = smul.addr %s187, 2
      %s189 = smul.addr %s188, 8
      %s190 = scalar_lea.vmem %s2, %s189
      %p191 = pneg %p87
      %p192 = pneg %p84
      %p193 = pneg %p113
      %p194 = pneg %p110
      %s195 = smul.u32 8, %s14
      %p196 = scmp.lt.s32.totalorder %s195, 15
      %s197 = scalar_select %p196, %s195, 15
      %s198 = smul.addr %s197, 2
      %s199 = smul.addr %s198, 8
      %s200 = scalar_lea.vmem %s3, %s199
      %s201 = smul.u32 8, %s14
      %p202 = scmp.lt.s32.totalorder %s201, 15
      %s203 = scalar_select %p202, %s201, 15
      %s204 = smul.addr %s203, 2
      %s205 = smul.addr %s204, 8
      %s206 = scalar_lea.vmem %s0, %s205
      %s207 = smul.u32 8, %s14
      %s208 = smul.u32 8, %s14
      %p209 = scmp.lt.s32.totalorder %s208, 15
      %s210 = scalar_select %p209, %s208, 15
      %s211 = smul.addr %s210, 2
      %s212 = smul.addr %s211, 8
      %s213 = scalar_lea.vmem %s1, %s212
      %s214 = smul.u32 8, %s14
      %s215 = smul.u32 8, %s14
      %p216 = scmp.lt.s32.totalorder %s215, 15
      %s217 = scalar_select %p216, %s215, 15
      %s218 = smul.addr %s217, 2
      %s219 = smul.addr %s218, 8
      %s220 = scalar_lea.vmem %s2, %s219
      %s221 = smul.u32 8, %s14
      %s222 = smul.u32 8, %s14
      %p223 = scmp.lt.s32.totalorder %s222, 15
      %s224 = scalar_select %p223, %s222, 15
      %s225 = smul.addr %s224, 2
      %s226 = smul.addr %s225, 8
      %s227 = scalar_lea.vmem %s3, %s226
      %s228 = smul.u32 8, %s14
      %v230 = vld [vmem:[%s206] sm:$0xff]
      %v231 = vld [vmem:[%s206 + $0x8] sm:$0xf]
      %v232 = vld [vmem:[%s206 + $0x10] sm:$0xff]
      %v233 = vld [vmem:[%s206 + $0x18] sm:$0xf]
      %v234 = vld [vmem:[%s206 + $0x20] sm:$0xff]
      %v235 = vld [vmem:[%s206 + $0x28] sm:$0xf]
      %v236 = vld [vmem:[%s206 + $0x30] sm:$0xff]
      %v237 = vld [vmem:[%s206 + $0x38] sm:$0xf]
      %v238 = vld [vmem:[%s206 + $0x40] sm:$0xff]
      %v239 = vld [vmem:[%s206 + $0x48] sm:$0xf]
      %v240 = vld [vmem:[%s206 + $0x50] sm:$0xff]
      %v241 = vld [vmem:[%s206 + $0x58] sm:$0xf]
      %v242 = vld [vmem:[%s206 + $0x60] sm:$0xff]
      %v243 = vld [vmem:[%s206 + $0x68] sm:$0xf]
      %v244 = vld [vmem:[%s206 + $0x70] sm:$0xff]
      %v245 = vld [vmem:[%s206 + $0x78] sm:$0xf]
      %v246 = vmul.f32 %v230, 0.25
      %v247 = vmul.f32 %v231, 0.25
      %v248 = vmul.f32 %v232, 0.25
      %v249 = vmul.f32 %v233, 0.25
      %v250 = vmul.f32 %v234, 0.25
      %v251 = vmul.f32 %v235, 0.25
      %v252 = vmul.f32 %v236, 0.25
      %v253 = vmul.f32 %v237, 0.25
      %v254 = vmul.f32 %v238, 0.25
      %v255 = vmul.f32 %v239, 0.25
      %v256 = vmul.f32 %v240, 0.25
      %v257 = vmul.f32 %v241, 0.25
      %v258 = vmul.f32 %v242, 0.25
      %v259 = vmul.f32 %v243, 0.25
      %v260 = vmul.f32 %v244, 0.25
      %v261 = vmul.f32 %v245, 0.25
      %v262 = vpack.c.bf16 %v247, %v246
      %v263 = vpack.c.bf16 %v249, %v248
      %v264 = vpack.c.bf16 %v251, %v250
      %v265 = vpack.c.bf16 %v253, %v252
      %v266 = vpack.c.bf16 %v255, %v254
      %v267 = vpack.c.bf16 %v257, %v256
      %v268 = vpack.c.bf16 %v259, %v258
      %v269 = vpack.c.bf16 %v261, %v260
      %v270 = vld [vmem:[%s213] sm:$0xff]
      %v271 = vld [vmem:[%s213 + $0x8] sm:$0xf]
      %v272 = vld [vmem:[%s213 + $0x10] sm:$0xff]
      %v273 = vld [vmem:[%s213 + $0x18] sm:$0xf]
      %v274 = vld [vmem:[%s213 + $0x20] sm:$0xff]
      %v275 = vld [vmem:[%s213 + $0x28] sm:$0xf]
      %v276 = vld [vmem:[%s213 + $0x30] sm:$0xff]
      %v277 = vld [vmem:[%s213 + $0x38] sm:$0xf]
      %v278 = vld [vmem:[%s213 + $0x40] sm:$0xff]
      %v279 = vld [vmem:[%s213 + $0x48] sm:$0xf]
      %v280 = vld [vmem:[%s213 + $0x50] sm:$0xff]
      %v281 = vld [vmem:[%s213 + $0x58] sm:$0xf]
      %v282 = vld [vmem:[%s213 + $0x60] sm:$0xff]
      %v283 = vld [vmem:[%s213 + $0x68] sm:$0xf]
      %v284 = vld [vmem:[%s213 + $0x70] sm:$0xff]
      %v285 = vld [vmem:[%s213 + $0x78] sm:$0xf]
      %v286 = vpack.c.bf16 %v271, %v270
      %v287 = vpack.c.bf16 %v273, %v272
      %v288 = vpack.c.bf16 %v275, %v274
      %v289 = vpack.c.bf16 %v277, %v276
      %v290 = vpack.c.bf16 %v279, %v278
      %v291 = vpack.c.bf16 %v281, %v280
      %v292 = vpack.c.bf16 %v283, %v282
      %v293 = vpack.c.bf16 %v285, %v284
      %v294 = vld [vmem:[%s220] sm:$0xff]
      %v295 = vld [vmem:[%s220 + $0x8] sm:$0xf]
      %v296 = vld [vmem:[%s220 + $0x10] sm:$0xff]
      %v297 = vld [vmem:[%s220 + $0x18] sm:$0xf]
      %v298 = vld [vmem:[%s220 + $0x20] sm:$0xff]
      %v299 = vld [vmem:[%s220 + $0x28] sm:$0xf]
      %v300 = vld [vmem:[%s220 + $0x30] sm:$0xff]
      %v301 = vld [vmem:[%s220 + $0x38] sm:$0xf]
      %v302 = vld [vmem:[%s220 + $0x40] sm:$0xff]
      %v303 = vld [vmem:[%s220 + $0x48] sm:$0xf]
      %v304 = vld [vmem:[%s220 + $0x50] sm:$0xff]
      %v305 = vld [vmem:[%s220 + $0x58] sm:$0xf]
      %v306 = vld [vmem:[%s220 + $0x60] sm:$0xff]
      %v307 = vld [vmem:[%s220 + $0x68] sm:$0xf]
      %v308 = vld [vmem:[%s220 + $0x70] sm:$0xff]
      %v309 = vld [vmem:[%s220 + $0x78] sm:$0xf]
      %v310 = vpack.c.bf16 %v295, %v294
      %v311 = vpack.c.bf16 %v297, %v296
      %v312 = vpack.c.bf16 %v299, %v298
      %v313 = vpack.c.bf16 %v301, %v300
      %v314 = vpack.c.bf16 %v303, %v302
      %v315 = vpack.c.bf16 %v305, %v304
      %v316 = vpack.c.bf16 %v307, %v306
      %v317 = vpack.c.bf16 %v309, %v308
      %vm318 = vcmask 130048
      %v320 = vsel %vm318, %v262, 0
      %v323 = vsel %vm318, %v286, 0
      %325 = vmatprep.subr.bf16.mxu0 0
      %326 = vmatpush1.bf16.xpose.msra.mxu0 0
      %327 = vmatprep.subr.bf16.mxu0 0
      %328 = vmatpush1.bf16.xpose.msra.mxu0 0
      %329 = vmatprep.subr.bf16.mxu0 0
      %330 = vmatpush1.bf16.xpose.msra.mxu0 0
      %331 = vmatprep.subr.bf16.mxu0 0
      %332 = vmatpush1.bf16.xpose.msra.mxu0 0
      %333 = vmatprep.subr.bf16.mxu0 0
      %334 = vmatpush1.bf16.xpose.msra.mxu0 0
      %335 = vmatprep.subr.bf16.mxu0 0
      %336 = vmatpush1.bf16.xpose.msra.mxu0 0
      %337 = vmatprep.subr.bf16.mxu0 0
      %338 = vmatpush1.bf16.xpose.msra.mxu0 0
      %339 = vmatprep.subr.bf16.mxu0 0
      %340 = vmatpush1.bf16.xpose.msra.mxu0 %v323
      %341 = vmatprep.subr.bf16.mxu0 0
      %342 = vmatpush2.bf16.xpose.msra.mxu0 0
      %343 = vmatprep.subr.bf16.mxu0 0
      %344 = vmatpush2.bf16.xpose.msra.mxu0 0
      %345 = vmatprep.subr.bf16.mxu0 0
      %346 = vmatpush2.bf16.xpose.msra.mxu0 0
      %347 = vmatprep.subr.bf16.mxu0 0
      %348 = vmatpush2.bf16.xpose.msra.mxu0 0
      %349 = vmatprep.subr.bf16.mxu0 0
      %350 = vmatpush2.bf16.xpose.msra.mxu0 0
      %351 = vmatprep.subr.bf16.mxu0 0
      %352 = vmatpush2.bf16.xpose.msra.mxu0 0
      %353 = vmatprep.subr.bf16.mxu0 0
      %354 = vmatpush2.bf16.xpose.msra.mxu0 0
      %355 = vmatprep.subr.bf16.mxu0 0
      %356 = vmatpush2.bf16.xpose.msra.mxu0 0
      %357 = vmatprep.mubr.bf16.mxu0 0
      %358 = vmatmul.mubr.bf16.gmra.mxu0 %v320
      %v359 = vpop.f32.mrf.mxu0
      %v360 = vadd.f32 0.0, %v359
      %v361 = vpop.f32.mrf.mxu0
      %v362 = vpop.f32.mrf.mxu0
      %v363 = vadd.f32 0.0, %v362
      %v364 = vpop.f32.mrf.mxu0
      %365 = vdwg.mxu0
      %v367 = vsel %vm318, %v263, 0
      %v370 = vsel %vm318, %v287, 0
      %372 = vmatprep.subr.bf16.mxu0 0
      %373 = vmatpush1.bf16.xpose.msra.mxu0 0
      %374 = vmatprep.subr.bf16.mxu0 0
      %375 = vmatpush1.bf16.xpose.msra.mxu0 0
      %376 = vmatprep.subr.bf16.mxu0 0
      %377 = vmatpush1.bf16.xpose.msra.mxu0 0
      %378 = vmatprep.subr.bf16.mxu0 0
      %379 = vmatpush1.bf16.xpose.msra.mxu0 0
      %380 = vmatprep.subr.bf16.mxu0 0
      %381 = vmatpush1.bf16.xpose.msra.mxu0 0
      %382 = vmatprep.subr.bf16.mxu0 0
      %383 = vmatpush1.bf16.xpose.msra.mxu0 0
      %384 = vmatprep.subr.bf16.mxu0 0
      %385 = vmatpush1.bf16.xpose.msra.mxu0 0
      %386 = vmatprep.subr.bf16.mxu0 0
      %387 = vmatpush1.bf16.xpose.msra.mxu0 %v370
      %388 = vmatprep.subr.bf16.mxu0 0
      %389 = vmatpush2.bf16.xpose.msra.mxu0 0
      %390 = vmatprep.subr.bf16.mxu0 0
      %391 = vmatpush2.bf16.xpose.msra.mxu0 0
      %392 = vmatprep.subr.bf16.mxu0 0
      %393 = vmatpush2.bf16.xpose.msra.mxu0 0
      %394 = vmatprep.subr.bf16.mxu0 0
      %395 = vmatpush2.bf16.xpose.msra.mxu0 0
      %396 = vmatprep.subr.bf16.mxu0 0
      %397 = vmatpush2.bf16.xpose.msra.mxu0 0
      %398 = vmatprep.subr.bf16.mxu0 0
      %399 = vmatpush2.bf16.xpose.msra.mxu0 0
      %400 = vmatprep.subr.bf16.mxu0 0
      %401 = vmatpush2.bf16.xpose.msra.mxu0 0
      %402 = vmatprep.subr.bf16.mxu0 0
      %403 = vmatpush2.bf16.xpose.msra.mxu0 0
      %404 = vmatprep.mubr.bf16.mxu0 0
      %405 = vmatmul.mubr.bf16.gmra.mxu0 %v367
      %v406 = vpop.f32.mrf.mxu0
      %v407 = vadd.f32 0.0, %v406
      %v408 = vpop.f32.mrf.mxu0
      %v409 = vpop.f32.mrf.mxu0
      %v410 = vadd.f32 0.0, %v409
      %v411 = vpop.f32.mrf.mxu0
      %412 = vdwg.mxu0
      %v414 = vsel %vm318, %v264, 0
      %v417 = vsel %vm318, %v288, 0
      %419 = vmatprep.subr.bf16.mxu0 0
      %420 = vmatpush1.bf16.xpose.msra.mxu0 0
      %421 = vmatprep.subr.bf16.mxu0 0
      %422 = vmatpush1.bf16.xpose.msra.mxu0 0
      %423 = vmatprep.subr.bf16.mxu0 0
      %424 = vmatpush1.bf16.xpose.msra.mxu0 0
      %425 = vmatprep.subr.bf16.mxu0 0
      %426 = vmatpush1.bf16.xpose.msra.mxu0 0
      %427 = vmatprep.subr.bf16.mxu0 0
      %428 = vmatpush1.bf16.xpose.msra.mxu0 0
      %429 = vmatprep.subr.bf16.mxu0 0
      %430 = vmatpush1.bf16.xpose.msra.mxu0 0
      %431 = vmatprep.subr.bf16.mxu0 0
      %432 = vmatpush1.bf16.xpose.msra.mxu0 0
      %433 = vmatprep.subr.bf16.mxu0 0
      %434 = vmatpush1.bf16.xpose.msra.mxu0 %v417
      %435 = vmatprep.subr.bf16.mxu0 0
      %436 = vmatpush2.bf16.xpose.msra.mxu0 0
      %437 = vmatprep.subr.bf16.mxu0 0
      %438 = vmatpush2.bf16.xpose.msra.mxu0 0
      %439 = vmatprep.subr.bf16.mxu0 0
      %440 = vmatpush2.bf16.xpose.msra.mxu0 0
      %441 = vmatprep.subr.bf16.mxu0 0
      %442 = vmatpush2.bf16.xpose.msra.mxu0 0
      %443 = vmatprep.subr.bf16.mxu0 0
      %444 = vmatpush2.bf16.xpose.msra.mxu0 0
      %445 = vmatprep.subr.bf16.mxu0 0
      %446 = vmatpush2.bf16.xpose.msra.mxu0 0
      %447 = vmatprep.subr.bf16.mxu0 0
      %448 = vmatpush2.bf16.xpose.msra.mxu0 0
      %449 = vmatprep.subr.bf16.mxu0 0
      %450 = vmatpush2.bf16.xpose.msra.mxu0 0
      %451 = vmatprep.mubr.bf16.mxu0 0
      %452 = vmatmul.mubr.bf16.gmra.mxu0 %v414
      %v453 = vpop.f32.mrf.mxu0
      %v454 = vadd.f32 0.0, %v453
      %v455 = vpop.f32.mrf.mxu0
      %v456 = vpop.f32.mrf.mxu0
      %v457 = vadd.f32 0.0, %v456
      %v458 = vpop.f32.mrf.mxu0
      %459 = vdwg.mxu0
      %v461 = vsel %vm318, %v265, 0
      %v464 = vsel %vm318, %v289, 0
      %466 = vmatprep.subr.bf16.mxu0 0
      %467 = vmatpush1.bf16.xpose.msra.mxu0 0
      %468 = vmatprep.subr.bf16.mxu0 0
      %469 = vmatpush1.bf16.xpose.msra.mxu0 0
      %470 = vmatprep.subr.bf16.mxu0 0
      %471 = vmatpush1.bf16.xpose.msra.mxu0 0
      %472 = vmatprep.subr.bf16.mxu0 0
      %473 = vmatpush1.bf16.xpose.msra.mxu0 0
      %474 = vmatprep.subr.bf16.mxu0 0
      %475 = vmatpush1.bf16.xpose.msra.mxu0 0
      %476 = vmatprep.subr.bf16.mxu0 0
      %477 = vmatpush1.bf16.xpose.msra.mxu0 0
      %478 = vmatprep.subr.bf16.mxu0 0
      %479 = vmatpush1.bf16.xpose.msra.mxu0 0
      %480 = vmatprep.subr.bf16.mxu0 0
      %481 = vmatpush1.bf16.xpose.msra.mxu0 %v464
      %482 = vmatprep.subr.bf16.mxu0 0
      %483 = vmatpush2.bf16.xpose.msra.mxu0 0
      %484 = vmatprep.subr.bf16.mxu0 0
      %485 = vmatpush2.bf16.xpose.msra.mxu0 0
      %486 = vmatprep.subr.bf16.mxu0 0
      %487 = vmatpush2.bf16.xpose.msra.mxu0 0
      %488 = vmatprep.subr.bf16.mxu0 0
      %489 = vmatpush2.bf16.xpose.msra.mxu0 0
      %490 = vmatprep.subr.bf16.mxu0 0
      %491 = vmatpush2.bf16.xpose.msra.mxu0 0
      %492 = vmatprep.subr.bf16.mxu0 0
      %493 = vmatpush2.bf16.xpose.msra.mxu0 0
      %494 = vmatprep.subr.bf16.mxu0 0
      %495 = vmatpush2.bf16.xpose.msra.mxu0 0
      %496 = vmatprep.subr.bf16.mxu0 0
      %497 = vmatpush2.bf16.xpose.msra.mxu0 0
      %498 = vmatprep.mubr.bf16.mxu0 0
      %499 = vmatmul.mubr.bf16.gmra.mxu0 %v461
      %v500 = vpop.f32.mrf.mxu0
      %v501 = vadd.f32 0.0, %v500
      %v502 = vpop.f32.mrf.mxu0
      %v503 = vpop.f32.mrf.mxu0
      %v504 = vadd.f32 0.0, %v503
      %v505 = vpop.f32.mrf.mxu0
      %506 = vdwg.mxu0
      %v508 = vsel %vm318, %v266, 0
      %v511 = vsel %vm318, %v290, 0
      %513 = vmatprep.subr.bf16.mxu0 0
      %514 = vmatpush1.bf16.xpose.msra.mxu0 0
      %515 = vmatprep.subr.bf16.mxu0 0
      %516 = vmatpush1.bf16.xpose.msra.mxu0 0
      %517 = vmatprep.subr.bf16.mxu0 0
      %518 = vmatpush1.bf16.xpose.msra.mxu0 0
      %519 = vmatprep.subr.bf16.mxu0 0
      %520 = vmatpush1.bf16.xpose.msra.mxu0 0
      %521 = vmatprep.subr.bf16.mxu0 0
      %522 = vmatpush1.bf16.xpose.msra.mxu0 0
      %523 = vmatprep.subr.bf16.mxu0 0
      %524 = vmatpush1.bf16.xpose.msra.mxu0 0
      %525 = vmatprep.subr.bf16.mxu0 0
      %526 = vmatpush1.bf16.xpose.msra.mxu0 0
      %527 = vmatprep.subr.bf16.mxu0 0
      %528 = vmatpush1.bf16.xpose.msra.mxu0 %v511
      %529 = vmatprep.subr.bf16.mxu0 0
      %530 = vmatpush2.bf16.xpose.msra.mxu0 0
      %531 = vmatprep.subr.bf16.mxu0 0
      %532 = vmatpush2.bf16.xpose.msra.mxu0 0
      %533 = vmatprep.subr.bf16.mxu0 0
      %534 = vmatpush2.bf16.xpose.msra.mxu0 0
      %535 = vmatprep.subr.bf16.mxu0 0
      %536 = vmatpush2.bf16.xpose.msra.mxu0 0
      %537 = vmatprep.subr.bf16.mxu0 0
      %538 = vmatpush2.bf16.xpose.msra.mxu0 0
      %539 = vmatprep.subr.bf16.mxu0 0
      %540 = vmatpush2.bf16.xpose.msra.mxu0 0
      %541 = vmatprep.subr.bf16.mxu0 0
      %542 = vmatpush2.bf16.xpose.msra.mxu0 0
      %543 = vmatprep.subr.bf16.mxu0 0
      %544 = vmatpush2.bf16.xpose.msra.mxu0 0
      %545 = vmatprep.mubr.bf16.mxu0 0
      %546 = vmatmul.mubr.bf16.gmra.mxu0 %v508
      %v547 = vpop.f32.mrf.mxu0
      %v548 = vadd.f32 0.0, %v547
      %v549 = vpop.f32.mrf.mxu0
      %v550 = vpop.f32.mrf.mxu0
      %v551 = vadd.f32 0.0, %v550
      %v552 = vpop.f32.mrf.mxu0
      %553 = vdwg.mxu0
      %v555 = vsel %vm318, %v267, 0
      %v558 = vsel %vm318, %v291, 0
      %560 = vmatprep.subr.bf16.mxu0 0
      %561 = vmatpush1.bf16.xpose.msra.mxu0 0
      %562 = vmatprep.subr.bf16.mxu0 0
      %563 = vmatpush1.bf16.xpose.msra.mxu0 0
      %564 = vmatprep.subr.bf16.mxu0 0
      %565 = vmatpush1.bf16.xpose.msra.mxu0 0
      %566 = vmatprep.subr.bf16.mxu0 0
      %567 = vmatpush1.bf16.xpose.msra.mxu0 0
      %568 = vmatprep.subr.bf16.mxu0 0
      %569 = vmatpush1.bf16.xpose.msra.mxu0 0
      %570 = vmatprep.subr.bf16.mxu0 0
      %571 = vmatpush1.bf16.xpose.msra.mxu0 0
      %572 = vmatprep.subr.bf16.mxu0 0
      %573 = vmatpush1.bf16.xpose.msra.mxu0 0
      %574 = vmatprep.subr.bf16.mxu0 0
      %575 = vmatpush1.bf16.xpose.msra.mxu0 %v558
      %576 = vmatprep.subr.bf16.mxu0 0
      %577 = vmatpush2.bf16.xpose.msra.mxu0 0
      %578 = vmatprep.subr.bf16.mxu0 0
      %579 = vmatpush2.bf16.xpose.msra.mxu0 0
      %580 = vmatprep.subr.bf16.mxu0 0
      %581 = vmatpush2.bf16.xpose.msra.mxu0 0
      %582 = vmatprep.subr.bf16.mxu0 0
      %583 = vmatpush2.bf16.xpose.msra.mxu0 0
      %584 = vmatprep.subr.bf16.mxu0 0
      %585 = vmatpush2.bf16.xpose.msra.mxu0 0
      %586 = vmatprep.subr.bf16.mxu0 0
      %587 = vmatpush2.bf16.xpose.msra.mxu0 0
      %588 = vmatprep.subr.bf16.mxu0 0
      %589 = vmatpush2.bf16.xpose.msra.mxu0 0
      %590 = vmatprep.subr.bf16.mxu0 0
      %591 = vmatpush2.bf16.xpose.msra.mxu0 0
      %592 = vmatprep.mubr.bf16.mxu0 0
      %593 = vmatmul.mubr.bf16.gmra.mxu0 %v555
      %v594 = vpop.f32.mrf.mxu0
      %v595 = vadd.f32 0.0, %v594
      %v596 = vpop.f32.mrf.mxu0
      %v597 = vpop.f32.mrf.mxu0
      %v598 = vadd.f32 0.0, %v597
      %v599 = vpop.f32.mrf.mxu0
      %600 = vdwg.mxu0
      %v602 = vsel %vm318, %v268, 0
      %v605 = vsel %vm318, %v292, 0
      %607 = vmatprep.subr.bf16.mxu0 0
      %608 = vmatpush1.bf16.xpose.msra.mxu0 0
      %609 = vmatprep.subr.bf16.mxu0 0
      %610 = vmatpush1.bf16.xpose.msra.mxu0 0
      %611 = vmatprep.subr.bf16.mxu0 0
      %612 = vmatpush1.bf16.xpose.msra.mxu0 0
      %613 = vmatprep.subr.bf16.mxu0 0
      %614 = vmatpush1.bf16.xpose.msra.mxu0 0
      %615 = vmatprep.subr.bf16.mxu0 0
      %616 = vmatpush1.bf16.xpose.msra.mxu0 0
      %617 = vmatprep.subr.bf16.mxu0 0
      %618 = vmatpush1.bf16.xpose.msra.mxu0 0
      %619 = vmatprep.subr.bf16.mxu0 0
      %620 = vmatpush1.bf16.xpose.msra.mxu0 0
      %621 = vmatprep.subr.bf16.mxu0 0
      %622 = vmatpush1.bf16.xpose.msra.mxu0 %v605
      %623 = vmatprep.subr.bf16.mxu0 0
      %624 = vmatpush2.bf16.xpose.msra.mxu0 0
      %625 = vmatprep.subr.bf16.mxu0 0
      %626 = vmatpush2.bf16.xpose.msra.mxu0 0
      %627 = vmatprep.subr.bf16.mxu0 0
      %628 = vmatpush2.bf16.xpose.msra.mxu0 0
      %629 = vmatprep.subr.bf16.mxu0 0
      %630 = vmatpush2.bf16.xpose.msra.mxu0 0
      %631 = vmatprep.subr.bf16.mxu0 0
      %632 = vmatpush2.bf16.xpose.msra.mxu0 0
      %633 = vmatprep.subr.bf16.mxu0 0
      %634 = vmatpush2.bf16.xpose.msra.mxu0 0
      %635 = vmatprep.subr.bf16.mxu0 0
      %636 = vmatpush2.bf16.xpose.msra.mxu0 0
      %637 = vmatprep.subr.bf16.mxu0 0
      %638 = vmatpush2.bf16.xpose.msra.mxu0 0
      %639 = vmatprep.mubr.bf16.mxu0 0
      %640 = vmatmul.mubr.bf16.gmra.mxu0 %v602
      %v641 = vpop.f32.mrf.mxu0
      %v642 = vadd.f32 0.0, %v641
      %v643 = vpop.f32.mrf.mxu0
      %v644 = vpop.f32.mrf.mxu0
      %v645 = vadd.f32 0.0, %v644
      %v646 = vpop.f32.mrf.mxu0
      %647 = vdwg.mxu0
      %v649 = vsel %vm318, %v269, 0
      %v652 = vsel %vm318, %v293, 0
      %654 = vmatprep.subr.bf16.mxu0 0
      %655 = vmatpush1.bf16.xpose.msra.mxu0 0
      %656 = vmatprep.subr.bf16.mxu0 0
      %657 = vmatpush1.bf16.xpose.msra.mxu0 0
      %658 = vmatprep.subr.bf16.mxu0 0
      %659 = vmatpush1.bf16.xpose.msra.mxu0 0
      %660 = vmatprep.subr.bf16.mxu0 0
      %661 = vmatpush1.bf16.xpose.msra.mxu0 0
      %662 = vmatprep.subr.bf16.mxu0 0
      %663 = vmatpush1.bf16.xpose.msra.mxu0 0
      %664 = vmatprep.subr.bf16.mxu0 0
      %665 = vmatpush1.bf16.xpose.msra.mxu0 0
      %666 = vmatprep.subr.bf16.mxu0 0
      %667 = vmatpush1.bf16.xpose.msra.mxu0 0
      %668 = vmatprep.subr.bf16.mxu0 0
      %669 = vmatpush1.bf16.xpose.msra.mxu0 %v652
      %670 = vmatprep.subr.bf16.mxu0 0
      %671 = vmatpush2.bf16.xpose.msra.mxu0 0
      %672 = vmatprep.subr.bf16.mxu0 0
      %673 = vmatpush2.bf16.xpose.msra.mxu0 0
      %674 = vmatprep.subr.bf16.mxu0 0
      %675 = vmatpush2.bf16.xpose.msra.mxu0 0
      %676 = vmatprep.subr.bf16.mxu0 0
      %677 = vmatpush2.bf16.xpose.msra.mxu0 0
      %678 = vmatprep.subr.bf16.mxu0 0
      %679 = vmatpush2.bf16.xpose.msra.mxu0 0
      %680 = vmatprep.subr.bf16.mxu0 0
      %681 = vmatpush2.bf16.xpose.msra.mxu0 0
      %682 = vmatprep.subr.bf16.mxu0 0
      %683 = vmatpush2.bf16.xpose.msra.mxu0 0
      %684 = vmatprep.subr.bf16.mxu0 0
      %685 = vmatpush2.bf16.xpose.msra.mxu0 0
      %686 = vmatprep.mubr.bf16.mxu0 0
      %687 = vmatmul.mubr.bf16.gmra.mxu0 %v649
      %v688 = vpop.f32.mrf.mxu0
      %v689 = vadd.f32 0.0, %v688
      %v690 = vpop.f32.mrf.mxu0
      %v691 = vpop.f32.mrf.mxu0
      %v692 = vadd.f32 0.0, %v691
      %v693 = vpop.f32.mrf.mxu0
      %694 = vdwg.mxu0
      %v695 = vlaneseq
      %v696 = vshrl.u32 %v695, 7
      %v697 = vadd.s32 %v696, 8
      %v698 = vlaneseq
      %v699 = vand.u32 %v698, 127
      %vm700 = vcmp.le.s32.totalorder %v699, %v696
      %vm701 = vcmp.le.s32.totalorder %v699, %v697
      %v702 = vsel %vm700, 1, 0
      %v703 = vsel %vm701, 1, 0
      %vm704 = vcmp.eq.s32.totalorder %v702, 1
      %vm705 = vcmp.eq.s32.totalorder %v703, 1
      %v706 = vsel %vm704, %v360, -1e+30
      %v707 = vsel %vm705, %v363, -1e+30
      %v708 = vsel %vm704, %v407, -1e+30
      %v709 = vsel %vm705, %v410, -1e+30
      %v710 = vsel %vm704, %v454, -1e+30
      %v711 = vsel %vm705, %v457, -1e+30
      %v712 = vsel %vm704, %v501, -1e+30
      %v713 = vsel %vm705, %v504, -1e+30
      %v714 = vsel %vm704, %v548, -1e+30
      %v715 = vsel %vm705, %v551, -1e+30
      %v716 = vsel %vm704, %v595, -1e+30
      %v717 = vsel %vm705, %v598, -1e+30
      %v718 = vsel %vm704, %v642, -1e+30
      %v719 = vsel %vm705, %v645, -1e+30
      %v720 = vsel %vm704, %v689, -1e+30
      %v721 = vsel %vm705, %v692, -1e+30
      %vm722 = vcmask 97280
      %v723 = vsel %vm722, %v706, -inf
      %724 = vmax.xlane.f32.xlu0 %v723
      %v725 = vpop.xlane.xlu0 %724
      %vm726 = vcmask 93184
      %v727 = vsel %vm726, %v707, -inf
      %728 = vmax.xlane.f32.xlu0 %v727
      %v729 = vpop.xlane.xlu0 %728
      %v730 = vsel %vm722, %v708, -inf
      %731 = vmax.xlane.f32.xlu0 %v730
      %v732 = vpop.xlane.xlu0 %731
      %v733 = vsel %vm726, %v709, -inf
      %734 = vmax.xlane.f32.xlu0 %v733
      %v735 = vpop.xlane.xlu0 %734
      %v736 = vsel %vm722, %v710, -inf
      %737 = vmax.xlane.f32.xlu0 %v736
      %v738 = vpop.xlane.xlu0 %737
      %v739 = vsel %vm726, %v711, -inf
      %740 = vmax.xlane.f32.xlu0 %v739
      %v741 = vpop.xlane.xlu0 %740
      %v742 = vsel %vm722, %v712, -inf
      %743 = vmax.xlane.f32.xlu0 %v742
      %v744 = vpop.xlane.xlu0 %743
      %v745 = vsel %vm726, %v713, -inf
      %746 = vmax.xlane.f32.xlu0 %v745
      %v747 = vpop.xlane.xlu0 %746
      %v748 = vsel %vm722, %v714, -inf
      %749 = vmax.xlane.f32.xlu0 %v748
      %v750 = vpop.xlane.xlu0 %749
      %v751 = vsel %vm726, %v715, -inf
      %752 = vmax.xlane.f32.xlu0 %v751
      %v753 = vpop.xlane.xlu0 %752
      %v754 = vsel %vm722, %v716, -inf
      %755 = vmax.xlane.f32.xlu0 %v754
      %v756 = vpop.xlane.xlu0 %755
      %v757 = vsel %vm726, %v717, -inf
      %758 = vmax.xlane.f32.xlu0 %v757
      %v759 = vpop.xlane.xlu0 %758
      %v760 = vsel %vm722, %v718, -inf
      %761 = vmax.xlane.f32.xlu0 %v760
      %v762 = vpop.xlane.xlu0 %761
      %v763 = vsel %vm726, %v719, -inf
      %764 = vmax.xlane.f32.xlu0 %v763
      %v765 = vpop.xlane.xlu0 %764
      %v766 = vsel %vm722, %v720, -inf
      %767 = vmax.xlane.f32.xlu0 %v766
      %v768 = vpop.xlane.xlu0 %767
      %v769 = vsel %vm726, %v721, -inf
      %770 = vmax.xlane.f32.xlu0 %v769
      %v771 = vpop.xlane.xlu0 %770
      %v772 = vsub.f32 %v706, %v725
      %v773 = vsub.f32 %v707, %v729
      %v774 = vsub.f32 %v708, %v732
      %v775 = vsub.f32 %v709, %v735
      %v776 = vsub.f32 %v710, %v738
      %v777 = vsub.f32 %v711, %v741
      %v778 = vsub.f32 %v712, %v744
      %v779 = vsub.f32 %v713, %v747
      %v780 = vsub.f32 %v714, %v750
      %v781 = vsub.f32 %v715, %v753
      %v782 = vsub.f32 %v716, %v756
      %v783 = vsub.f32 %v717, %v759
      %v784 = vsub.f32 %v718, %v762
      %v785 = vsub.f32 %v719, %v765
      %v786 = vsub.f32 %v720, %v768
      %v787 = vsub.f32 %v721, %v771
      %v788 = vmul.f32 %v772, 1.442695
      %v789 = vpow.pop %v788
      %v790 = vmul.f32 %v773, 1.442695
      %v791 = vpow.pop %v790
      %v792 = vmul.f32 %v774, 1.442695
      %v793 = vpow.pop %v792
      %v794 = vmul.f32 %v775, 1.442695
      %v795 = vpow.pop %v794
      %v796 = vmul.f32 %v776, 1.442695
      %v797 = vpow.pop %v796
      %v798 = vmul.f32 %v777, 1.442695
      %v799 = vpow.pop %v798
      %v800 = vmul.f32 %v778, 1.442695
      %v801 = vpow.pop %v800
      %v802 = vmul.f32 %v779, 1.442695
      %v803 = vpow.pop %v802
      %v804 = vmul.f32 %v780, 1.442695
      %v805 = vpow.pop %v804
      %v806 = vmul.f32 %v781, 1.442695
      %v807 = vpow.pop %v806
      %v808 = vmul.f32 %v782, 1.442695
      %v809 = vpow.pop %v808
      %v810 = vmul.f32 %v783, 1.442695
      %v811 = vpow.pop %v810
      %v812 = vmul.f32 %v784, 1.442695
      %v813 = vpow.pop %v812
      %v814 = vmul.f32 %v785, 1.442695
      %v815 = vpow.pop %v814
      %v816 = vmul.f32 %v786, 1.442695
      %v817 = vpow.pop %v816
      %v818 = vmul.f32 %v787, 1.442695
      %v819 = vpow.pop %v818
      %v820 = vsel %vm722, %v789, 0.0
      %821 = vadd.xlane.f32.xlu0 %v820
      %v822 = vpop.xlane.xlu0 %821
      %v823 = vsel %vm726, %v791, 0.0
      %824 = vadd.xlane.f32.xlu0 %v823
      %v825 = vpop.xlane.xlu0 %824
      %v826 = vsel %vm722, %v793, 0.0
      %827 = vadd.xlane.f32.xlu0 %v826
      %v828 = vpop.xlane.xlu0 %827
      %v829 = vsel %vm726, %v795, 0.0
      %830 = vadd.xlane.f32.xlu0 %v829
      %v831 = vpop.xlane.xlu0 %830
      %v832 = vsel %vm722, %v797, 0.0
      %833 = vadd.xlane.f32.xlu0 %v832
      %v834 = vpop.xlane.xlu0 %833
      %v835 = vsel %vm726, %v799, 0.0
      %836 = vadd.xlane.f32.xlu0 %v835
      %v837 = vpop.xlane.xlu0 %836
      %v838 = vsel %vm722, %v801, 0.0
      %839 = vadd.xlane.f32.xlu0 %v838
      %v840 = vpop.xlane.xlu0 %839
      %v841 = vsel %vm726, %v803, 0.0
      %842 = vadd.xlane.f32.xlu0 %v841
      %v843 = vpop.xlane.xlu0 %842
      %v844 = vsel %vm722, %v805, 0.0
      %845 = vadd.xlane.f32.xlu0 %v844
      %v846 = vpop.xlane.xlu0 %845
      %v847 = vsel %vm726, %v807, 0.0
      %848 = vadd.xlane.f32.xlu0 %v847
      %v849 = vpop.xlane.xlu0 %848
      %v850 = vsel %vm722, %v809, 0.0
      %851 = vadd.xlane.f32.xlu0 %v850
      %v852 = vpop.xlane.xlu0 %851
      %v853 = vsel %vm726, %v811, 0.0
      %854 = vadd.xlane.f32.xlu0 %v853
      %v855 = vpop.xlane.xlu0 %854
      %v856 = vsel %vm722, %v813, 0.0
      %857 = vadd.xlane.f32.xlu0 %v856
      %v858 = vpop.xlane.xlu0 %857
      %v859 = vsel %vm726, %v815, 0.0
      %860 = vadd.xlane.f32.xlu0 %v859
      %v861 = vpop.xlane.xlu0 %860
      %v862 = vsel %vm722, %v817, 0.0
      %863 = vadd.xlane.f32.xlu0 %v862
      %v864 = vpop.xlane.xlu0 %863
      %v865 = vsel %vm726, %v819, 0.0
      %866 = vadd.xlane.f32.xlu0 %v865
      %v867 = vpop.xlane.xlu0 %866
      %v868 = vrcp.pop %v822
      %v869 = vrcp.pop %v825
      %v870 = vrcp.pop %v828
      %v871 = vrcp.pop %v831
      %v872 = vrcp.pop %v834
      %v873 = vrcp.pop %v837
      %v874 = vrcp.pop %v840
      %v875 = vrcp.pop %v843
      %v876 = vrcp.pop %v846
      %v877 = vrcp.pop %v849
      %v878 = vrcp.pop %v852
      %v879 = vrcp.pop %v855
      %v880 = vrcp.pop %v858
      %v881 = vrcp.pop %v861
      %v882 = vrcp.pop %v864
      %v883 = vrcp.pop %v867
      %v884 = vmul.f32 %v789, %v868
      %v885 = vmul.f32 %v791, %v869
      %v886 = vmul.f32 %v793, %v870
      %v887 = vmul.f32 %v795, %v871
      %v888 = vmul.f32 %v797, %v872
      %v889 = vmul.f32 %v799, %v873
      %v890 = vmul.f32 %v801, %v874
      %v891 = vmul.f32 %v803, %v875
      %v892 = vmul.f32 %v805, %v876
      %v893 = vmul.f32 %v807, %v877
      %v894 = vmul.f32 %v809, %v878
      %v895 = vmul.f32 %v811, %v879
      %v896 = vmul.f32 %v813, %v880
      %v897 = vmul.f32 %v815, %v881
      %v898 = vmul.f32 %v817, %v882
      %v899 = vmul.f32 %v819, %v883
      %v900 = vpack.c.bf16 %v885, %v884
      %v901 = vpack.c.bf16 %v887, %v886
      %v902 = vpack.c.bf16 %v889, %v888
      %v903 = vpack.c.bf16 %v891, %v890
      %v904 = vpack.c.bf16 %v893, %v892
      %v905 = vpack.c.bf16 %v895, %v894
      %v906 = vpack.c.bf16 %v897, %v896
      %v907 = vpack.c.bf16 %v899, %v898
      %v909 = vsel %vm722, %v900, 0
      %vm911 = vcmask 1045504
      %v913 = vsel %vm911, %v310, 0
      %915 = vmatprep.subr.bf16.mxu0 0
      %916 = vmatpush1.bf16.msra.mxu0 0
      %917 = vmatprep.subr.bf16.mxu0 0
      %918 = vmatpush1.bf16.msra.mxu0 0
      %919 = vmatprep.subr.bf16.mxu0 0
      %920 = vmatpush1.bf16.msra.mxu0 0
      %921 = vmatprep.subr.bf16.mxu0 0
      %922 = vmatpush1.bf16.msra.mxu0 0
      %923 = vmatprep.subr.bf16.mxu0 0
      %924 = vmatpush1.bf16.msra.mxu0 0
      %925 = vmatprep.subr.bf16.mxu0 0
      %926 = vmatpush1.bf16.msra.mxu0 0
      %927 = vmatprep.subr.bf16.mxu0 0
      %928 = vmatpush1.bf16.msra.mxu0 0
      %929 = vmatprep.subr.bf16.mxu0 0
      %930 = vmatpush1.bf16.msra.mxu0 %v913
      %931 = vmatprep.subr.bf16.mxu0 0
      %932 = vmatpush2.bf16.msra.mxu0 0
      %933 = vmatprep.subr.bf16.mxu0 0
      %934 = vmatpush2.bf16.msra.mxu0 0
      %935 = vmatprep.subr.bf16.mxu0 0
      %936 = vmatpush2.bf16.msra.mxu0 0
      %937 = vmatprep.subr.bf16.mxu0 0
      %938 = vmatpush2.bf16.msra.mxu0 0
      %939 = vmatprep.subr.bf16.mxu0 0
      %940 = vmatpush2.bf16.msra.mxu0 0
      %941 = vmatprep.subr.bf16.mxu0 0
      %942 = vmatpush2.bf16.msra.mxu0 0
      %943 = vmatprep.subr.bf16.mxu0 0
      %944 = vmatpush2.bf16.msra.mxu0 0
      %945 = vmatprep.subr.bf16.mxu0 0
      %946 = vmatpush2.bf16.msra.mxu0 0
      %947 = vmatprep.mubr.bf16.mxu0 0
      %948 = vmatmul.mubr.bf16.gmra.mxu0 %v909
      %v949 = vpop.f32.mrf.mxu0
      %v950 = vadd.f32 0.0, %v949
      %v951 = vpop.f32.mrf.mxu0
      %v952 = vpop.f32.mrf.mxu0
      %v953 = vadd.f32 0.0, %v952
      %v954 = vpop.f32.mrf.mxu0
      %955 = vdwg.mxu0
      %v957 = vsel %vm722, %v901, 0
      %v960 = vsel %vm911, %v311, 0
      %962 = vmatprep.subr.bf16.mxu0 0
      %963 = vmatpush1.bf16.msra.mxu0 0
      %964 = vmatprep.subr.bf16.mxu0 0
      %965 = vmatpush1.bf16.msra.mxu0 0
      %966 = vmatprep.subr.bf16.mxu0 0
      %967 = vmatpush1.bf16.msra.mxu0 0
      %968 = vmatprep.subr.bf16.mxu0 0
      %969 = vmatpush1.bf16.msra.mxu0 0
      %970 = vmatprep.subr.bf16.mxu0 0
      %971 = vmatpush1.bf16.msra.mxu0 0
      %972 = vmatprep.subr.bf16.mxu0 0
      %973 = vmatpush1.bf16.msra.mxu0 0
      %974 = vmatprep.subr.bf16.mxu0 0
      %975 = vmatpush1.bf16.msra.mxu0 0
      %976 = vmatprep.subr.bf16.mxu0 0
      %977 = vmatpush1.bf16.msra.mxu0 %v960
      %978 = vmatprep.subr.bf16.mxu0 0
      %979 = vmatpush2.bf16.msra.mxu0 0
      %980 = vmatprep.subr.bf16.mxu0 0
      %981 = vmatpush2.bf16.msra.mxu0 0
      %982 = vmatprep.subr.bf16.mxu0 0
      %983 = vmatpush2.bf16.msra.mxu0 0
      %984 = vmatprep.subr.bf16.mxu0 0
      %985 = vmatpush2.bf16.msra.mxu0 0
      %986 = vmatprep.subr.bf16.mxu0 0
      %987 = vmatpush2.bf16.msra.mxu0 0
      %988 = vmatprep.subr.bf16.mxu0 0
      %989 = vmatpush2.bf16.msra.mxu0 0
      %990 = vmatprep.subr.bf16.mxu0 0
      %991 = vmatpush2.bf16.msra.mxu0 0
      %992 = vmatprep.subr.bf16.mxu0 0
      %993 = vmatpush2.bf16.msra.mxu0 0
      %994 = vmatprep.mubr.bf16.mxu0 0
      %995 = vmatmul.mubr.bf16.gmra.mxu0 %v957
      %v996 = vpop.f32.mrf.mxu0
      %v997 = vadd.f32 0.0, %v996
      %v998 = vpop.f32.mrf.mxu0
      %v999 = vpop.f32.mrf.mxu0
      %v1000 = vadd.f32 0.0, %v999
      %v1001 = vpop.f32.mrf.mxu0
      %1002 = vdwg.mxu0
      %v1004 = vsel %vm722, %v902, 0
      %v1007 = vsel %vm911, %v312, 0
      %1009 = vmatprep.subr.bf16.mxu0 0
      %1010 = vmatpush1.bf16.msra.mxu0 0
      %1011 = vmatprep.subr.bf16.mxu0 0
      %1012 = vmatpush1.bf16.msra.mxu0 0
      %1013 = vmatprep.subr.bf16.mxu0 0
      %1014 = vmatpush1.bf16.msra.mxu0 0
      %1015 = vmatprep.subr.bf16.mxu0 0
      %1016 = vmatpush1.bf16.msra.mxu0 0
      %1017 = vmatprep.subr.bf16.mxu0 0
      %1018 = vmatpush1.bf16.msra.mxu0 0
      %1019 = vmatprep.subr.bf16.mxu0 0
      %1020 = vmatpush1.bf16.msra.mxu0 0
      %1021 = vmatprep.subr.bf16.mxu0 0
      %1022 = vmatpush1.bf16.msra.mxu0 0
      %1023 = vmatprep.subr.bf16.mxu0 0
      %1024 = vmatpush1.bf16.msra.mxu0 %v1007
      %1025 = vmatprep.subr.bf16.mxu0 0
      %1026 = vmatpush2.bf16.msra.mxu0 0
      %1027 = vmatprep.subr.bf16.mxu0 0
      %1028 = vmatpush2.bf16.msra.mxu0 0
      %1029 = vmatprep.subr.bf16.mxu0 0
      %1030 = vmatpush2.bf16.msra.mxu0 0
      %1031 = vmatprep.subr.bf16.mxu0 0
      %1032 = vmatpush2.bf16.msra.mxu0 0
      %1033 = vmatprep.subr.bf16.mxu0 0
      %1034 = vmatpush2.bf16.msra.mxu0 0
      %1035 = vmatprep.subr.bf16.mxu0 0
      %1036 = vmatpush2.bf16.msra.mxu0 0
      %1037 = vmatprep.subr.bf16.mxu0 0
      %1038 = vmatpush2.bf16.msra.mxu0 0
      %1039 = vmatprep.subr.bf16.mxu0 0
      %1040 = vmatpush2.bf16.msra.mxu0 0
      %1041 = vmatprep.mubr.bf16.mxu0 0
      %1042 = vmatmul.mubr.bf16.gmra.mxu0 %v1004
      %v1043 = vpop.f32.mrf.mxu0
      %v1044 = vadd.f32 0.0, %v1043
      %v1045 = vpop.f32.mrf.mxu0
      %v1046 = vpop.f32.mrf.mxu0
      %v1047 = vadd.f32 0.0, %v1046
      %v1048 = vpop.f32.mrf.mxu0
      %1049 = vdwg.mxu0
      %v1051 = vsel %vm722, %v903, 0
      %v1054 = vsel %vm911, %v313, 0
      %1056 = vmatprep.subr.bf16.mxu0 0
      %1057 = vmatpush1.bf16.msra.mxu0 0
      %1058 = vmatprep.subr.bf16.mxu0 0
      %1059 = vmatpush1.bf16.msra.mxu0 0
      %1060 = vmatprep.subr.bf16.mxu0 0
      %1061 = vmatpush1.bf16.msra.mxu0 0
      %1062 = vmatprep.subr.bf16.mxu0 0
      %1063 = vmatpush1.bf16.msra.mxu0 0
      %1064 = vmatprep.subr.bf16.mxu0 0
      %1065 = vmatpush1.bf16.msra.mxu0 0
      %1066 = vmatprep.subr.bf16.mxu0 0
      %1067 = vmatpush1.bf16.msra.mxu0 0
      %1068 = vmatprep.subr.bf16.mxu0 0
      %1069 = vmatpush1.bf16.msra.mxu0 0
      %1070 = vmatprep.subr.bf16.mxu0 0
      %1071 = vmatpush1.bf16.msra.mxu0 %v1054
      %1072 = vmatprep.subr.bf16.mxu0 0
      %1073 = vmatpush2.bf16.msra.mxu0 0
      %1074 = vmatprep.subr.bf16.mxu0 0
      %1075 = vmatpush2.bf16.msra.mxu0 0
      %1076 = vmatprep.subr.bf16.mxu0 0
      %1077 = vmatpush2.bf16.msra.mxu0 0
      %1078 = vmatprep.subr.bf16.mxu0 0
      %1079 = vmatpush2.bf16.msra.mxu0 0
      %1080 = vmatprep.subr.bf16.mxu0 0
      %1081 = vmatpush2.bf16.msra.mxu0 0
      %1082 = vmatprep.subr.bf16.mxu0 0
      %1083 = vmatpush2.bf16.msra.mxu0 0
      %1084 = vmatprep.subr.bf16.mxu0 0
      %1085 = vmatpush2.bf16.msra.mxu0 0
      %1086 = vmatprep.subr.bf16.mxu0 0
      %1087 = vmatpush2.bf16.msra.mxu0 0
      %1088 = vmatprep.mubr.bf16.mxu0 0
      %1089 = vmatmul.mubr.bf16.gmra.mxu0 %v1051
      %v1090 = vpop.f32.mrf.mxu0
      %v1091 = vadd.f32 0.0, %v1090
      %v1092 = vpop.f32.mrf.mxu0
      %v1093 = vpop.f32.mrf.mxu0
      %v1094 = vadd.f32 0.0, %v1093
      %v1095 = vpop.f32.mrf.mxu0
      %1096 = vdwg.mxu0
      %v1098 = vsel %vm722, %v904, 0
      %v1101 = vsel %vm911, %v314, 0
      %1103 = vmatprep.subr.bf16.mxu0 0
      %1104 = vmatpush1.bf16.msra.mxu0 0
      %1105 = vmatprep.subr.bf16.mxu0 0
      %1106 = vmatpush1.bf16.msra.mxu0 0
      %1107 = vmatprep.subr.bf16.mxu0 0
      %1108 = vmatpush1.bf16.msra.mxu0 0
      %1109 = vmatprep.subr.bf16.mxu0 0
      %1110 = vmatpush1.bf16.msra.mxu0 0
      %1111 = vmatprep.subr.bf16.mxu0 0
      %1112 = vmatpush1.bf16.msra.mxu0 0
      %1113 = vmatprep.subr.bf16.mxu0 0
      %1114 = vmatpush1.bf16.msra.mxu0 0
      %1115 = vmatprep.subr.bf16.mxu0 0
      %1116 = vmatpush1.bf16.msra.mxu0 0
      %1117 = vmatprep.subr.bf16.mxu0 0
      %1118 = vmatpush1.bf16.msra.mxu0 %v1101
      %1119 = vmatprep.subr.bf16.mxu0 0
      %1120 = vmatpush2.bf16.msra.mxu0 0
      %1121 = vmatprep.subr.bf16.mxu0 0
      %1122 = vmatpush2.bf16.msra.mxu0 0
      %1123 = vmatprep.subr.bf16.mxu0 0
      %1124 = vmatpush2.bf16.msra.mxu0 0
      %1125 = vmatprep.subr.bf16.mxu0 0
      %1126 = vmatpush2.bf16.msra.mxu0 0
      %1127 = vmatprep.subr.bf16.mxu0 0
      %1128 = vmatpush2.bf16.msra.mxu0 0
      %1129 = vmatprep.subr.bf16.mxu0 0
      %1130 = vmatpush2.bf16.msra.mxu0 0
      %1131 = vmatprep.subr.bf16.mxu0 0
      %1132 = vmatpush2.bf16.msra.mxu0 0
      %1133 = vmatprep.subr.bf16.mxu0 0
      %1134 = vmatpush2.bf16.msra.mxu0 0
      %1135 = vmatprep.mubr.bf16.mxu0 0
      %1136 = vmatmul.mubr.bf16.gmra.mxu0 %v1098
      %v1137 = vpop.f32.mrf.mxu0
      %v1138 = vadd.f32 0.0, %v1137
      %v1139 = vpop.f32.mrf.mxu0
      %v1140 = vpop.f32.mrf.mxu0
      %v1141 = vadd.f32 0.0, %v1140
      %v1142 = vpop.f32.mrf.mxu0
      %1143 = vdwg.mxu0
      %v1145 = vsel %vm722, %v905, 0
      %v1148 = vsel %vm911, %v315, 0
      %1150 = vmatprep.subr.bf16.mxu0 0
      %1151 = vmatpush1.bf16.msra.mxu0 0
      %1152 = vmatprep.subr.bf16.mxu0 0
      %1153 = vmatpush1.bf16.msra.mxu0 0
      %1154 = vmatprep.subr.bf16.mxu0 0
      %1155 = vmatpush1.bf16.msra.mxu0 0
      %1156 = vmatprep.subr.bf16.mxu0 0
      %1157 = vmatpush1.bf16.msra.mxu0 0
      %1158 = vmatprep.subr.bf16.mxu0 0
      %1159 = vmatpush1.bf16.msra.mxu0 0
      %1160 = vmatprep.subr.bf16.mxu0 0
      %1161 = vmatpush1.bf16.msra.mxu0 0
      %1162 = vmatprep.subr.bf16.mxu0 0
      %1163 = vmatpush1.bf16.msra.mxu0 0
      %1164 = vmatprep.subr.bf16.mxu0 0
      %1165 = vmatpush1.bf16.msra.mxu0 %v1148
      %1166 = vmatprep.subr.bf16.mxu0 0
      %1167 = vmatpush2.bf16.msra.mxu0 0
      %1168 = vmatprep.subr.bf16.mxu0 0
      %1169 = vmatpush2.bf16.msra.mxu0 0
      %1170 = vmatprep.subr.bf16.mxu0 0
      %1171 = vmatpush2.bf16.msra.mxu0 0
      %1172 = vmatprep.subr.bf16.mxu0 0
      %1173 = vmatpush2.bf16.msra.mxu0 0
      %1174 = vmatprep.subr.bf16.mxu0 0
      %1175 = vmatpush2.bf16.msra.mxu0 0
      %1176 = vmatprep.subr.bf16.mxu0 0
      %1177 = vmatpush2.bf16.msra.mxu0 0
      %1178 = vmatprep.subr.bf16.mxu0 0
      %1179 = vmatpush2.bf16.msra.mxu0 0
      %1180 = vmatprep.subr.bf16.mxu0 0
      %1181 = vmatpush2.bf16.msra.mxu0 0
      %1182 = vmatprep.mubr.bf16.mxu0 0
      %1183 = vmatmul.mubr.bf16.gmra.mxu0 %v1145
      %v1184 = vpop.f32.mrf.mxu0
      %v1185 = vadd.f32 0.0, %v1184
      %v1186 = vpop.f32.mrf.mxu0
      %v1187 = vpop.f32.mrf.mxu0
      %v1188 = vadd.f32 0.0, %v1187
      %v1189 = vpop.f32.mrf.mxu0
      %1190 = vdwg.mxu0
      %v1192 = vsel %vm722, %v906, 0
      %v1195 = vsel %vm911, %v316, 0
      %1197 = vmatprep.subr.bf16.mxu0 0
      %1198 = vmatpush1.bf16.msra.mxu0 0
      %1199 = vmatprep.subr.bf16.mxu0 0
      %1200 = vmatpush1.bf16.msra.mxu0 0
      %1201 = vmatprep.subr.bf16.mxu0 0
      %1202 = vmatpush1.bf16.msra.mxu0 0
      %1203 = vmatprep.subr.bf16.mxu0 0
      %1204 = vmatpush1.bf16.msra.mxu0 0
      %1205 = vmatprep.subr.bf16.mxu0 0
      %1206 = vmatpush1.bf16.msra.mxu0 0
      %1207 = vmatprep.subr.bf16.mxu0 0
      %1208 = vmatpush1.bf16.msra.mxu0 0
      %1209 = vmatprep.subr.bf16.mxu0 0
      %1210 = vmatpush1.bf16.msra.mxu0 0
      %1211 = vmatprep.subr.bf16.mxu0 0
      %1212 = vmatpush1.bf16.msra.mxu0 %v1195
      %1213 = vmatprep.subr.bf16.mxu0 0
      %1214 = vmatpush2.bf16.msra.mxu0 0
      %1215 = vmatprep.subr.bf16.mxu0 0
      %1216 = vmatpush2.bf16.msra.mxu0 0
      %1217 = vmatprep.subr.bf16.mxu0 0
      %1218 = vmatpush2.bf16.msra.mxu0 0
      %1219 = vmatprep.subr.bf16.mxu0 0
      %1220 = vmatpush2.bf16.msra.mxu0 0
      %1221 = vmatprep.subr.bf16.mxu0 0
      %1222 = vmatpush2.bf16.msra.mxu0 0
      %1223 = vmatprep.subr.bf16.mxu0 0
      %1224 = vmatpush2.bf16.msra.mxu0 0
      %1225 = vmatprep.subr.bf16.mxu0 0
      %1226 = vmatpush2.bf16.msra.mxu0 0
      %1227 = vmatprep.subr.bf16.mxu0 0
      %1228 = vmatpush2.bf16.msra.mxu0 0
      %1229 = vmatprep.mubr.bf16.mxu0 0
      %1230 = vmatmul.mubr.bf16.gmra.mxu0 %v1192
      %v1231 = vpop.f32.mrf.mxu0
      %v1232 = vadd.f32 0.0, %v1231
      %v1233 = vpop.f32.mrf.mxu0
      %v1234 = vpop.f32.mrf.mxu0
      %v1235 = vadd.f32 0.0, %v1234
      %v1236 = vpop.f32.mrf.mxu0
      %1237 = vdwg.mxu0
      %v1239 = vsel %vm722, %v907, 0
      %v1242 = vsel %vm911, %v317, 0
      %1244 = vmatprep.subr.bf16.mxu0 0
      %1245 = vmatpush1.bf16.msra.mxu0 0
      %1246 = vmatprep.subr.bf16.mxu0 0
      %1247 = vmatpush1.bf16.msra.mxu0 0
      %1248 = vmatprep.subr.bf16.mxu0 0
      %1249 = vmatpush1.bf16.msra.mxu0 0
      %1250 = vmatprep.subr.bf16.mxu0 0
      %1251 = vmatpush1.bf16.msra.mxu0 0
      %1252 = vmatprep.subr.bf16.mxu0 0
      %1253 = vmatpush1.bf16.msra.mxu0 0
      %1254 = vmatprep.subr.bf16.mxu0 0
      %1255 = vmatpush1.bf16.msra.mxu0 0
      %1256 = vmatprep.subr.bf16.mxu0 0
      %1257 = vmatpush1.bf16.msra.mxu0 0
      %1258 = vmatprep.subr.bf16.mxu0 0
      %1259 = vmatpush1.bf16.msra.mxu0 %v1242
      %1260 = vmatprep.subr.bf16.mxu0 0
      %1261 = vmatpush2.bf16.msra.mxu0 0
      %1262 = vmatprep.subr.bf16.mxu0 0
      %1263 = vmatpush2.bf16.msra.mxu0 0
      %1264 = vmatprep.subr.bf16.mxu0 0
      %1265 = vmatpush2.bf16.msra.mxu0 0
      %1266 = vmatprep.subr.bf16.mxu0 0
      %1267 = vmatpush2.bf16.msra.mxu0 0
      %1268 = vmatprep.subr.bf16.mxu0 0
      %1269 = vmatpush2.bf16.msra.mxu0 0
      %1270 = vmatprep.subr.bf16.mxu0 0
      %1271 = vmatpush2.bf16.msra.mxu0 0
      %1272 = vmatprep.subr.bf16.mxu0 0
      %1273 = vmatpush2.bf16.msra.mxu0 0
      %1274 = vmatprep.subr.bf16.mxu0 0
      %1275 = vmatpush2.bf16.msra.mxu0 0
      %1276 = vmatprep.mubr.bf16.mxu0 0
      %1277 = vmatmul.mubr.bf16.gmra.mxu0 %v1239
      %v1278 = vpop.f32.mrf.mxu0
      %v1279 = vadd.f32 0.0, %v1278
      %v1280 = vpop.f32.mrf.mxu0
      %v1281 = vpop.f32.mrf.mxu0
      %v1282 = vadd.f32 0.0, %v1281
      %v1283 = vpop.f32.mrf.mxu0
      %1284 = vdwg.mxu0
      %1285 = vst.msk [vmem:[%s227] sm:$0xff] %vm318, %v950
      %vm1286 = vcmask 125952
      %1287 = vst.msk [vmem:[%s227 + $0x8] sm:$0xf] %vm1286, %v953
      %1288 = vst.msk [vmem:[%s227 + $0x10] sm:$0xff] %vm318, %v997
      %1289 = vst.msk [vmem:[%s227 + $0x18] sm:$0xf] %vm1286, %v1000
      %1290 = vst.msk [vmem:[%s227 + $0x20] sm:$0xff] %vm318, %v1044
      %1291 = vst.msk [vmem:[%s227 + $0x28] sm:$0xf] %vm1286, %v1047
      %1292 = vst.msk [vmem:[%s227 + $0x30] sm:$0xff] %vm318, %v1091
      %1293 = vst.msk [vmem:[%s227 + $0x38] sm:$0xf] %vm1286, %v1094
      %1294 = vst.msk [vmem:[%s227 + $0x40] sm:$0xff] %vm318, %v1138
      %1295 = vst.msk [vmem:[%s227 + $0x48] sm:$0xf] %vm1286, %v1141
      %1296 = vst.msk [vmem:[%s227 + $0x50] sm:$0xff] %vm318, %v1185
      %1297 = vst.msk [vmem:[%s227 + $0x58] sm:$0xf] %vm1286, %v1188
      %1298 = vst.msk [vmem:[%s227 + $0x60] sm:$0xff] %vm318, %v1232
      %1299 = vst.msk [vmem:[%s227 + $0x68] sm:$0xf] %vm1286, %v1235
      %1300 = vst.msk [vmem:[%s227 + $0x70] sm:$0xff] %vm318, %v1279
      %1301 = vst.msk [vmem:[%s227 + $0x78] sm:$0xf] %vm1286, %v1282
      %s1302 = smul.u32 8, %s14
      %p1303 = scmp.lt.s32.totalorder %s1302, 15
      %s1304 = scalar_select %p1303, %s1302, 15
      %s1305 = smul.addr %s1304, 2
      %s1306 = smul.addr %s1305, 8
      %s1307 = scalar_lea.vmem %s3, %s1306
      // Predicated region
      $region33: #{transition_vit_forward.22} parent=31 // pred_check
        %p1308 = pneg %p110
      $region34: #{transition_vit_forward.22} parent=31 // pred_check_branch
        %1310 = sbr.rel (%p1308) target = $region36
      $region35: #{transition_vit_forward.22} parent=31 // pred_region
        %s1311 = smul.u32 8, %s14
      $region36: #{transition_vit_forward.22} parent=31 // pred_fallthru
        _
    $region32: #{transition_vit_forward.22} parent=5 // pred_fallthru
      _
    %p1312 = scmp.le.s32.totalorder 2, %s9
    // Predicated region
    $region37: #{transition_vit_forward.22} parent=5 // pred_check
      %p1313 = pneg %p1312
    $region38: #{transition_vit_forward.22} parent=5 // pred_check_branch
      %1315 = sbr.rel (%p1313) target = $region40
    $region39: #{transition_vit_forward.22} parent=5 // pred_region
      %s1316 = ssub.s32 %s9, 2
      // Predicated region
      $region41: #{transition_vit_forward.22} parent=39 // pred_check
        %p1317 = pneg %p116
      $region42: #{transition_vit_forward.22} parent=39 // pred_check_branch
        %1319 = sbr.rel (%p1317) target = $region44
      $region43: #{transition_vit_forward.22} parent=39 // pred_region
        %s1320 = smul.u32 8, %s15
        %p1321 = scmp.lt.s32.totalorder %s1320, 15
        %s1322 = scalar_select %p1321, %s1320, 15
        %s1323 = smul.addr %s1322, 2
        %s1324 = smul.addr %s1323, 8
        %s1325 = scalar_lea.vmem %s3, %s1324
      $region44: #{transition_vit_forward.22} parent=39 // pred_fallthru
        _
    $region40: #{transition_vit_forward.22} parent=5 // pred_fallthru
      _
  $region6: #{transition_vit_forward.22} parent=0 // loop_footer
    %s13 = sadd.s32 1, %s9
  $region7: #{transition_vit_forward.22} parent=0 // loop_footer_branch
    %8 = sbr.rel target = $region3
  $region8: #{transition_vit_forward.22} parent=0 // loop_exit
    _

// kernel: transition_vit_forward.27
$region0: #{transition_vit_forward.27}
  #allocation0 [shape = 'u32[]', space=smem, size = 0x4, offset = 0x4, fixed_abs, tag = 'smem constant byte address 0x4 - core index']
  #allocation1 [shape = 'u32[144,128]{1,0:T(1,128)}', space=vmem, size = 0x12000, scoped, tag = 'internal scratch']
  #allocation2 [shape = 'f32[8,128]{1,0:T(8,128)}', space=vmem, size = 0x1000, scoped, tag = 'scratch operand']
  %s0 = inlined_call_operand.vmem [shape: f32[24,128], index: 0, kind: input, shape index: {}]
  %s1 = inlined_call_operand.vmem [shape: f32[128,384], index: 1, kind: input, shape index: {}]
  %s2 = inlined_call_operand.vmem [shape: f32[1,384], index: 2, kind: input, shape index: {}]
  %s3 = inlined_call_operand.vmem [shape: f32[24,384], index: 3, kind: output, shape index: {}]
  %s4 = sld [smem:[#allocation0]]
  $region91: #{transition_vit_forward.27} parent=0
    _
  %s6 = ssub.s32 1, %s4
  %s7 = scalar_select 0, %s6, %s4
  $region1: #{transition_vit_forward.27} parent=0
    #allocation3 [shape = 'u8[131072]{0}', space=vmem, size = 0x20000, scoped, tag = 'input window, operand 1']
    loop: start=0, step=1, limit=11
    $region2: #{transition_vit_forward.27} parent=1 // loop_pre_header
      _
    $region3: #{transition_vit_forward.27} parent=1 // loop_header
      %s9 = sphi 0, %s13
      %p10 = scmp.ge.s32.totalorder %s9, 11
      %s16 = sphi 0, %s35
      %s17 = sphi 0, %s31
      %s18 = sphi 0, %s27
      %s19 = sphi 0, %s16
      %s20 = sphi 0, %s17
      %s21 = sphi 0, %s18
      %s22 = sphi 0, %s19
      %s23 = sphi 0, %s20
      %s24 = sphi 0, %s21
      %s40 = sphi 0, %s42
      %s43 = sphi 0, %s40
      %s44 = sphi 0, %s43
      %s60 = sphi 0, %s44
      %s68 = sphi 0, %s70
      %s71 = sphi 0, %s68
      %s72 = sphi 0, %s71
      %s88 = sphi 0, %s72
      %s94 = sphi 0, %s96
      %s97 = sphi 0, %s94
      %s98 = sphi 0, %s97
      %s114 = sphi 0, %s98
      %s122 = sphi 0, %s124
      %s125 = sphi 0, %s122
      %s126 = sphi 0, %s125
      %s142 = sphi 0, %s126
    $region4: #{transition_vit_forward.27} parent=1 // loop_header_branch
      %12 = sbr.rel (%p10) target = $region8
    $region5: #{transition_vit_forward.27} parent=1 // loop_body
      %s14 = ssub.s32 %s9, 1
      %s15 = ssub.s32 %s9, 2
      %s25 = sadd.s32 1, %s18
      %p26 = scmp.ge.s32.totalorder %s25, 1
      %s27 = scalar_select %p26, 0, %s25
      %s28 = sadd.s32 1, %s17
      %s29 = scalar_select %p26, %s28, %s17
      %p30 = scmp.ge.s32.totalorder %s29, 3
      %s31 = scalar_select %p30, 0, %s29
      %s32 = sadd.s32 1, %s16
      %s33 = scalar_select %p30, %s32, %s16
      %p34 = scmp.ge.s32.totalorder %s33, 3
      %s35 = scalar_select %p34, 0, %s33
      %s36 = ssub.s32 %s16, %s35
      %s37 = ssub.s32 %s18, %s27
      %s38 = sor.u32 %s36, %s37
      %p39 = scmp.eq.s32.totalorder %s38, 0
      %s41 = sadd.s32 %s40, 1
      %s42 = scalar_select %p39, %s40, %s41
      %p45 = pneg %p39
      %p46 = scmp.eq.s32.totalorder %s9, 8
      %p47 = por %p45, %p46
      %p48 = scmp.ne.s32.totalorder %s40, %s43
      %p49 = scmp.eq.s32.totalorder %s9, 0
      %p50 = por %p48, %p49
      %p51 = scmp.ne.s32.totalorder %s40, %s43
      %p52 = scmp.eq.s32.totalorder %s14, 8
      %p53 = por %p51, %p52
      %p54 = scmp.ne.s32.totalorder %s43, %s44
      %p55 = scmp.eq.s32.totalorder %s14, 0
      %p56 = por %p54, %p55
      %p57 = scmp.ne.s32.totalorder %s43, %s44
      %p58 = scmp.eq.s32.totalorder %s15, 8
      %p59 = por %p57, %p58
      %p61 = scmp.ne.s32.totalorder %s44, %s60
      %p62 = scmp.eq.s32.totalorder %s15, 0
      %p63 = por %p61, %p62
      %s64 = ssub.s32 %s18, %s27
      %s65 = ssub.s32 %s17, %s31
      %s66 = sor.u32 %s64, %s65
      %p67 = scmp.eq.s32.totalorder %s66, 0
      %s69 = sadd.s32 %s68, 1
      %s70 = scalar_select %p67, %s68, %s69
      %p73 = pneg %p67
      %p74 = scmp.eq.s32.totalorder %s9, 8
      %p75 = por %p73, %p74
      %p76 = scmp.ne.s32.totalorder %s68, %s71
      %p77 = scmp.eq.s32.totalorder %s9, 0
      %p78 = por %p76, %p77
      %p79 = scmp.ne.s32.totalorder %s68, %s71
      %p80 = scmp.eq.s32.totalorder %s14, 8
      %p81 = por %p79, %p80
      %p82 = scmp.ne.s32.totalorder %s71, %s72
      %p83 = scmp.eq.s32.totalorder %s14, 0
      %p84 = por %p82, %p83
      %p85 = scmp.ne.s32.totalorder %s71, %s72
      %p86 = scmp.eq.s32.totalorder %s15, 8
      %p87 = por %p85, %p86
      %p89 = scmp.ne.s32.totalorder %s72, %s88
      %p90 = scmp.eq.s32.totalorder %s15, 0
      %p91 = por %p89, %p90
      %s92 = ssub.s32 %s17, %s31
      %p93 = scmp.eq.s32.totalorder %s92, 0
      %s95 = sadd.s32 %s94, 1
      %s96 = scalar_select %p93, %s94, %s95
      %p99 = pneg %p93
      %p100 = scmp.eq.s32.totalorder %s9, 8
      %p101 = por %p99, %p100
      %p102 = scmp.ne.s32.totalorder %s94, %s97
      %p103 = scmp.eq.s32.totalorder %s9, 0
      %p104 = por %p102, %p103
      %p105 = scmp.ne.s32.totalorder %s94, %s97
      %p106 = scmp.eq.s32.totalorder %s14, 8
      %p107 = por %p105, %p106
      %p108 = scmp.ne.s32.totalorder %s97, %s98
      %p109 = scmp.eq.s32.totalorder %s14, 0
      %p110 = por %p108, %p109
      %p111 = scmp.ne.s32.totalorder %s97, %s98
      %p112 = scmp.eq.s32.totalorder %s15, 8
      %p113 = por %p111, %p112
      %p115 = scmp.ne.s32.totalorder %s98, %s114
      %p116 = scmp.eq.s32.totalorder %s15, 0
      %p117 = por %p115, %p116
      %s118 = ssub.s32 %s16, %s35
      %s119 = ssub.s32 %s17, %s31
      %s120 = sor.u32 %s118, %s119
      %p121 = scmp.eq.s32.totalorder %s120, 0
      %s123 = sadd.s32 %s122, 1
      %s124 = scalar_select %p121, %s122, %s123
      %p127 = pneg %p121
      %p128 = scmp.eq.s32.totalorder %s9, 8
      %p129 = por %p127, %p128
      %p130 = scmp.ne.s32.totalorder %s122, %s125
      %p131 = scmp.eq.s32.totalorder %s9, 0
      %p132 = por %p130, %p131
      %p133 = scmp.ne.s32.totalorder %s122, %s125
      %p134 = scmp.eq.s32.totalorder %s14, 8
      %p135 = por %p133, %p134
      %p136 = scmp.ne.s32.totalorder %s125, %s126
      %p137 = scmp.eq.s32.totalorder %s14, 0
      %p138 = por %p136, %p137
      %p139 = scmp.ne.s32.totalorder %s125, %s126
      %p140 = scmp.eq.s32.totalorder %s15, 8
      %p141 = por %p139, %p140
      %p143 = scmp.ne.s32.totalorder %s126, %s142
      %p144 = scmp.eq.s32.totalorder %s15, 0
      %p145 = por %p143, %p144
      %p146 = scmp.le.s32.totalorder 1, %s9
      %p147 = scmp.lt.s32.totalorder %s9, 10
      %p148 = pnand %p146, %p147
      %p149 = pneg %p148
      // Predicated region
      $region9: #{transition_vit_forward.27} parent=5 // pred_check
        _
      $region10: #{transition_vit_forward.27} parent=5 // pred_check_branch
        %151 = sbr.rel (%p148) target = $region12
      $region11: #{transition_vit_forward.27} parent=5 // pred_region
        %s152 = ssub.s32 %s9, 1
      $region12: #{transition_vit_forward.27} parent=5 // pred_fallthru
        _
      %p153 = scmp.lt.s32.totalorder %s9, 9
      // Predicated region
      $region13: #{transition_vit_forward.27} parent=5 // pred_check
        %p154 = pneg %p153
      $region14: #{transition_vit_forward.27} parent=5 // pred_check_branch
        %156 = sbr.rel (%p154) target = $region16
      $region15: #{transition_vit_forward.27} parent=5 // pred_region
        // Predicated region
        $region17: #{transition_vit_forward.27} parent=15 // pred_check
          %p157 = pneg %p50
        $region18: #{transition_vit_forward.27} parent=15 // pred_check_branch
          %159 = sbr.rel (%p157) target = $region20
        $region19: #{transition_vit_forward.27} parent=15 // pred_region
          %p160 = scmp.lt.s32.totalorder %s16, 2
          %s161 = scalar_select %p160, %s16, 2
          %p162 = scmp.lt.s32.totalorder %s18, 0
          %s163 = scalar_select %p162, %s18, 0
          %s164 = sadd.s32 %s163, %s161
          %s165 = smul.addr %s164, 8
          %s166 = scalar_lea.vmem %s0, %s165
        $region20: #{transition_vit_forward.27} parent=15 // pred_fallthru
          _
        // Predicated region
        $region21: #{transition_vit_forward.27} parent=15 // pred_check
          %p167 = pneg %p78
        $region22: #{transition_vit_forward.27} parent=15 // pred_check_branch
          %169 = sbr.rel (%p167) target = $region24
        $region23: #{transition_vit_forward.27} parent=15 // pred_region
          %s170 = sand.u32 %s68, 1
          %s171 = sand.u32 %s68, 1
          %s172 = smul.addr %s171, 128
          %s173 = scalar_lea.vmem [#allocation3], %s172
          %s174 = smul.u32 16, %s18
          %s175 = smul.addr %s174, 3
          %s176 = sadd.s32 %s17, %s175
          %s177 = smul.addr %s176, 8
          %s178 = scalar_lea.vmem %s1, %s177
          // Predicated region
          $region25: #{transition_vit_forward.27} parent=23 // pred_check
            _
          $region26: #{transition_vit_forward.27} parent=23 // pred_check_branch
            %180 = sbr.rel (0) target = $region28
          $region27: #{transition_vit_forward.27} parent=23 // pred_region
            // Predicated region
            $region29: #{transition_vit_forward.27} parent=27 // pred_check
              _
            $region30: #{transition_vit_forward.27} parent=27 // pred_check_branch
              %182 = sbr.rel (0) target = $region32
            $region31: #{transition_vit_forward.27} parent=27 // pred_region
              // Predicated region
              $region44: #{transition_vit_forward.27} parent=31 // pred_check
                _
              $region45: #{transition_vit_forward.27} parent=31 // pred_check_branch
                %228 = sbr.rel (0) target = $region47
              $region46: #{transition_vit_forward.27} parent=31 // pred_region
                loop: start=0, step=1, limit=1
                $region48: #{transition_vit_forward.27} parent=46 // loop_pre_header
                  _
                $region49: #{transition_vit_forward.27} parent=46 // loop_header
                  %s230 = sphi 0, %s234
                  %p231 = scmp.ge.s32.totalorder %s230, 1
                  %s235 = sphi %s178, %s178
                  %s236 = sphi %s173, %s173
                $region50: #{transition_vit_forward.27} parent=46 // loop_header_branch
                  %233 = sbr.rel (%p231) target = $region54
                $region51: #{transition_vit_forward.27} parent=46 // loop_body
                  %v237 = vld [vmem:[%s235] sm:$0xff]
                  %238 = vst [vmem:[%s236] sm:$0xff] %v237
                  %v239 = vld [vmem:[%s235 + $0x18] sm:$0xff]
                  %240 = vst [vmem:[%s236 + $0x8] sm:$0xff] %v239
                  %v241 = vld [vmem:[%s235 + $0x30] sm:$0xff]
                  %242 = vst [vmem:[%s236 + $0x10] sm:$0xff] %v241
                  %v243 = vld [vmem:[%s235 + $0x48] sm:$0xff]
                  %244 = vst [vmem:[%s236 + $0x18] sm:$0xff] %v243
                  %v245 = vld [vmem:[%s235 + $0x60] sm:$0xff]
                  %246 = vst [vmem:[%s236 + $0x20] sm:$0xff] %v245
                  %v247 = vld [vmem:[%s235 + $0x78] sm:$0xff]
                  %248 = vst [vmem:[%s236 + $0x28] sm:$0xff] %v247
                  %v249 = vld [vmem:[%s235 + $0x90] sm:$0xff]
                  %250 = vst [vmem:[%s236 + $0x30] sm:$0xff] %v249
                  %v251 = vld [vmem:[%s235 + $0xa8] sm:$0xff]
                  %252 = vst [vmem:[%s236 + $0x38] sm:$0xff] %v251
                  %v253 = vld [vmem:[%s235 + $0xc0] sm:$0xff]
                  %254 = vst [vmem:[%s236 + $0x40] sm:$0xff] %v253
                  %v255 = vld [vmem:[%s235 + $0xd8] sm:$0xff]
                  %256 = vst [vmem:[%s236 + $0x48] sm:$0xff] %v255
                  %v257 = vld [vmem:[%s235 + $0xf0] sm:$0xff]
                  %258 = vst [vmem:[%s236 + $0x50] sm:$0xff] %v257
                  %v259 = vld [vmem:[%s235 + $0x108] sm:$0xff]
                  %260 = vst [vmem:[%s236 + $0x58] sm:$0xff] %v259
                  %v261 = vld [vmem:[%s235 + $0x120] sm:$0xff]
                  %262 = vst [vmem:[%s236 + $0x60] sm:$0xff] %v261
                  %v263 = vld [vmem:[%s235 + $0x138] sm:$0xff]
                  %264 = vst [vmem:[%s236 + $0x68] sm:$0xff] %v263
                  %v265 = vld [vmem:[%s235 + $0x150] sm:$0xff]
                  %266 = vst [vmem:[%s236 + $0x70] sm:$0xff] %v265
                  %v267 = vld [vmem:[%s235 + $0x168] sm:$0xff]
                  %268 = vst [vmem:[%s236 + $0x78] sm:$0xff] %v267
                $region52: #{transition_vit_forward.27} parent=46 // loop_footer
                  %s234 = sadd.s32 1, %s230
                $region53: #{transition_vit_forward.27} parent=46 // loop_footer_branch
                  %229 = sbr.rel target = $region49
                $region54: #{transition_vit_forward.27} parent=46 // loop_exit
                  _
              $region47: #{transition_vit_forward.27} parent=31 // pred_fallthru
                _
              // Predicated region
              $region55: #{transition_vit_forward.27} parent=31 // pred_check
                _
              $region56: #{transition_vit_forward.27} parent=31 // pred_check_branch
                %270 = sbr.rel target = $region58
              $region57: #{transition_vit_forward.27} parent=31 // pred_region
                _
              $region58: #{transition_vit_forward.27} parent=31 // pred_fallthru
                _
            $region32: #{transition_vit_forward.27} parent=27 // pred_fallthru
              _
            // Predicated region
            $region33: #{transition_vit_forward.27} parent=27 // pred_check
              _
            $region34: #{transition_vit_forward.27} parent=27 // pred_check_branch
              %184 = sbr.rel target = $region36
            $region35: #{transition_vit_forward.27} parent=27 // pred_region
              %s186 = ssub.s32 256, 1
              loop: start=0, step=1, limit=1
              $region37: #{transition_vit_forward.27} parent=35 // loop_pre_header
                _
              $region38: #{transition_vit_forward.27} parent=35 // loop_header
                %s188 = sphi 0, %s192
                %p189 = scmp.ge.s32.totalorder %s188, 1
                %s193 = sphi %s178, %s178
                %s194 = sphi %s173, %s173
              $region39: #{transition_vit_forward.27} parent=35 // loop_header_branch
                %191 = sbr.rel (%p189) target = $region43
              $region40: #{transition_vit_forward.27} parent=35 // loop_body
                %v195 = vld [vmem:[%s193] sm:%s186]
                %196 = vst [vmem:[%s194] sm:%s186] %v195
                %v197 = vld [vmem:[%s193 + $0x18] sm:%s186]
                %198 = vst [vmem:[%s194 + $0x8] sm:%s186] %v197
                %v199 = vld [vmem:[%s193 + $0x30] sm:%s186]
                %200 = vst [vmem:[%s194 + $0x10] sm:%s186] %v199
                %v201 = vld [vmem:[%s193 + $0x48] sm:%s186]
                %202 = vst [vmem:[%s194 + $0x18] sm:%s186] %v201
                %v203 = vld [vmem:[%s193 + $0x60] sm:%s186]
                %204 = vst [vmem:[%s194 + $0x20] sm:%s186] %v203
                %v205 = vld [vmem:[%s193 + $0x78] sm:%s186]
                %206 = vst [vmem:[%s194 + $0x28] sm:%s186] %v205
                %v207 = vld [vmem:[%s193 + $0x90] sm:%s186]
                %208 = vst [vmem:[%s194 + $0x30] sm:%s186] %v207
                %v209 = vld [vmem:[%s193 + $0xa8] sm:%s186]
                %210 = vst [vmem:[%s194 + $0x38] sm:%s186] %v209
                %v211 = vld [vmem:[%s193 + $0xc0] sm:%s186]
                %212 = vst [vmem:[%s194 + $0x40] sm:%s186] %v211
                %v213 = vld [vmem:[%s193 + $0xd8] sm:%s186]
                %214 = vst [vmem:[%s194 + $0x48] sm:%s186] %v213
                %v215 = vld [vmem:[%s193 + $0xf0] sm:%s186]
                %216 = vst [vmem:[%s194 + $0x50] sm:%s186] %v215
                %v217 = vld [vmem:[%s193 + $0x108] sm:%s186]
                %218 = vst [vmem:[%s194 + $0x58] sm:%s186] %v217
                %v219 = vld [vmem:[%s193 + $0x120] sm:%s186]
                %220 = vst [vmem:[%s194 + $0x60] sm:%s186] %v219
                %v221 = vld [vmem:[%s193 + $0x138] sm:%s186]
                %222 = vst [vmem:[%s194 + $0x68] sm:%s186] %v221
                %v223 = vld [vmem:[%s193 + $0x150] sm:%s186]
                %224 = vst [vmem:[%s194 + $0x70] sm:%s186] %v223
                %v225 = vld [vmem:[%s193 + $0x168] sm:%s186]
                %226 = vst [vmem:[%s194 + $0x78] sm:%s186] %v225
              $region41: #{transition_vit_forward.27} parent=35 // loop_footer
                %s192 = sadd.s32 1, %s188
              $region42: #{transition_vit_forward.27} parent=35 // loop_footer_branch
                %187 = sbr.rel target = $region38
              $region43: #{transition_vit_forward.27} parent=35 // loop_exit
                _
            $region36: #{transition_vit_forward.27} parent=27 // pred_fallthru
              _
          $region28: #{transition_vit_forward.27} parent=23 // pred_fallthru
            _
          %271 = vnop
        $region24: #{transition_vit_forward.27} parent=15 // pred_fallthru
          _
        // Predicated region
        $region59: #{transition_vit_forward.27} parent=15 // pred_check
          %p272 = pneg %p104
        $region60: #{transition_vit_forward.27} parent=15 // pred_check_branch
          %274 = sbr.rel (%p272) target = $region62
        $region61: #{transition_vit_forward.27} parent=15 // pred_region
          %p275 = scmp.lt.s32.totalorder %s17, 2
          %s276 = scalar_select %p275, %s17, 2
          %s277 = scalar_lea.vmem %s2, %s276
        $region62: #{transition_vit_forward.27} parent=15 // pred_fallthru
          _
      $region16: #{transition_vit_forward.27} parent=5 // pred_fallthru
        _
      %p278 = scmp.le.s32.totalorder 1, %s9
      %p279 = scmp.lt.s32.totalorder %s9, 10
      %p280 = pnand %p278, %p279
      %p281 = pneg %p280
      // Predicated region
      $region63: #{transition_vit_forward.27} parent=5 // pred_check
        _
      $region64: #{transition_vit_forward.27} parent=5 // pred_check_branch
        %283 = sbr.rel (%p280) target = $region66
      $region65: #{transition_vit_forward.27} parent=5 // pred_region
        %s284 = ssub.s32 %s9, 1
        %s285 = sand.u32 %s71, 1
        %s286 = sand.u32 %s71, 1
        %s287 = smul.addr %s286, 128
        %s288 = scalar_lea.vmem [#allocation3], %s287
        // Predicated region
        $region67: #{transition_vit_forward.27} parent=65 // pred_check
          %p289 = pneg %p84
        $region68: #{transition_vit_forward.27} parent=65 // pred_check_branch
          %291 = sbr.rel (%p289) target = $region70
        $region69: #{transition_vit_forward.27} parent=65 // pred_region
          _
        $region70: #{transition_vit_forward.27} parent=65 // pred_fallthru
          _
        %p292 = scmp.lt.s32.totalorder %s19, 2
        %s293 = scalar_select %p292, %s19, 2
        %p294 = scmp.lt.s32.totalorder %s21, 0
        %s295 = scalar_select %p294, %s21, 0
        %s296 = sadd.s32 %s295, %s293
        %s297 = smul.addr %s296, 8
        %s298 = scalar_lea.vmem %s0, %s297
        %p299 = pneg %p56
        %p300 = pneg %p53
        %s301 = sand.u32 %s71, 1
        %s302 = sand.u32 %s71, 1
        %s303 = smul.addr %s302, 128
        %s304 = scalar_lea.vmem [#allocation3], %s303
        %p305 = pneg %p84
        %p306 = pneg %p81
        %p307 = scmp.lt.s32.totalorder %s20, 2
        %s308 = scalar_select %p307, %s20, 2
        %s309 = scalar_lea.vmem %s2, %s308
        %p310 = pneg %p110
        %p311 = pneg %p107
        %p312 = pneg %p138
        %p313 = pneg %p135
        %p314 = scmp.lt.s32.totalorder %s19, 2
        %s315 = scalar_select %p314, %s19, 2
        %p316 = scmp.lt.s32.totalorder %s20, 2
        %s317 = scalar_select %p316, %s20, 2
        %s318 = smul.addr %s315, 3
        %s319 = sadd.s32 %s317, %s318
        %s320 = smul.addr %s319, 8
        %s321 = scalar_lea.vmem %s3, %s320
        %p322 = scmp.lt.s32.totalorder %s19, 2
        %s323 = scalar_select %p322, %s19, 2
        %p324 = scmp.lt.s32.totalorder %s21, 0
        %s325 = scalar_select %p324, %s21, 0
        %s326 = sadd.s32 %s325, %s323
        %s327 = smul.addr %s326, 8
        %s328 = scalar_lea.vmem %s0, %s327
        %s329 = smul.u32 16, %s21
        %p330 = scmp.lt.s32.totalorder %s20, 2
        %s331 = scalar_select %p330, %s20, 2
        %s332 = scalar_lea.vmem %s2, %s331
        %p333 = scmp.lt.s32.totalorder %s19, 2
        %s334 = scalar_select %p333, %s19, 2
        %p335 = scmp.lt.s32.totalorder %s20, 2
        %s336 = scalar_select %p335, %s20, 2
        %s337 = smul.addr %s334, 3
        %s338 = sadd.s32 %s336, %s337
        %s339 = smul.addr %s338, 8
        %s340 = scalar_lea.vmem %s3, %s339
        %p342 = scmp.eq.s32.totalorder %s21, 0
        // Predicated region
        $region71: #{transition_vit_forward.27} parent=65 // pred_check
          %p343 = pneg %p342
        $region72: #{transition_vit_forward.27} parent=65 // pred_check_branch
          %345 = sbr.rel (%p343) target = $region74
        $region73: #{transition_vit_forward.27} parent=65 // pred_region
          %346 = vst [vmem:[#allocation2] sm:$0xff] 0.0
        $region74: #{transition_vit_forward.27} parent=65 // pred_fallthru
          _
        %v347 = vld [vmem:[#allocation2] sm:$0xff]
        %v348 = vld [vmem:[%s328] sm:$0xff]
        %v349 = vpack.c.bf16 %v348, %v348
        %v350 = vld [vmem:[%s288] sm:$0xff]
        %v351 = vld [vmem:[%s288 + $0x8] sm:$0xff]
        %v352 = vld [vmem:[%s288 + $0x10] sm:$0xff]
        %v353 = vld [vmem:[%s288 + $0x18] sm:$0xff]
        %v354 = vld [vmem:[%s288 + $0x20] sm:$0xff]
        %v355 = vld [vmem:[%s288 + $0x28] sm:$0xff]
        %v356 = vld [vmem:[%s288 + $0x30] sm:$0xff]
        %v357 = vld [vmem:[%s288 + $0x38] sm:$0xff]
        %v358 = vld [vmem:[%s288 + $0x40] sm:$0xff]
        %v359 = vld [vmem:[%s288 + $0x48] sm:$0xff]
        %v360 = vld [vmem:[%s288 + $0x50] sm:$0xff]
        %v361 = vld [vmem:[%s288 + $0x58] sm:$0xff]
        %v362 = vld [vmem:[%s288 + $0x60] sm:$0xff]
        %v363 = vld [vmem:[%s288 + $0x68] sm:$0xff]
        %v364 = vld [vmem:[%s288 + $0x70] sm:$0xff]
        %v365 = vld [vmem:[%s288 + $0x78] sm:$0xff]
        %v366 = vpack.c.bf16 %v351, %v350
        %v367 = vpack.c.bf16 %v353, %v352
        %v368 = vpack.c.bf16 %v355, %v354
        %v369 = vpack.c.bf16 %v357, %v356
        %v370 = vpack.c.bf16 %v359, %v358
        %v371 = vpack.c.bf16 %v361, %v360
        %v372 = vpack.c.bf16 %v363, %v362
        %v373 = vpack.c.bf16 %v365, %v364
        %374 = vmatprep.subr.bf16.mxu0 0
        %375 = vmatpush1.bf16.msra.mxu0 %v373
        %376 = vmatprep.subr.bf16.mxu0 0
        %377 = vmatpush1.bf16.msra.mxu0 %v372
        %378 = vmatprep.subr.bf16.mxu0 0
        %379 = vmatpush1.bf16.msra.mxu0 %v371
        %380 = vmatprep.subr.bf16.mxu0 0
        %381 = vmatpush1.bf16.msra.mxu0 %v370
        %382 = vmatprep.subr.bf16.mxu0 0
        %383 = vmatpush1.bf16.msra.mxu0 %v369
        %384 = vmatprep.subr.bf16.mxu0 0
        %385 = vmatpush1.bf16.msra.mxu0 %v368
        %386 = vmatprep.subr.bf16.mxu0 0
        %387 = vmatpush1.bf16.msra.mxu0 %v367
        %388 = vmatprep.subr.bf16.mxu0 0
        %389 = vmatpush1.bf16.msra.mxu0 %v366
        %390 = vmatprep.subr.bf16.mxu0 0
        %391 = vmatpush2.bf16.msra.mxu0 0
        %392 = vmatprep.subr.bf16.mxu0 0
        %393 = vmatpush2.bf16.msra.mxu0 0
        %394 = vmatprep.subr.bf16.mxu0 0
        %395 = vmatpush2.bf16.msra.mxu0 0
        %396 = vmatprep.subr.bf16.mxu0 0
        %397 = vmatpush2.bf16.msra.mxu0 0
        %398 = vmatprep.subr.bf16.mxu0 0
        %399 = vmatpush2.bf16.msra.mxu0 0
        %400 = vmatprep.subr.bf16.mxu0 0
        %401 = vmatpush2.bf16.msra.mxu0 0
        %402 = vmatprep.subr.bf16.mxu0 0
        %403 = vmatpush2.bf16.msra.mxu0 0
        %404 = vmatprep.subr.bf16.mxu0 0
        %405 = vmatpush2.bf16.msra.mxu0 0
        %406 = vmatprep.mubr.bf16.mxu0 0
        %407 = vmatmul.mubr.bf16.gmra.mxu0 %v349
        %v408 = vpop.f32.mrf.mxu0
        %v409 = vadd.f32 0.0, %v408
        %v410 = vpop.f32.mrf.mxu0
        %v411 = vpop.f32.mrf.mxu0
        %v412 = vpop.f32.mrf.mxu0
        %413 = vdwg.mxu0
        %v414 = vadd.f32 %v347, %v409
        %415 = vst [vmem:[#allocation2] sm:$0xff] %v414
        // Predicated region
        $region75: #{transition_vit_forward.27} parent=65 // pred_check
          %p416 = pneg %p342
        $region76: #{transition_vit_forward.27} parent=65 // pred_check_branch
          %418 = sbr.rel (%p416) target = $region78
        $region77: #{transition_vit_forward.27} parent=65 // pred_region
          %v419 = vld [vmem:[#allocation2] sm:$0xff]
          %v420 = vld [vmem:[%s332] sm:$0x1]
          %v422 = vlaneseq
          %v423 = vshrl.u32 %v422, 7
          %v424 = vsub.s32 0, %v423
          %v425 = vrot.slane %v420, %v424
          %v427 = vadd.f32 %v419, %v425
          %428 = vst [vmem:[%s340] sm:$0xff] %v427
        $region78: #{transition_vit_forward.27} parent=65 // pred_fallthru
          _
        %p429 = scmp.lt.s32.totalorder %s19, 2
        %s430 = scalar_select %p429, %s19, 2
        %p431 = scmp.lt.s32.totalorder %s20, 2
        %s432 = scalar_select %p431, %s20, 2
        %s433 = smul.addr %s430, 3
        %s434 = sadd.s32 %s432, %s433
        %s435 = smul.addr %s434, 8
        %s436 = scalar_lea.vmem %s3, %s435
        // Predicated region
        $region79: #{transition_vit_forward.27} parent=65 // pred_check
          %p437 = pneg %p135
        $region80: #{transition_vit_forward.27} parent=65 // pred_check_branch
          %439 = sbr.rel (%p437) target = $region82
        $region81: #{transition_vit_forward.27} parent=65 // pred_region
          _
        $region82: #{transition_vit_forward.27} parent=65 // pred_fallthru
          _
      $region66: #{transition_vit_forward.27} parent=5 // pred_fallthru
        _
      %p440 = scmp.le.s32.totalorder 2, %s9
      // Predicated region
      $region83: #{transition_vit_forward.27} parent=5 // pred_check
        %p441 = pneg %p440
      $region84: #{transition_vit_forward.27} parent=5 // pred_check_branch
        %443 = sbr.rel (%p441) target = $region86
      $region85: #{transition_vit_forward.27} parent=5 // pred_region
        %s444 = ssub.s32 %s9, 2
        // Predicated region
        $region87: #{transition_vit_forward.27} parent=85 // pred_check
          %p445 = pneg %p141
        $region88: #{transition_vit_forward.27} parent=85 // pred_check_branch
          %447 = sbr.rel (%p445) target = $region90
        $region89: #{transition_vit_forward.27} parent=85 // pred_region
          %p448 = scmp.lt.s32.totalorder %s22, 2
          %s449 = scalar_select %p448, %s22, 2
          %p450 = scmp.lt.s32.totalorder %s23, 2
          %s451 = scalar_select %p450, %s23, 2
          %s452 = smul.addr %s449, 3
          %s453 = sadd.s32 %s451, %s452
          %s454 = smul.addr %s453, 8
          %s455 = scalar_lea.vmem %s3, %s454
        $region90: #{transition_vit_forward.27} parent=85 // pred_fallthru
          _
      $region86: #{transition_vit_forward.27} parent=5 // pred_fallthru
        _
    $region6: #{transition_vit_forward.27} parent=1 // loop_footer
      %s13 = sadd.s32 1, %s9
    $region7: #{transition_vit_forward.27} parent=1 // loop_footer_branch
      %8 = sbr.rel target = $region3
    $region8: #{transition_vit_forward.27} parent=1 // loop_exit
      _

// kernel: transition_vit_forward.33
$region0: #{transition_vit_forward.33}
  #allocation0 [shape = 'u32[]', space=smem, size = 0x4, offset = 0x4, fixed_abs, tag = 'smem constant byte address 0x4 - core index']
  #allocation1 [shape = 'u32[144,128]{1,0:T(1,128)}', space=vmem, size = 0x12000, scoped, tag = 'internal scratch']
  #allocation2 [shape = 'f32[8,128]{1,0:T(8,128)}', space=vmem, size = 0x1000, scoped, tag = 'scratch operand']
  %s0 = inlined_call_operand.vmem [shape: f32[8,128], index: 0, kind: input, shape index: {}]
  %s1 = inlined_call_operand.vmem [shape: f32[128,128], index: 1, kind: input, shape index: {}]
  %s2 = inlined_call_operand.vmem [shape: f32[1,128], index: 2, kind: input, shape index: {}]
  %s3 = inlined_call_operand.hbm [shape: f32[8,128], index: 3, kind: output, shape index: {}]
  %s4 = sld [smem:[#allocation0]]
  $region30: #{transition_vit_forward.33} parent=0
    _
  %s6 = ssub.s32 1, %s4
  %s7 = scalar_select 0, %s6, %s4
  $region1: #{transition_vit_forward.33} parent=0
    #allocation3 [shape = 'u8[4096]{0}', space=vmem, size = 0x1000, scoped, tag = 'output window, operand 0, single buffered']
    #allocation4 [shape = 's32[1]{0}', space=sflag, size = 0x4, scoped, tag = 'scoped memory for transition_vit_forward.33']
    %8 = vsyncpa [#allocation4], 0
    // Predicated region
    $region2: #{transition_vit_forward.33} parent=1 // pred_check
      _
    $region3: #{transition_vit_forward.33} parent=1 // pred_check_branch
      %10 = sbr.rel (0) target = $region5
    $region4: #{transition_vit_forward.33} parent=1 // pred_region
      _
    $region5: #{transition_vit_forward.33} parent=1 // pred_fallthru
      _
    // Predicated region
    $region6: #{transition_vit_forward.33} parent=1 // pred_check
      _
    $region7: #{transition_vit_forward.33} parent=1 // pred_check_branch
      %12 = sbr.rel (0) target = $region9
    $region8: #{transition_vit_forward.33} parent=1 // pred_region
      _
    $region9: #{transition_vit_forward.33} parent=1 // pred_fallthru
      _
    // Predicated region
    $region10: #{transition_vit_forward.33} parent=1 // pred_check
      _
    $region11: #{transition_vit_forward.33} parent=1 // pred_check_branch
      %14 = sbr.rel (0) target = $region13
    $region12: #{transition_vit_forward.33} parent=1 // pred_region
      _
    $region13: #{transition_vit_forward.33} parent=1 // pred_fallthru
      _
    %p16 = scmp.eq.s32.totalorder 0, 0
    // Predicated region
    $region14: #{transition_vit_forward.33} parent=1 // pred_check
      %p17 = pneg %p16
    $region15: #{transition_vit_forward.33} parent=1 // pred_check_branch
      %19 = sbr.rel (%p17) target = $region17
    $region16: #{transition_vit_forward.33} parent=1 // pred_region
      %20 = vst [vmem:[#allocation2] sm:$0xff] 0.0
    $region17: #{transition_vit_forward.33} parent=1 // pred_fallthru
      _
    %v21 = vld [vmem:[#allocation2] sm:$0xff]
    %v22 = vld [vmem:[%s0] sm:$0xff]
    %v23 = vpack.c.bf16 %v22, %v22
    %v24 = vld [vmem:[%s1] sm:$0xff]
    %v25 = vld [vmem:[%s1 + $0x8] sm:$0xff]
    %v26 = vld [vmem:[%s1 + $0x10] sm:$0xff]
    %v27 = vld [vmem:[%s1 + $0x18] sm:$0xff]
    %v28 = vld [vmem:[%s1 + $0x20] sm:$0xff]
    %v29 = vld [vmem:[%s1 + $0x28] sm:$0xff]
    %v30 = vld [vmem:[%s1 + $0x30] sm:$0xff]
    %v31 = vld [vmem:[%s1 + $0x38] sm:$0xff]
    %v32 = vld [vmem:[%s1 + $0x40] sm:$0xff]
    %v33 = vld [vmem:[%s1 + $0x48] sm:$0xff]
    %v34 = vld [vmem:[%s1 + $0x50] sm:$0xff]
    %v35 = vld [vmem:[%s1 + $0x58] sm:$0xff]
    %v36 = vld [vmem:[%s1 + $0x60] sm:$0xff]
    %v37 = vld [vmem:[%s1 + $0x68] sm:$0xff]
    %v38 = vld [vmem:[%s1 + $0x70] sm:$0xff]
    %v39 = vld [vmem:[%s1 + $0x78] sm:$0xff]
    %v40 = vpack.c.bf16 %v25, %v24
    %v41 = vpack.c.bf16 %v27, %v26
    %v42 = vpack.c.bf16 %v29, %v28
    %v43 = vpack.c.bf16 %v31, %v30
    %v44 = vpack.c.bf16 %v33, %v32
    %v45 = vpack.c.bf16 %v35, %v34
    %v46 = vpack.c.bf16 %v37, %v36
    %v47 = vpack.c.bf16 %v39, %v38
    %48 = vmatprep.subr.bf16.mxu0 0
    %49 = vmatpush1.bf16.msra.mxu0 %v47
    %50 = vmatprep.subr.bf16.mxu0 0
    %51 = vmatpush1.bf16.msra.mxu0 %v46
    %52 = vmatprep.subr.bf16.mxu0 0
    %53 = vmatpush1.bf16.msra.mxu0 %v45
    %54 = vmatprep.subr.bf16.mxu0 0
    %55 = vmatpush1.bf16.msra.mxu0 %v44
    %56 = vmatprep.subr.bf16.mxu0 0
    %57 = vmatpush1.bf16.msra.mxu0 %v43
    %58 = vmatprep.subr.bf16.mxu0 0
    %59 = vmatpush1.bf16.msra.mxu0 %v42
    %60 = vmatprep.subr.bf16.mxu0 0
    %61 = vmatpush1.bf16.msra.mxu0 %v41
    %62 = vmatprep.subr.bf16.mxu0 0
    %63 = vmatpush1.bf16.msra.mxu0 %v40
    %64 = vmatprep.subr.bf16.mxu0 0
    %65 = vmatpush2.bf16.msra.mxu0 0
    %66 = vmatprep.subr.bf16.mxu0 0
    %67 = vmatpush2.bf16.msra.mxu0 0
    %68 = vmatprep.subr.bf16.mxu0 0
    %69 = vmatpush2.bf16.msra.mxu0 0
    %70 = vmatprep.subr.bf16.mxu0 0
    %71 = vmatpush2.bf16.msra.mxu0 0
    %72 = vmatprep.subr.bf16.mxu0 0
    %73 = vmatpush2.bf16.msra.mxu0 0
    %74 = vmatprep.subr.bf16.mxu0 0
    %75 = vmatpush2.bf16.msra.mxu0 0
    %76 = vmatprep.subr.bf16.mxu0 0
    %77 = vmatpush2.bf16.msra.mxu0 0
    %78 = vmatprep.subr.bf16.mxu0 0
    %79 = vmatpush2.bf16.msra.mxu0 0
    %80 = vmatprep.mubr.bf16.mxu0 0
    %81 = vmatmul.mubr.bf16.gmra.mxu0 %v23
    %v82 = vpop.f32.mrf.mxu0
    %v83 = vadd.f32 0.0, %v82
    %v84 = vpop.f32.mrf.mxu0
    %v85 = vpop.f32.mrf.mxu0
    %v86 = vpop.f32.mrf.mxu0
    %87 = vdwg.mxu0
    %v88 = vadd.f32 %v21, %v83
    %89 = vst [vmem:[#allocation2] sm:$0xff] %v88
    // Predicated region
    $region18: #{transition_vit_forward.33} parent=1 // pred_check
      %p90 = pneg %p16
    $region19: #{transition_vit_forward.33} parent=1 // pred_check_branch
      %92 = sbr.rel (%p90) target = $region21
    $region20: #{transition_vit_forward.33} parent=1 // pred_region
      %v93 = vld [vmem:[#allocation2] sm:$0xff]
      %v94 = vld [vmem:[%s2] sm:$0x1]
      %v96 = vlaneseq
      %v97 = vshrl.u32 %v96, 7
      %v98 = vsub.s32 0, %v97
      %v99 = vrot.slane %v94, %v98
      %v101 = vadd.f32 %v93, %v99
      %102 = vst [vmem:[#allocation3] sm:$0xff] %v101
    $region21: #{transition_vit_forward.33} parent=1 // pred_fallthru
      _
    // Predicated region
    $region22: #{transition_vit_forward.33} parent=1 // pred_check
      _
    $region23: #{transition_vit_forward.33} parent=1 // pred_check_branch
      %104 = sbr.rel (0) target = $region25
    $region24: #{transition_vit_forward.33} parent=1 // pred_region
      %s106 = ssub.s32 128, 128
      %107 = vsyncadd [#allocation4], %s106
      %s109 = sshll.u32 [#allocation3], 4
      %s110 = int_to_ptr.vmem [resolvable:$true] %s109
      %112 = dma.vmem_to_hbm [thread:$0]  %s110, 128, %s3, [#allocation4]
    $region25: #{transition_vit_forward.33} parent=1 // pred_fallthru
      _
    // Predicated region
    $region26: #{transition_vit_forward.33} parent=1 // pred_check
      _
    $region27: #{transition_vit_forward.33} parent=1 // pred_check_branch
      %114 = sbr.rel (0) target = $region29
    $region28: #{transition_vit_forward.33} parent=1 // pred_region
      %115 = dma.done [#allocation4], 128
    $region29: #{transition_vit_forward.33} parent=1 // pred_fallthru
      _
    %116 = vsyncpa [#allocation4], 1

</llo_original>
